<compile_context>
chip_gen: v7x
topology: tpu7x:2x2x1
jax: 0.10.0
libtpu: 0.0.40
codegen_flags: <defaults>
</compile_context>

<pallas_src>
import math
import functools

import jax
import jax.numpy as jnp
from jax.experimental import pallas as pl
from jax.experimental.pallas import tpu as pltpu

_LN_EPS = 1e-5


def _vmem_limit_bytes():
    """Generation-aware VMEM budget (~75% of physical, capped at 96 MiB)."""
    try:
        cap = int(pltpu.get_tpu_info().vmem_capacity_bytes)
    except Exception:
        cap = 64 * 1024 * 1024  # conservative (v7x-sized) fallback
    return int(min(cap * 3 // 4, 96 * 1024 * 1024))


_VMEM_LIMIT = _vmem_limit_bytes()
_BIG_VMEM = _VMEM_LIMIT >= 72 * 1024 * 1024   # 128 MiB parts (v5e / v6e)
_TQ_MAX = 256 if _BIG_VMEM else 128            # attention query tile
_TM_MAX = 1024 if _BIG_VMEM else 512           # FFN / LN row tile


# ---------------------------------------------------------------------------
# Kernels
# ---------------------------------------------------------------------------
def _mha_block_kernel(*args, nhead, has_mask, eps):
    """Fused MHA block for one (batch, query-tile) grid step.

    Computes LayerNorm(xq + OutProj(MHA(q=(xq+posq)Wq, k=(xkv+posk)Wk, v=xkv Wv))).
    K/V projections over the full key sequence are computed at query-tile 0 and
    cached in VMEM scratch for all remaining query tiles of this batch element.
    """
    if has_mask:
        (xq_ref, posq_ref, xkv_ref, posk_ref, bias_ref,
         inw_ref, inb_ref, ow_ref, ob_ref, g_ref, b_ref,
         o_ref, k_scr, v_scr) = args
    else:
        (xq_ref, posq_ref, xkv_ref, posk_ref,
         inw_ref, inb_ref, ow_ref, ob_ref, g_ref, b_ref,
         o_ref, k_scr, v_scr) = args
        bias_ref = None

    D = xq_ref.shape[-1]
    dh = D // nhead
    tq = xq_ref.shape[1]
    Lk = k_scr.shape[0]

    in_w = inw_ref[...]                               # [D, 3D] bf16
    in_b = inb_ref[...]                               # [1, 3D] f32

    # K / V projection for the whole key sequence: once per batch element.
    @pl.when(pl.program_id(1) == 0)
    def _():
        xkv = xkv_ref[0].astype(jnp.float32)          # [Lk, D]
        k_in = (xkv + posk_ref[0].astype(jnp.float32)).astype(jnp.bfloat16)
        v_in = xkv.astype(jnp.bfloat16)
        k = jnp.dot(k_in, in_w[:, D:2 * D],
                    preferred_element_type=jnp.float32) + in_b[:, D:2 * D]
        v = jnp.dot(v_in, in_w[:, 2 * D:],
                    preferred_element_type=jnp.float32) + in_b[:, 2 * D:]
        k_scr[...] = k.astype(jnp.bfloat16)
        v_scr[...] = v.astype(jnp.bfloat16)

    # Q projection for this query tile (softmax scale pre-folded into Wq / bq).
    xq = xq_ref[0].astype(jnp.float32)                # [tq, D] residual source (f32)
    q_in = (xq + posq_ref[0].astype(jnp.float32)).astype(jnp.bfloat16)
    q = jnp.dot(q_in, in_w[:, :D],
                preferred_element_type=jnp.float32) + in_b[:, :D]
    q = q.astype(jnp.bfloat16)

    k = k_scr[...]                                    # [Lk, D] bf16
    v = v_scr[...]

    if has_mask:
        # Hoisted: materialize the additive key-padding bias once per grid step.
        bias = jnp.broadcast_to(bias_ref[0], (tq, Lk))

    # Per-head attention.  Query tiling bounds each head's live score tensor to
    # [tq, Lk] f32; total per-step score memory is nhead * tq * Lk f32 (a few MB
    # at real DETR sizes), independent of Lq.
    heads = []
    for h_i in range(nhead):
        sl = slice(h_i * dh, (h_i + 1) * dh)
        s = jax.lax.dot_general(q[:, sl], k[:, sl], (((1,), (1,)), ((), ())),
                                preferred_element_type=jnp.float32)   # [tq, Lk]
        if has_mask:
            # NOTE: a fully-masked row degrades to a uniform softmax (torch -> NaN);
            # DETR never fully masks a row.
            s = s + bias
        m = jnp.max(s, axis=-1, keepdims=True)
        p = jnp.exp(s - m)
        denom = jnp.sum(p, axis=-1, keepdims=True)
        p = p * pl.reciprocal(denom, approx=True)
        heads.append(jnp.dot(p.astype(jnp.bfloat16), v[:, sl],
                             preferred_element_type=jnp.float32))     # [tq, dh]

    attn = jnp.concatenate(heads, axis=-1)            # [tq, D] lane-dense
    proj = jnp.dot(attn.astype(jnp.bfloat16), ow_ref[...],
                   preferred_element_type=jnp.float32) + ob_ref[...]

    # Residual + LayerNorm (f32 statistics), store bf16 lane-dense.
    z = xq + proj
    mu = jnp.mean(z, axis=-1, keepdims=True)
    var = jnp.mean((z - mu) ** 2, axis=-1, keepdims=True)
    y = (z - mu) * jax.lax.rsqrt(var + eps) * g_ref[...] + b_ref[...]
    o_ref[0] = y.astype(o_ref.dtype)


def _ffn_block_kernel(x_ref, w1_ref, b1_ref, w2_ref, b2_ref, g_ref, b_ref, o_ref, *, eps):
    """LayerNorm(x + Linear2(ReLU(Linear1(x)))) for one row-tile (x is bf16)."""
    xb = x_ref[...]                                   # [tm, D] bf16
    h = jnp.dot(xb, w1_ref[...], preferred_element_type=jnp.float32) + b1_ref[...]
    h = jnp.maximum(h, 0.0)
    y = jnp.dot(h.astype(jnp.bfloat16), w2_ref[...],
                preferred_element_type=jnp.float32) + b2_ref[...]
    # NOTE: partial last row-tiles compute LN on padded garbage rows; harmless because
    # rows are independent and padded rows are never written back / read.
    z = xb.astype(jnp.float32) + y
    mu = jnp.mean(z, axis=-1, keepdims=True)
    var = jnp.mean((z - mu) ** 2, axis=-1, keepdims=True)
    out = (z - mu) * jax.lax.rsqrt(var + eps) * g_ref[...] + b_ref[...]
    o_ref[...] = out.astype(o_ref.dtype)


def _ln_kernel(x_ref, g_ref, b_ref, o_ref, *, eps):
    z = x_ref[...].astype(jnp.float32)
    mu = jnp.mean(z, axis=-1, keepdims=True)
    var = jnp.mean((z - mu) ** 2, axis=-1, keepdims=True)
    out = (z - mu) * jax.lax.rsqrt(var + eps) * g_ref[...] + b_ref[...]
    o_ref[...] = out.astype(o_ref.dtype)


# ---------------------------------------------------------------------------
# Wrappers
# ---------------------------------------------------------------------------
def mha_block(xq, posq, xkv, posk, mask_bias, attn_p, ln_g, ln_b, *, nhead):
    """xq [B,Lq,D] bf16; xkv [B,Lk,D] bf16; posq/posk [1 or B, L, D] bf16;
    mask_bias [B,1,Lk] f32 or None.  Returns LayerNorm(xq + MHA(...)) as bf16 [B,Lq,D].

    For self-attention pass xkv=xq, posk=posq (same array twice; the full-sequence
    view feeds the cached K/V projection, the tiled view feeds Q / the residual)."""
    B, Lq, D = xq.shape
    Lk = xkv.shape[1]
    has_mask = mask_bias is not None
    tq = Lq if Lq <= _TQ_MAX else _TQ_MAX
    n_qt = pl.cdiv(Lq, tq)

    def q_map(b, qt):
        return (b, qt, 0)

    def q_map_shared(b, qt):
        return (0, qt, 0)

    def kv_map(b, qt):
        return (b, 0, 0)

    def kv_map_shared(b, qt):
        return (0, 0, 0)

    def w_map(b, qt):
        return (0, 0)

    inputs = [xq, posq, xkv, posk]
    in_specs = [
        pl.BlockSpec((1, tq, D), q_map),
        pl.BlockSpec((1, tq, D), q_map if posq.shape[0] == B else q_map_shared),
        pl.BlockSpec((1, Lk, D), kv_map),
        pl.BlockSpec((1, Lk, D), kv_map if posk.shape[0] == B else kv_map_shared),
    ]
    if has_mask:
        inputs.append(mask_bias)
        in_specs.append(pl.BlockSpec((1, 1, Lk), kv_map))
    inputs += [attn_p["in_w"], attn_p["in_b"], attn_p["out_w"], attn_p["out_b"], ln_g, ln_b]
    in_specs += [
        pl.BlockSpec((D, 3 * D), w_map),
        pl.BlockSpec((1, 3 * D), w_map),
        pl.BlockSpec((D, D), w_map),
        pl.BlockSpec((1, D), w_map),
        pl.BlockSpec((1, D), w_map),
        pl.BlockSpec((1, D), w_map),
    ]

    kernel = functools.partial(_mha_block_kernel, nhead=nhead, has_mask=has_mask, eps=_LN_EPS)
    return pl.pallas_call(
        kernel,
        out_shape=jax.ShapeDtypeStruct((B, Lq, D), jnp.bfloat16),
        grid=(B, n_qt),
        in_specs=in_specs,
        out_specs=pl.BlockSpec((1, tq, D), q_map),
        scratch_shapes=[pltpu.VMEM((Lk, D), jnp.bfloat16),   # cached K projection
                        pltpu.VMEM((Lk, D), jnp.bfloat16)],  # cached V projection
        compiler_params=pltpu.CompilerParams(
            dimension_semantics=("parallel", "arbitrary"),
            vmem_limit_bytes=_VMEM_LIMIT),
    )(*inputs)


def ffn_block(x2d, w1, b1, w2, b2, ln_g, ln_b):
    """x2d [M,D] bf16; returns LayerNorm(x + W2 relu(W1 x)) bf16 [M,D]."""
    M, D = x2d.shape
    F = w1.shape[1]
    tm = min(M, _TM_MAX)
    return pl.pallas_call(
        functools.partial(_ffn_block_kernel, eps=_LN_EPS),
        out_shape=jax.ShapeDtypeStruct((M, D), jnp.bfloat16),
        grid=(pl.cdiv(M, tm),),
        in_specs=[
            pl.BlockSpec((tm, D), lambda i: (i, 0)),
            pl.BlockSpec((D, F), lambda i: (0, 0)),   # weights stay resident across M
            pl.BlockSpec((1, F), lambda i: (0, 0)),
            pl.BlockSpec((F, D), lambda i: (0, 0)),
            pl.BlockSpec((1, D), lambda i: (0, 0)),
            pl.BlockSpec((1, D), lambda i: (0, 0)),
            pl.BlockSpec((1, D), lambda i: (0, 0)),
        ],
        out_specs=pl.BlockSpec((tm, D), lambda i: (i, 0)),
        compiler_params=pltpu.CompilerParams(
            dimension_semantics=("parallel",),
            vmem_limit_bytes=_VMEM_LIMIT),
    )(x2d, w1, b1, w2, b2, ln_g, ln_b)


def layernorm(x2d, g, b):
    """x2d [M,D] bf16 -> f32 LayerNorm output (final decoder norm)."""
    M, D = x2d.shape
    tm = min(M, _TM_MAX)
    return pl.pallas_call(
        functools.partial(_ln_kernel, eps=_LN_EPS),
        out_shape=jax.ShapeDtypeStruct((M, D), jnp.float32),
        grid=(pl.cdiv(M, tm),),
        in_specs=[
            pl.BlockSpec((tm, D), lambda i: (i, 0)),
            pl.BlockSpec((1, D), lambda i: (0, 0)),
            pl.BlockSpec((1, D), lambda i: (0, 0)),
        ],
        out_specs=pl.BlockSpec((tm, D), lambda i: (i, 0)),
        compiler_params=pltpu.CompilerParams(
            dimension_semantics=("parallel",),
            vmem_limit_bytes=_VMEM_LIMIT),
    )(x2d, g, b)


# ---------------------------------------------------------------------------
# Encoder / decoder layers and full forward (batch-major [B, L, D], bf16 activations)
# ---------------------------------------------------------------------------
def encoder_layer(src, pos, mask_bias, p, nhead):
    x = mha_block(src, pos, src, pos, mask_bias, p["self_attn"],
                  p["ln1_g"], p["ln1_b"], nhead=nhead)
    B, L, D = x.shape
    y = ffn_block(x.reshape(B * L, D), p["lin1_w"], p["lin1_b"],
                  p["lin2_w"], p["lin2_b"], p["ln2_g"], p["ln2_b"])
    return y.reshape(B, L, D)


def decoder_layer(tgt, memory, query_pos, pos, mem_mask_bias, p, nhead):
    # self-attention over the queries (no key-padding mask)
    x = mha_block(tgt, query_pos, tgt, query_pos, None, p["self_attn"],
                  p["ln1_g"], p["ln1_b"], nhead=nhead)
    # cross-attention over the encoder memory
    x = mha_block(x, query_pos, memory, pos, mem_mask_bias, p["cross_attn"],
                  p["ln2_g"], p["ln2_b"], nhead=nhead)
    B, L, D = x.shape
    y = ffn_block(x.reshape(B * L, D), p["lin1_w"], p["lin1_b"],
                  p["lin2_w"], p["lin2_b"], p["ln3_g"], p["ln3_b"])
    return y.reshape(B, L, D)


def transformer_forward(params, src, mask, query_embed, pos_embed, *, nhead):
    bs, c, h, w = src.shape
    d = c
    hw = h * w
    # NCHW -> [B, HW, D]  (== torch's flatten(2).permute(2,0,1), batch-major) ; bf16 activations
    src_seq = src.reshape(bs, c, hw).transpose(0, 2, 1).astype(jnp.bfloat16)
    pos_seq = pos_embed.reshape(bs, c, hw).transpose(0, 2, 1).astype(jnp.bfloat16)
    nq = query_embed.shape[0]
    q_pos = query_embed[None].astype(jnp.bfloat16)             # [1, nq, D] shared over batch
    mask_flat = mask.reshape(bs, hw)
    mask_bias = jnp.where(mask_flat, jnp.float32(-1e30),
                          jnp.float32(0.0))[:, None, :]         # [B, 1, HW]
    tgt = jnp.zeros((bs, nq, d), jnp.bfloat16)

    memory = src_seq
    for lp in params["encoder"]:
        memory = encoder_layer(memory, pos_seq, mask_bias, lp, nhead)

    out = tgt
    for lp in params["decoder"]:
        out = decoder_layer(out, memory, q_pos, pos_seq, mask_bias, lp, nhead)

    # final decoder norm (return_intermediate=False path) -> plain LN kernel, f32 out
    out = layernorm(out.reshape(bs * nq, d),
                    params["dec_norm_g"], params["dec_norm_b"]).reshape(bs, nq, d)

    hs = out[None]                                              # [1, bs, nq, d]  (== hs.transpose(1,2))
    mem_out = memory.astype(jnp.float32).transpose(0, 2, 1).reshape(bs, c, h, w)
    return hs, mem_out


# ---------------------------------------------------------------------------
# Deterministic parameter init (xavier-uniform matrices, zero biases).
# Matmul weights are stored pre-transposed (x @ W layout) and in bf16 for the MXU;
# the softmax scale (dh**-0.5) is folded into the Q weights/bias at prep time.
# ---------------------------------------------------------------------------
def _xavier(key, out_dim, in_dim):
    limit = math.sqrt(6.0 / (in_dim + out_dim))
    return jax.random.uniform(key, (out_dim, in_dim), jnp.float32, -limit, limit)


def _mha_params(key, d_model, nhead):
    k1, k2 = jax.random.split(key)
    in_w = _xavier(k1, 3 * d_model, d_model)        # torch in_proj_weight [3D, D]
    out_w = _xavier(k2, d_model, d_model)           # torch out_proj.weight [D, D]
    scale = (d_model // nhead) ** -0.5
    in_w_t = in_w.T                                  # [D, 3D]
    in_w_t = in_w_t.at[:, :d_model].multiply(scale)  # fold softmax scale into Wq
    in_b = jnp.zeros((1, 3 * d_model), jnp.float32)  # zero bias; scale fold trivial
    return {
        "in_w": in_w_t.astype(jnp.bfloat16),
        "in_b": in_b,
        "out_w": out_w.T.astype(jnp.bfloat16),       # [D, D]
        "out_b": jnp.zeros((1, d_model), jnp.float32),
    }


def _ffn_params(k1, k2, d_model, dim_ff):
    return {
        "lin1_w": _xavier(k1, dim_ff, d_model).T.astype(jnp.bfloat16),   # [D, F]
        "lin1_b": jnp.zeros((1, dim_ff), jnp.float32),
        "lin2_w": _xavier(k2, d_model, dim_ff).T.astype(jnp.bfloat16),   # [F, D]
        "lin2_b": jnp.zeros((1, d_model), jnp.float32),
    }


def _ln(d):
    return jnp.ones((1, d), jnp.float32), jnp.zeros((1, d), jnp.float32)


def init_params(key, d_model, nhead, num_enc, num_dec, dim_ff):
    params = {"encoder": [], "decoder": []}
    keys = jax.random.split(key, num_enc + num_dec)
    for i in range(num_enc):
        ks = jax.random.split(keys[i], 3)
        lp = {"self_attn": _mha_params(ks[0], d_model, nhead)}
        lp.update(_ffn_params(ks[1], ks[2], d_model, dim_ff))
        lp["ln1_g"], lp["ln1_b"] = _ln(d_model)
        lp["ln2_g"], lp["ln2_b"] = _ln(d_model)
        params["encoder"].append(lp)
    for i in range(num_dec):
        ks = jax.random.split(keys[num_enc + i], 4)
        lp = {"self_attn": _mha_params(ks[0], d_model, nhead),
              "cross_attn": _mha_params(ks[1], d_model, nhead)}
        lp.update(_ffn_params(ks[2], ks[3], d_model, dim_ff))
        lp["ln1_g"], lp["ln1_b"] = _ln(d_model)
        lp["ln2_g"], lp["ln2_b"] = _ln(d_model)
        lp["ln3_g"], lp["ln3_b"] = _ln(d_model)
        params["decoder"].append(lp)
    params["dec_norm_g"], params["dec_norm_b"] = _ln(d_model)
    return params


# ---------------------------------------------------------------------------
if __name__ == "__main__":
    # Smoke-test config (D=32 < 128 lanes; real perf characteristics appear at D>=256).
    # TODO(synk): Dropout layers are identity (inference semantics); torch training-mode
    # dropout has no deterministic Pallas equivalent here.
    d_model, nhead = 32, 4
    num_enc, num_dec, dim_ff = 2, 2, 64
    bs, h, w, nq = 2, 4, 4, 8

    key = jax.random.PRNGKey(0)
    k_src, k_pos, k_query, k_param = jax.random.split(key, 4)
    src = jax.random.normal(k_src, (bs, d_model, h, w), jnp.float32)
    pos_embed = jax.random.normal(k_pos, (bs, d_model, h, w), jnp.float32)
    query_embed = jax.random.normal(k_query, (nq, d_model), jnp.float32)
    # key padding mask: pad the last spatial row of batch element 1
    mask = jnp.zeros((bs, h, w), dtype=bool).at[1, -1, :].set(True)

    params = init_params(k_param, d_model, nhead, num_enc, num_dec, dim_ff)

    fwd = jax.jit(functools.partial(transformer_forward, nhead=nhead))
    hs, mem = fwd(params, src, mask, query_embed, pos_embed)
    jax.block_until_ready((hs, mem))

    assert hs.shape == (1, bs, nq, d_model), hs.shape
    assert mem.shape == (bs, d_model, h, w), mem.shape
    assert bool(jnp.all(jnp.isfinite(hs))) and bool(jnp.all(jnp.isfinite(mem)))
    print("KERNEL_OK")
</pallas_src>

<mosaic_0001>
module attributes {stable_mosaic.version = 11 : i64} {
  func.func @_mha_block_kernel(%arg0: i32, %arg1: i32, %arg2: memref<1x16x32xbf16, #tpu.memory_space<vmem>>, %arg3: memref<1x16x32xbf16, #tpu.memory_space<vmem>>, %arg4: memref<1x16x32xbf16, #tpu.memory_space<vmem>>, %arg5: memref<1x16x32xbf16, #tpu.memory_space<vmem>>, %arg6: memref<1x1x16xf32, #tpu.memory_space<vmem>>, %arg7: memref<32x96xbf16, #tpu.memory_space<vmem>>, %arg8: memref<1x96xf32, #tpu.memory_space<vmem>>, %arg9: memref<32x32xbf16, #tpu.memory_space<vmem>>, %arg10: memref<1x32xf32, #tpu.memory_space<vmem>>, %arg11: memref<1x32xf32, #tpu.memory_space<vmem>>, %arg12: memref<1x32xf32, #tpu.memory_space<vmem>>, %arg13: memref<1x16x32xbf16, #tpu.memory_space<vmem>>, %arg14: memref<16x32xbf16, #tpu.memory_space<vmem>>, %arg15: memref<16x32xbf16, #tpu.memory_space<vmem>>) attributes {dimension_semantics = [#tpu.dimension_semantics<parallel>, #tpu.dimension_semantics<arbitrary>], iteration_bounds = array<i64: 2, 1>, scalar_prefetch = 0 : i64, scratch_operands = 2 : i64, tpu.core_type = #tpu.core_type<tc>, window_params = [{transform_indices = @transform_0, window_bounds = array<i64: 1, 16, 32>}, {transform_indices = @transform_1, window_bounds = array<i64: 1, 16, 32>}, {transform_indices = @transform_2, window_bounds = array<i64: 1, 16, 32>}, {transform_indices = @transform_3, window_bounds = array<i64: 1, 16, 32>}, {transform_indices = @transform_4, window_bounds = array<i64: 1, 1, 16>}, {pipeline_mode = #tpu.pipeline_mode<synchronous>, transform_indices = @transform_5, window_bounds = array<i64: 32, 96>}, {pipeline_mode = #tpu.pipeline_mode<synchronous>, transform_indices = @transform_6, window_bounds = array<i64: 1, 96>}, {pipeline_mode = #tpu.pipeline_mode<synchronous>, transform_indices = @transform_7, window_bounds = array<i64: 32, 32>}, {pipeline_mode = #tpu.pipeline_mode<synchronous>, transform_indices = @transform_8, window_bounds = array<i64: 1, 32>}, {pipeline_mode = #tpu.pipeline_mode<synchronous>, transform_indices = @transform_9, window_bounds = array<i64: 1, 32>}, {pipeline_mode = #tpu.pipeline_mode<synchronous>, transform_indices = @transform_10, window_bounds = array<i64: 1, 32>}, {transform_indices = @transform_11, window_bounds = array<i64: 1, 16, 32>}]} {
    %c0 = arith.constant 0 : index
    %c0_0 = arith.constant 0 : index
    %0 = vector.load %arg7[%c0, %c0_0] : memref<32x96xbf16, #tpu.memory_space<vmem>>, vector<32x96xbf16>
    %c0_1 = arith.constant 0 : index
    %c0_2 = arith.constant 0 : index
    %1 = vector.load %arg8[%c0_1, %c0_2] : memref<1x96xf32, #tpu.memory_space<vmem>>, vector<1x96xf32>
    %c0_i32 = arith.constant 0 : i32
    %2 = arith.cmpi eq, %arg1, %c0_i32 : i32
    %3 = arith.extui %2 : i1 to i32
    %c0_i32_3 = arith.constant 0 : i32
    %4 = arith.cmpi ne, %3, %c0_i32_3 : i32
    scf.if %4 {
      %c0_50 = arith.constant 0 : index
      %c0_51 = arith.constant 0 : index
      %c0_52 = arith.constant 0 : index
      %129 = vector.load %arg4[%c0_50, %c0_51, %c0_52] : memref<1x16x32xbf16, #tpu.memory_space<vmem>>, vector<1x16x32xbf16>
      %130 = vector.shape_cast %129 : vector<1x16x32xbf16> to vector<16x32xbf16>
      %131 = arith.extf %130 : vector<16x32xbf16> to vector<16x32xf32>
      %c0_53 = arith.constant 0 : index
      %c0_54 = arith.constant 0 : index
      %c0_55 = arith.constant 0 : index
      %132 = vector.load %arg5[%c0_53, %c0_54, %c0_55] : memref<1x16x32xbf16, #tpu.memory_space<vmem>>, vector<1x16x32xbf16>
      %133 = vector.shape_cast %132 : vector<1x16x32xbf16> to vector<16x32xbf16>
      %134 = arith.extf %133 : vector<16x32xbf16> to vector<16x32xf32>
      %135 = arith.addf %131, %134 : vector<16x32xf32>
      %136 = arith.truncf %135 : vector<16x32xf32> to vector<16x32xbf16>
      %137 = arith.truncf %131 : vector<16x32xf32> to vector<16x32xbf16>
      %138 = vector.extract_strided_slice %0 {offsets = [0, 32], sizes = [32, 32], strides = [1, 1]} : vector<32x96xbf16> to vector<32x32xbf16>
      %cst_56 = arith.constant dense<0.000000e+00> : vector<16x32xf32>
      %139 = tpu.matmul %136, %138, %cst_56 {dimension_numbers = #tpu.dot_dimension_numbers<[1], [0], [0], [1], [0, 0, 1, 1], [], []>} : vector<16x32xbf16>, vector<32x32xbf16>, vector<16x32xf32> -> vector<16x32xf32>
      %140 = vector.extract_strided_slice %1 {offsets = [0, 32], sizes = [1, 32], strides = [1, 1]} : vector<1x96xf32> to vector<1x32xf32>
      %141 = vector.broadcast %140 : vector<1x32xf32> to vector<16x32xf32>
      %142 = arith.addf %139, %141 : vector<16x32xf32>
      %143 = vector.extract_strided_slice %0 {offsets = [0, 64], sizes = [32, 32], strides = [1, 1]} : vector<32x96xbf16> to vector<32x32xbf16>
      %cst_57 = arith.constant dense<0.000000e+00> : vector<16x32xf32>
      %144 = tpu.matmul %137, %143, %cst_57 {dimension_numbers = #tpu.dot_dimension_numbers<[1], [0], [0], [1], [0, 0, 1, 1], [], []>} : vector<16x32xbf16>, vector<32x32xbf16>, vector<16x32xf32> -> vector<16x32xf32>
      %145 = vector.extract_strided_slice %1 {offsets = [0, 64], sizes = [1, 32], strides = [1, 1]} : vector<1x96xf32> to vector<1x32xf32>
      %146 = vector.broadcast %145 : vector<1x32xf32> to vector<16x32xf32>
      %147 = arith.addf %144, %146 : vector<16x32xf32>
      %148 = arith.truncf %142 : vector<16x32xf32> to vector<16x32xbf16>
      %c0_58 = arith.constant 0 : index
      %c0_59 = arith.constant 0 : index
      %149 = vector.load %arg14[%c0_58, %c0_59] : memref<16x32xbf16, #tpu.memory_space<vmem>>, vector<16x32xbf16>
      tpu.vector_store %arg14[%c0_58, %c0_59], %148 {strides = array<i32>} : memref<16x32xbf16, #tpu.memory_space<vmem>>, vector<16x32xbf16>,
      %150 = arith.truncf %147 : vector<16x32xf32> to vector<16x32xbf16>
      %c0_60 = arith.constant 0 : index
      %c0_61 = arith.constant 0 : index
      %151 = vector.load %arg15[%c0_60, %c0_61] : memref<16x32xbf16, #tpu.memory_space<vmem>>, vector<16x32xbf16>
      tpu.vector_store %arg15[%c0_60, %c0_61], %150 {strides = array<i32>} : memref<16x32xbf16, #tpu.memory_space<vmem>>, vector<16x32xbf16>,
    } else {
    }
    %c0_4 = arith.constant 0 : index
    %c0_5 = arith.constant 0 : index
    %c0_6 = arith.constant 0 : index
    %5 = vector.load %arg2[%c0_4, %c0_5, %c0_6] : memref<1x16x32xbf16, #tpu.memory_space<vmem>>, vector<1x16x32xbf16>
    %6 = vector.shape_cast %5 : vector<1x16x32xbf16> to vector<16x32xbf16>
    %7 = arith.extf %6 : vector<16x32xbf16> to vector<16x32xf32>
    %c0_7 = arith.constant 0 : index
    %c0_8 = arith.constant 0 : index
    %c0_9 = arith.constant 0 : index
    %8 = vector.load %arg3[%c0_7, %c0_8, %c0_9] : memref<1x16x32xbf16, #tpu.memory_space<vmem>>, vector<1x16x32xbf16>
    %9 = vector.shape_cast %8 : vector<1x16x32xbf16> to vector<16x32xbf16>
    %10 = arith.extf %9 : vector<16x32xbf16> to vector<16x32xf32>
    %11 = arith.addf %7, %10 : vector<16x32xf32>
    %12 = arith.truncf %11 : vector<16x32xf32> to vector<16x32xbf16>
    %13 = vector.extract_strided_slice %0 {offsets = [0, 0], sizes = [32, 32], strides = [1, 1]} : vector<32x96xbf16> to vector<32x32xbf16>
    %cst = arith.constant dense<0.000000e+00> : vector<16x32xf32>
    %14 = tpu.matmul %12, %13, %cst {dimension_numbers = #tpu.dot_dimension_numbers<[1], [0], [0], [1], [0, 0, 1, 1], [], []>} : vector<16x32xbf16>, vector<32x32xbf16>, vector<16x32xf32> -> vector<16x32xf32>
    %15 = vector.extract_strided_slice %1 {offsets = [0, 0], sizes = [1, 32], strides = [1, 1]} : vector<1x96xf32> to vector<1x32xf32>
    %16 = vector.broadcast %15 : vector<1x32xf32> to vector<16x32xf32>
    %17 = arith.addf %14, %16 : vector<16x32xf32>
    %18 = arith.truncf %17 : vector<16x32xf32> to vector<16x32xbf16>
    %c0_10 = arith.constant 0 : index
    %c0_11 = arith.constant 0 : index
    %19 = vector.load %arg14[%c0_10, %c0_11] : memref<16x32xbf16, #tpu.memory_space<vmem>>, vector<16x32xbf16>
    %c0_12 = arith.constant 0 : index
    %c0_13 = arith.constant 0 : index
    %20 = vector.load %arg15[%c0_12, %c0_13] : memref<16x32xbf16, #tpu.memory_space<vmem>>, vector<16x32xbf16>
    %c0_14 = arith.constant 0 : index
    %c0_15 = arith.constant 0 : index
    %c0_16 = arith.constant 0 : index
    %21 = vector.load %arg6[%c0_14, %c0_15, %c0_16] : memref<1x1x16xf32, #tpu.memory_space<vmem>>, vector<1x1x16xf32>
    %22 = vector.shape_cast %21 : vector<1x1x16xf32> to vector<1x16xf32>
    %23 = vector.shape_cast %22 : vector<1x16xf32> to vector<1x16xf32>
    %24 = vector.broadcast %23 : vector<1x16xf32> to vector<16x16xf32>
    %25 = vector.extract_strided_slice %18 {offsets = [0, 0], sizes = [16, 8], strides = [1, 1]} : vector<16x32xbf16> to vector<16x8xbf16>
    %26 = vector.extract_strided_slice %19 {offsets = [0, 0], sizes = [16, 8], strides = [1, 1]} : vector<16x32xbf16> to vector<16x8xbf16>
    %cst_17 = arith.constant dense<0.000000e+00> : vector<16x16xf32>
    %27 = tpu.matmul %25, %26, %cst_17 {dimension_numbers = #tpu.dot_dimension_numbers<[1], [1], [0], [0], [0, 0, 1, 0], [], []>} : vector<16x8xbf16>, vector<16x8xbf16>, vector<16x16xf32> -> vector<16x16xf32>
    %28 = arith.addf %27, %24 : vector<16x16xf32>
    %cst_18 = arith.constant dense<0xFF800000> : vector<16xf32>
    %29 = vector.multi_reduction <maximumf>, %28, %cst_18 [1] : vector<16x16xf32> to vector<16xf32>
    %30 = vector.shape_cast %29 : vector<16xf32> to vector<16x1xf32>
    %31 = vector.broadcast %30 : vector<16x1xf32> to vector<16x16xf32>
    %32 = arith.subf %28, %31 : vector<16x16xf32>
    %33 = math.exp %32 : vector<16x16xf32>
    %cst_19 = arith.constant dense<0.000000e+00> : vector<16xf32>
    %34 = vector.multi_reduction <add>, %33, %cst_19 [1] : vector<16x16xf32> to vector<16xf32>
    %35 = vector.shape_cast %34 : vector<16xf32> to vector<16x1xf32>
    %36 = tpu.reciprocal %35 {approx = true} : vector<16x1xf32> -> vector<16x1xf32>
    %37 = vector.broadcast %36 : vector<16x1xf32> to vector<16x16xf32>
    %38 = arith.mulf %33, %37 : vector<16x16xf32>
    %39 = arith.truncf %38 : vector<16x16xf32> to vector<16x16xbf16>
    %40 = vector.extract_strided_slice %20 {offsets = [0, 0], sizes = [16, 8], strides = [1, 1]} : vector<16x32xbf16> to vector<16x8xbf16>
    %cst_20 = arith.constant dense<0.000000e+00> : vector<16x8xf32>
    %41 = tpu.matmul %39, %40, %cst_20 {dimension_numbers = #tpu.dot_dimension_numbers<[1], [0], [0], [1], [0, 0, 1, 1], [], []>} : vector<16x16xbf16>, vector<16x8xbf16>, vector<16x8xf32> -> vector<16x8xf32>
    %42 = vector.extract_strided_slice %18 {offsets = [0, 8], sizes = [16, 8], strides = [1, 1]} : vector<16x32xbf16> to vector<16x8xbf16>
    %43 = vector.extract_strided_slice %19 {offsets = [0, 8], sizes = [16, 8], strides = [1, 1]} : vector<16x32xbf16> to vector<16x8xbf16>
    %cst_21 = arith.constant dense<0.000000e+00> : vector<16x16xf32>
    %44 = tpu.matmul %42, %43, %cst_21 {dimension_numbers = #tpu.dot_dimension_numbers<[1], [1], [0], [0], [0, 0, 1, 0], [], []>} : vector<16x8xbf16>, vector<16x8xbf16>, vector<16x16xf32> -> vector<16x16xf32>
    %45 = arith.addf %44, %24 : vector<16x16xf32>
    %cst_22 = arith.constant dense<0xFF800000> : vector<16xf32>
    %46 = vector.multi_reduction <maximumf>, %45, %cst_22 [1] : vector<16x16xf32> to vector<16xf32>
    %47 = vector.shape_cast %46 : vector<16xf32> to vector<16x1xf32>
    %48 = vector.broadcast %47 : vector<16x1xf32> to vector<16x16xf32>
    %49 = arith.subf %45, %48 : vector<16x16xf32>
    %50 = math.exp %49 : vector<16x16xf32>
    %cst_23 = arith.constant dense<0.000000e+00> : vector<16xf32>
    %51 = vector.multi_reduction <add>, %50, %cst_23 [1] : vector<16x16xf32> to vector<16xf32>
    %52 = vector.shape_cast %51 : vector<16xf32> to vector<16x1xf32>
    %53 = tpu.reciprocal %52 {approx = true} : vector<16x1xf32> -> vector<16x1xf32>
    %54 = vector.broadcast %53 : vector<16x1xf32> to vector<16x16xf32>
    %55 = arith.mulf %50, %54 : vector<16x16xf32>
    %56 = arith.truncf %55 : vector<16x16xf32> to vector<16x16xbf16>
    %57 = vector.extract_strided_slice %20 {offsets = [0, 8], sizes = [16, 8], strides = [1, 1]} : vector<16x32xbf16> to vector<16x8xbf16>
    %cst_24 = arith.constant dense<0.000000e+00> : vector<16x8xf32>
    %58 = tpu.matmul %56, %57, %cst_24 {dimension_numbers = #tpu.dot_dimension_numbers<[1], [0], [0], [1], [0, 0, 1, 1], [], []>} : vector<16x16xbf16>, vector<16x8xbf16>, vector<16x8xf32> -> vector<16x8xf32>
    %59 = vector.extract_strided_slice %18 {offsets = [0, 16], sizes = [16, 8], strides = [1, 1]} : vector<16x32xbf16> to vector<16x8xbf16>
    %60 = vector.extract_strided_slice %19 {offsets = [0, 16], sizes = [16, 8], strides = [1, 1]} : vector<16x32xbf16> to vector<16x8xbf16>
    %cst_25 = arith.constant dense<0.000000e+00> : vector<16x16xf32>
    %61 = tpu.matmul %59, %60, %cst_25 {dimension_numbers = #tpu.dot_dimension_numbers<[1], [1], [0], [0], [0, 0, 1, 0], [], []>} : vector<16x8xbf16>, vector<16x8xbf16>, vector<16x16xf32> -> vector<16x16xf32>
    %62 = arith.addf %61, %24 : vector<16x16xf32>
    %cst_26 = arith.constant dense<0xFF800000> : vector<16xf32>
    %63 = vector.multi_reduction <maximumf>, %62, %cst_26 [1] : vector<16x16xf32> to vector<16xf32>
    %64 = vector.shape_cast %63 : vector<16xf32> to vector<16x1xf32>
    %65 = vector.broadcast %64 : vector<16x1xf32> to vector<16x16xf32>
    %66 = arith.subf %62, %65 : vector<16x16xf32>
    %67 = math.exp %66 : vector<16x16xf32>
    %cst_27 = arith.constant dense<0.000000e+00> : vector<16xf32>
    %68 = vector.multi_reduction <add>, %67, %cst_27 [1] : vector<16x16xf32> to vector<16xf32>
    %69 = vector.shape_cast %68 : vector<16xf32> to vector<16x1xf32>
    %70 = tpu.reciprocal %69 {approx = true} : vector<16x1xf32> -> vector<16x1xf32>
    %71 = vector.broadcast %70 : vector<16x1xf32> to vector<16x16xf32>
    %72 = arith.mulf %67, %71 : vector<16x16xf32>
    %73 = arith.truncf %72 : vector<16x16xf32> to vector<16x16xbf16>
    %74 = vector.extract_strided_slice %20 {offsets = [0, 16], sizes = [16, 8], strides = [1, 1]} : vector<16x32xbf16> to vector<16x8xbf16>
    %cst_28 = arith.constant dense<0.000000e+00> : vector<16x8xf32>
    %75 = tpu.matmul %73, %74, %cst_28 {dimension_numbers = #tpu.dot_dimension_numbers<[1], [0], [0], [1], [0, 0, 1, 1], [], []>} : vector<16x16xbf16>, vector<16x8xbf16>, vector<16x8xf32> -> vector<16x8xf32>
    %76 = vector.extract_strided_slice %18 {offsets = [0, 24], sizes = [16, 8], strides = [1, 1]} : vector<16x32xbf16> to vector<16x8xbf16>
    %77 = vector.extract_strided_slice %19 {offsets = [0, 24], sizes = [16, 8], strides = [1, 1]} : vector<16x32xbf16> to vector<16x8xbf16>
    %cst_29 = arith.constant dense<0.000000e+00> : vector<16x16xf32>
    %78 = tpu.matmul %76, %77, %cst_29 {dimension_numbers = #tpu.dot_dimension_numbers<[1], [1], [0], [0], [0, 0, 1, 0], [], []>} : vector<16x8xbf16>, vector<16x8xbf16>, vector<16x16xf32> -> vector<16x16xf32>
    %79 = arith.addf %78, %24 : vector<16x16xf32>
    %cst_30 = arith.constant dense<0xFF800000> : vector<16xf32>
    %80 = vector.multi_reduction <maximumf>, %79, %cst_30 [1] : vector<16x16xf32> to vector<16xf32>
    %81 = vector.shape_cast %80 : vector<16xf32> to vector<16x1xf32>
    %82 = vector.broadcast %81 : vector<16x1xf32> to vector<16x16xf32>
    %83 = arith.subf %79, %82 : vector<16x16xf32>
    %84 = math.exp %83 : vector<16x16xf32>
    %cst_31 = arith.constant dense<0.000000e+00> : vector<16xf32>
    %85 = vector.multi_reduction <add>, %84, %cst_31 [1] : vector<16x16xf32> to vector<16xf32>
    %86 = vector.shape_cast %85 : vector<16xf32> to vector<16x1xf32>
    %87 = tpu.reciprocal %86 {approx = true} : vector<16x1xf32> -> vector<16x1xf32>
    %88 = vector.broadcast %87 : vector<16x1xf32> to vector<16x16xf32>
    %89 = arith.mulf %84, %88 : vector<16x16xf32>
    %90 = arith.truncf %89 : vector<16x16xf32> to vector<16x16xbf16>
    %91 = vector.extract_strided_slice %20 {offsets = [0, 24], sizes = [16, 8], strides = [1, 1]} : vector<16x32xbf16> to vector<16x8xbf16>
    %cst_32 = arith.constant dense<0.000000e+00> : vector<16x8xf32>
    %92 = tpu.matmul %90, %91, %cst_32 {dimension_numbers = #tpu.dot_dimension_numbers<[1], [0], [0], [1], [0, 0, 1, 1], [], []>} : vector<16x16xbf16>, vector<16x8xbf16>, vector<16x8xf32> -> vector<16x8xf32>
    %93 = tpu.concatenate %41, %58, %75, %92 in 1 : vector<16x8xf32>, vector<16x8xf32>, vector<16x8xf32>, vector<16x8xf32> -> vector<16x32xf32>
    %94 = arith.truncf %93 : vector<16x32xf32> to vector<16x32xbf16>
    %c0_33 = arith.constant 0 : index
    %c0_34 = arith.constant 0 : index
    %95 = vector.load %arg9[%c0_33, %c0_34] : memref<32x32xbf16, #tpu.memory_space<vmem>>, vector<32x32xbf16>
    %cst_35 = arith.constant dense<0.000000e+00> : vector<16x32xf32>
    %96 = tpu.matmul %94, %95, %cst_35 {dimension_numbers = #tpu.dot_dimension_numbers<[1], [0], [0], [1], [0, 0, 1, 1], [], []>} : vector<16x32xbf16>, vector<32x32xbf16>, vector<16x32xf32> -> vector<16x32xf32>
    %c0_36 = arith.constant 0 : index
    %c0_37 = arith.constant 0 : index
    %97 = vector.load %arg10[%c0_36, %c0_37] : memref<1x32xf32, #tpu.memory_space<vmem>>, vector<1x32xf32>
    %98 = vector.broadcast %97 : vector<1x32xf32> to vector<16x32xf32>
    %99 = arith.addf %96, %98 : vector<16x32xf32>
    %100 = arith.addf %7, %99 : vector<16x32xf32>
    %cst_38 = arith.constant dense<0.000000e+00> : vector<16xf32>
    %101 = vector.multi_reduction <add>, %100, %cst_38 [1] : vector<16x32xf32> to vector<16xf32>
    %102 = vector.shape_cast %101 : vector<16xf32> to vector<16x1xf32>
    %cst_39 = arith.constant 3.200000e+01 : f32
    %103 = vector.broadcast %cst_39 : f32 to vector<16x1xf32>
    %104 = arith.divf %102, %103 : vector<16x1xf32>
    %105 = vector.broadcast %104 : vector<16x1xf32> to vector<16x32xf32>
    %106 = arith.subf %100, %105 : vector<16x32xf32>
    %107 = arith.mulf %106, %106 : vector<16x32xf32>
    %cst_40 = arith.constant dense<0.000000e+00> : vector<16xf32>
    %108 = vector.multi_reduction <add>, %107, %cst_40 [1] : vector<16x32xf32> to vector<16xf32>
    %109 = vector.shape_cast %108 : vector<16xf32> to vector<16x1xf32>
    %cst_41 = arith.constant 3.200000e+01 : f32
    %110 = vector.broadcast %cst_41 : f32 to vector<16x1xf32>
    %111 = arith.divf %109, %110 : vector<16x1xf32>
    %112 = vector.broadcast %104 : vector<16x1xf32> to vector<16x32xf32>
    %113 = arith.subf %100, %112 : vector<16x32xf32>
    %cst_42 = arith.constant 9.99999974E-6 : f32
    %114 = vector.broadcast %cst_42 : f32 to vector<16x1xf32>
    %115 = arith.addf %111, %114 : vector<16x1xf32>
    %116 = math.rsqrt %115 : vector<16x1xf32>
    %117 = vector.broadcast %116 : vector<16x1xf32> to vector<16x32xf32>
    %118 = arith.mulf %113, %117 : vector<16x32xf32>
    %c0_43 = arith.constant 0 : index
    %c0_44 = arith.constant 0 : index
    %119 = vector.load %arg11[%c0_43, %c0_44] : memref<1x32xf32, #tpu.memory_space<vmem>>, vector<1x32xf32>
    %120 = vector.broadcast %119 : vector<1x32xf32> to vector<16x32xf32>
    %121 = arith.mulf %118, %120 : vector<16x32xf32>
    %c0_45 = arith.constant 0 : index
    %c0_46 = arith.constant 0 : index
    %122 = vector.load %arg12[%c0_45, %c0_46] : memref<1x32xf32, #tpu.memory_space<vmem>>, vector<1x32xf32>
    %123 = vector.broadcast %122 : vector<1x32xf32> to vector<16x32xf32>
    %124 = arith.addf %121, %123 : vector<16x32xf32>
    %125 = arith.truncf %124 : vector<16x32xf32> to vector<16x32xbf16>
    %c0_47 = arith.constant 0 : index
    %c0_48 = arith.constant 0 : index
    %c0_49 = arith.constant 0 : index
    %126 = vector.load %arg13[%c0_47, %c0_48, %c0_49] : memref<1x16x32xbf16, #tpu.memory_space<vmem>>, vector<1x16x32xbf16>
    %127 = vector.shape_cast %126 : vector<1x16x32xbf16> to vector<16x32xbf16>
    %128 = vector.shape_cast %125 : vector<16x32xbf16> to vector<1x16x32xbf16>
    tpu.vector_store %arg13[%c0_47, %c0_48, %c0_49], %128 {strides = array<i32>} : memref<1x16x32xbf16, #tpu.memory_space<vmem>>, vector<1x16x32xbf16>,
    return
  }
  func.func @transform_0(%arg0: i32, %arg1: i32) -> (i32, i32, i32) {
    %c0_i32 = arith.constant 0 : i32
    %c0_i32_0 = arith.constant 0 : i32
    return %arg0, %arg1, %c0_i32 : i32, i32, i32
  }
  func.func @transform_1(%arg0: i32, %arg1: i32) -> (i32, i32, i32) {
    %c0_i32 = arith.constant 0 : i32
    %c0_i32_0 = arith.constant 0 : i32
    return %arg0, %arg1, %c0_i32 : i32, i32, i32
  }
  func.func @transform_2(%arg0: i32, %arg1: i32) -> (i32, i32, i32) {
    %c0_i32 = arith.constant 0 : i32
    %c0_i32_0 = arith.constant 0 : i32
    %c0_i32_1 = arith.constant 0 : i32
    return %arg0, %c0_i32, %c0_i32_0 : i32, i32, i32
  }
  func.func @transform_3(%arg0: i32, %arg1: i32) -> (i32, i32, i32) {
    %c0_i32 = arith.constant 0 : i32
    %c0_i32_0 = arith.constant 0 : i32
    %c0_i32_1 = arith.constant 0 : i32
    return %arg0, %c0_i32, %c0_i32_0 : i32, i32, i32
  }
  func.func @transform_4(%arg0: i32, %arg1: i32) -> (i32, i32, i32) {
    %c0_i32 = arith.constant 0 : i32
    %c0_i32_0 = arith.constant 0 : i32
    %c0_i32_1 = arith.constant 0 : i32
    return %arg0, %c0_i32, %c0_i32_0 : i32, i32, i32
  }
  func.func @transform_5(%arg0: i32, %arg1: i32) -> (i32, i32) {
    %c0_i32 = arith.constant 0 : i32
    %c0_i32_0 = arith.constant 0 : i32
    %c0_i32_1 = arith.constant 0 : i32
    return %c0_i32, %c0_i32_0 : i32, i32
  }
  func.func @transform_6(%arg0: i32, %arg1: i32) -> (i32, i32) {
    %c0_i32 = arith.constant 0 : i32
    %c0_i32_0 = arith.constant 0 : i32
    %c0_i32_1 = arith.constant 0 : i32
    return %c0_i32, %c0_i32_0 : i32, i32
  }
  func.func @transform_7(%arg0: i32, %arg1: i32) -> (i32, i32) {
    %c0_i32 = arith.constant 0 : i32
    %c0_i32_0 = arith.constant 0 : i32
    %c0_i32_1 = arith.constant 0 : i32
    return %c0_i32, %c0_i32_0 : i32, i32
  }
  func.func @transform_8(%arg0: i32, %arg1: i32) -> (i32, i32) {
    %c0_i32 = arith.constant 0 : i32
    %c0_i32_0 = arith.constant 0 : i32
    %c0_i32_1 = arith.constant 0 : i32
    return %c0_i32, %c0_i32_0 : i32, i32
  }
  func.func @transform_9(%arg0: i32, %arg1: i32) -> (i32, i32) {
    %c0_i32 = arith.constant 0 : i32
    %c0_i32_0 = arith.constant 0 : i32
    %c0_i32_1 = arith.constant 0 : i32
    return %c0_i32, %c0_i32_0 : i32, i32
  }
  func.func @transform_10(%arg0: i32, %arg1: i32) -> (i32, i32) {
    %c0_i32 = arith.constant 0 : i32
    %c0_i32_0 = arith.constant 0 : i32
    %c0_i32_1 = arith.constant 0 : i32
    return %c0_i32, %c0_i32_0 : i32, i32
  }
  func.func @transform_11(%arg0: i32, %arg1: i32) -> (i32, i32, i32) {
    %c0_i32 = arith.constant 0 : i32
    %c0_i32_0 = arith.constant 0 : i32
    return %arg0, %arg1, %c0_i32 : i32, i32, i32
  }
}

module attributes {stable_mosaic.version = 11 : i64} {
  func.func @_mha_block_kernel(%arg0: i32, %arg1: i32, %arg2: memref<1x8x32xbf16, #tpu.memory_space<vmem>>, %arg3: memref<1x8x32xbf16, #tpu.memory_space<vmem>>, %arg4: memref<1x8x32xbf16, #tpu.memory_space<vmem>>, %arg5: memref<1x8x32xbf16, #tpu.memory_space<vmem>>, %arg6: memref<32x96xbf16, #tpu.memory_space<vmem>>, %arg7: memref<1x96xf32, #tpu.memory_space<vmem>>, %arg8: memref<32x32xbf16, #tpu.memory_space<vmem>>, %arg9: memref<1x32xf32, #tpu.memory_space<vmem>>, %arg10: memref<1x32xf32, #tpu.memory_space<vmem>>, %arg11: memref<1x32xf32, #tpu.memory_space<vmem>>, %arg12: memref<1x8x32xbf16, #tpu.memory_space<vmem>>, %arg13: memref<8x32xbf16, #tpu.memory_space<vmem>>, %arg14: memref<8x32xbf16, #tpu.memory_space<vmem>>) attributes {dimension_semantics = [#tpu.dimension_semantics<parallel>, #tpu.dimension_semantics<arbitrary>], iteration_bounds = array<i64: 2, 1>, scalar_prefetch = 0 : i64, scratch_operands = 2 : i64, tpu.core_type = #tpu.core_type<tc>, window_params = [{transform_indices = @transform_0, window_bounds = array<i64: 1, 8, 32>}, {transform_indices = @transform_1, window_bounds = array<i64: 1, 8, 32>}, {transform_indices = @transform_2, window_bounds = array<i64: 1, 8, 32>}, {pipeline_mode = #tpu.pipeline_mode<synchronous>, transform_indices = @transform_3, window_bounds = array<i64: 1, 8, 32>}, {pipeline_mode = #tpu.pipeline_mode<synchronous>, transform_indices = @transform_4, window_bounds = array<i64: 32, 96>}, {pipeline_mode = #tpu.pipeline_mode<synchronous>, transform_indices = @transform_5, window_bounds = array<i64: 1, 96>}, {pipeline_mode = #tpu.pipeline_mode<synchronous>, transform_indices = @transform_6, window_bounds = array<i64: 32, 32>}, {pipeline_mode = #tpu.pipeline_mode<synchronous>, transform_indices = @transform_7, window_bounds = array<i64: 1, 32>}, {pipeline_mode = #tpu.pipeline_mode<synchronous>, transform_indices = @transform_8, window_bounds = array<i64: 1, 32>}, {pipeline_mode = #tpu.pipeline_mode<synchronous>, transform_indices = @transform_9, window_bounds = array<i64: 1, 32>}, {transform_indices = @transform_10, window_bounds = array<i64: 1, 8, 32>}]} {
    %c0 = arith.constant 0 : index
    %c0_0 = arith.constant 0 : index
    %0 = vector.load %arg6[%c0, %c0_0] : memref<32x96xbf16, #tpu.memory_space<vmem>>, vector<32x96xbf16>
    %c0_1 = arith.constant 0 : index
    %c0_2 = arith.constant 0 : index
    %1 = vector.load %arg7[%c0_1, %c0_2] : memref<1x96xf32, #tpu.memory_space<vmem>>, vector<1x96xf32>
    %c0_i32 = arith.constant 0 : i32
    %2 = arith.cmpi eq, %arg1, %c0_i32 : i32
    %3 = arith.extui %2 : i1 to i32
    %c0_i32_3 = arith.constant 0 : i32
    %4 = arith.cmpi ne, %3, %c0_i32_3 : i32
    scf.if %4 {
      %c0_47 = arith.constant 0 : index
      %c0_48 = arith.constant 0 : index
      %c0_49 = arith.constant 0 : index
      %121 = vector.load %arg4[%c0_47, %c0_48, %c0_49] : memref<1x8x32xbf16, #tpu.memory_space<vmem>>, vector<1x8x32xbf16>
      %122 = vector.shape_cast %121 : vector<1x8x32xbf16> to vector<8x32xbf16>
      %123 = arith.extf %122 : vector<8x32xbf16> to vector<8x32xf32>
      %c0_50 = arith.constant 0 : index
      %c0_51 = arith.constant 0 : index
      %c0_52 = arith.constant 0 : index
      %124 = vector.load %arg5[%c0_50, %c0_51, %c0_52] : memref<1x8x32xbf16, #tpu.memory_space<vmem>>, vector<1x8x32xbf16>
      %125 = vector.shape_cast %124 : vector<1x8x32xbf16> to vector<8x32xbf16>
      %126 = arith.extf %125 : vector<8x32xbf16> to vector<8x32xf32>
      %127 = arith.addf %123, %126 : vector<8x32xf32>
      %128 = arith.truncf %127 : vector<8x32xf32> to vector<8x32xbf16>
      %129 = arith.truncf %123 : vector<8x32xf32> to vector<8x32xbf16>
      %130 = vector.extract_strided_slice %0 {offsets = [0, 32], sizes = [32, 32], strides = [1, 1]} : vector<32x96xbf16> to vector<32x32xbf16>
      %cst_53 = arith.constant dense<0.000000e+00> : vector<8x32xf32>
      %131 = tpu.matmul %128, %130, %cst_53 {dimension_numbers = #tpu.dot_dimension_numbers<[1], [0], [0], [1], [0, 0, 1, 1], [], []>} : vector<8x32xbf16>, vector<32x32xbf16>, vector<8x32xf32> -> vector<8x32xf32>
      %132 = vector.extract_strided_slice %1 {offsets = [0, 32], sizes = [1, 32], strides = [1, 1]} : vector<1x96xf32> to vector<1x32xf32>
      %133 = vector.broadcast %132 : vector<1x32xf32> to vector<8x32xf32>
      %134 = arith.addf %131, %133 : vector<8x32xf32>
      %135 = vector.extract_strided_slice %0 {offsets = [0, 64], sizes = [32, 32], strides = [1, 1]} : vector<32x96xbf16> to vector<32x32xbf16>
      %cst_54 = arith.constant dense<0.000000e+00> : vector<8x32xf32>
      %136 = tpu.matmul %129, %135, %cst_54 {dimension_numbers = #tpu.dot_dimension_numbers<[1], [0], [0], [1], [0, 0, 1, 1], [], []>} : vector<8x32xbf16>, vector<32x32xbf16>, vector<8x32xf32> -> vector<8x32xf32>
      %137 = vector.extract_strided_slice %1 {offsets = [0, 64], sizes = [1, 32], strides = [1, 1]} : vector<1x96xf32> to vector<1x32xf32>
      %138 = vector.broadcast %137 : vector<1x32xf32> to vector<8x32xf32>
      %139 = arith.addf %136, %138 : vector<8x32xf32>
      %140 = arith.truncf %134 : vector<8x32xf32> to vector<8x32xbf16>
      %c0_55 = arith.constant 0 : index
      %c0_56 = arith.constant 0 : index
      %141 = vector.load %arg13[%c0_55, %c0_56] : memref<8x32xbf16, #tpu.memory_space<vmem>>, vector<8x32xbf16>
      tpu.vector_store %arg13[%c0_55, %c0_56], %140 {strides = array<i32>} : memref<8x32xbf16, #tpu.memory_space<vmem>>, vector<8x32xbf16>,
      %142 = arith.truncf %139 : vector<8x32xf32> to vector<8x32xbf16>
      %c0_57 = arith.constant 0 : index
      %c0_58 = arith.constant 0 : index
      %143 = vector.load %arg14[%c0_57, %c0_58] : memref<8x32xbf16, #tpu.memory_space<vmem>>, vector<8x32xbf16>
      tpu.vector_store %arg14[%c0_57, %c0_58], %142 {strides = array<i32>} : memref<8x32xbf16, #tpu.memory_space<vmem>>, vector<8x32xbf16>,
    } else {
    }
    %c0_4 = arith.constant 0 : index
    %c0_5 = arith.constant 0 : index
    %c0_6 = arith.constant 0 : index
    %5 = vector.load %arg2[%c0_4, %c0_5, %c0_6] : memref<1x8x32xbf16, #tpu.memory_space<vmem>>, vector<1x8x32xbf16>
    %6 = vector.shape_cast %5 : vector<1x8x32xbf16> to vector<8x32xbf16>
    %7 = arith.extf %6 : vector<8x32xbf16> to vector<8x32xf32>
    %c0_7 = arith.constant 0 : index
    %c0_8 = arith.constant 0 : index
    %c0_9 = arith.constant 0 : index
    %8 = vector.load %arg3[%c0_7, %c0_8, %c0_9] : memref<1x8x32xbf16, #tpu.memory_space<vmem>>, vector<1x8x32xbf16>
    %9 = vector.shape_cast %8 : vector<1x8x32xbf16> to vector<8x32xbf16>
    %10 = arith.extf %9 : vector<8x32xbf16> to vector<8x32xf32>
    %11 = arith.addf %7, %10 : vector<8x32xf32>
    %12 = arith.truncf %11 : vector<8x32xf32> to vector<8x32xbf16>
    %13 = vector.extract_strided_slice %0 {offsets = [0, 0], sizes = [32, 32], strides = [1, 1]} : vector<32x96xbf16> to vector<32x32xbf16>
    %cst = arith.constant dense<0.000000e+00> : vector<8x32xf32>
    %14 = tpu.matmul %12, %13, %cst {dimension_numbers = #tpu.dot_dimension_numbers<[1], [0], [0], [1], [0, 0, 1, 1], [], []>} : vector<8x32xbf16>, vector<32x32xbf16>, vector<8x32xf32> -> vector<8x32xf32>
    %15 = vector.extract_strided_slice %1 {offsets = [0, 0], sizes = [1, 32], strides = [1, 1]} : vector<1x96xf32> to vector<1x32xf32>
    %16 = vector.broadcast %15 : vector<1x32xf32> to vector<8x32xf32>
    %17 = arith.addf %14, %16 : vector<8x32xf32>
    %18 = arith.truncf %17 : vector<8x32xf32> to vector<8x32xbf16>
    %c0_10 = arith.constant 0 : index
    %c0_11 = arith.constant 0 : index
    %19 = vector.load %arg13[%c0_10, %c0_11] : memref<8x32xbf16, #tpu.memory_space<vmem>>, vector<8x32xbf16>
    %c0_12 = arith.constant 0 : index
    %c0_13 = arith.constant 0 : index
    %20 = vector.load %arg14[%c0_12, %c0_13] : memref<8x32xbf16, #tpu.memory_space<vmem>>, vector<8x32xbf16>
    %21 = vector.extract_strided_slice %18 {offsets = [0, 0], sizes = [8, 8], strides = [1, 1]} : vector<8x32xbf16> to vector<8x8xbf16>
    %22 = vector.extract_strided_slice %19 {offsets = [0, 0], sizes = [8, 8], strides = [1, 1]} : vector<8x32xbf16> to vector<8x8xbf16>
    %cst_14 = arith.constant dense<0.000000e+00> : vector<8x8xf32>
    %23 = tpu.matmul %21, %22, %cst_14 {dimension_numbers = #tpu.dot_dimension_numbers<[1], [1], [0], [0], [0, 0, 1, 0], [], []>} : vector<8x8xbf16>, vector<8x8xbf16>, vector<8x8xf32> -> vector<8x8xf32>
    %cst_15 = arith.constant dense<0xFF800000> : vector<8xf32>
    %24 = vector.multi_reduction <maximumf>, %23, %cst_15 [1] : vector<8x8xf32> to vector<8xf32>
    %25 = vector.shape_cast %24 : vector<8xf32> to vector<8x1xf32>
    %26 = vector.broadcast %25 : vector<8x1xf32> to vector<8x8xf32>
    %27 = arith.subf %23, %26 : vector<8x8xf32>
    %28 = math.exp %27 : vector<8x8xf32>
    %cst_16 = arith.constant dense<0.000000e+00> : vector<8xf32>
    %29 = vector.multi_reduction <add>, %28, %cst_16 [1] : vector<8x8xf32> to vector<8xf32>
    %30 = vector.shape_cast %29 : vector<8xf32> to vector<8x1xf32>
    %31 = tpu.reciprocal %30 {approx = true} : vector<8x1xf32> -> vector<8x1xf32>
    %32 = vector.broadcast %31 : vector<8x1xf32> to vector<8x8xf32>
    %33 = arith.mulf %28, %32 : vector<8x8xf32>
    %34 = arith.truncf %33 : vector<8x8xf32> to vector<8x8xbf16>
    %35 = vector.extract_strided_slice %20 {offsets = [0, 0], sizes = [8, 8], strides = [1, 1]} : vector<8x32xbf16> to vector<8x8xbf16>
    %cst_17 = arith.constant dense<0.000000e+00> : vector<8x8xf32>
    %36 = tpu.matmul %34, %35, %cst_17 {dimension_numbers = #tpu.dot_dimension_numbers<[1], [0], [0], [1], [0, 0, 1, 1], [], []>} : vector<8x8xbf16>, vector<8x8xbf16>, vector<8x8xf32> -> vector<8x8xf32>
    %37 = vector.extract_strided_slice %18 {offsets = [0, 8], sizes = [8, 8], strides = [1, 1]} : vector<8x32xbf16> to vector<8x8xbf16>
    %38 = vector.extract_strided_slice %19 {offsets = [0, 8], sizes = [8, 8], strides = [1, 1]} : vector<8x32xbf16> to vector<8x8xbf16>
    %cst_18 = arith.constant dense<0.000000e+00> : vector<8x8xf32>
    %39 = tpu.matmul %37, %38, %cst_18 {dimension_numbers = #tpu.dot_dimension_numbers<[1], [1], [0], [0], [0, 0, 1, 0], [], []>} : vector<8x8xbf16>, vector<8x8xbf16>, vector<8x8xf32> -> vector<8x8xf32>
    %cst_19 = arith.constant dense<0xFF800000> : vector<8xf32>
    %40 = vector.multi_reduction <maximumf>, %39, %cst_19 [1] : vector<8x8xf32> to vector<8xf32>
    %41 = vector.shape_cast %40 : vector<8xf32> to vector<8x1xf32>
    %42 = vector.broadcast %41 : vector<8x1xf32> to vector<8x8xf32>
    %43 = arith.subf %39, %42 : vector<8x8xf32>
    %44 = math.exp %43 : vector<8x8xf32>
    %cst_20 = arith.constant dense<0.000000e+00> : vector<8xf32>
    %45 = vector.multi_reduction <add>, %44, %cst_20 [1] : vector<8x8xf32> to vector<8xf32>
    %46 = vector.shape_cast %45 : vector<8xf32> to vector<8x1xf32>
    %47 = tpu.reciprocal %46 {approx = true} : vector<8x1xf32> -> vector<8x1xf32>
    %48 = vector.broadcast %47 : vector<8x1xf32> to vector<8x8xf32>
    %49 = arith.mulf %44, %48 : vector<8x8xf32>
    %50 = arith.truncf %49 : vector<8x8xf32> to vector<8x8xbf16>
    %51 = vector.extract_strided_slice %20 {offsets = [0, 8], sizes = [8, 8], strides = [1, 1]} : vector<8x32xbf16> to vector<8x8xbf16>
    %cst_21 = arith.constant dense<0.000000e+00> : vector<8x8xf32>
    %52 = tpu.matmul %50, %51, %cst_21 {dimension_numbers = #tpu.dot_dimension_numbers<[1], [0], [0], [1], [0, 0, 1, 1], [], []>} : vector<8x8xbf16>, vector<8x8xbf16>, vector<8x8xf32> -> vector<8x8xf32>
    %53 = vector.extract_strided_slice %18 {offsets = [0, 16], sizes = [8, 8], strides = [1, 1]} : vector<8x32xbf16> to vector<8x8xbf16>
    %54 = vector.extract_strided_slice %19 {offsets = [0, 16], sizes = [8, 8], strides = [1, 1]} : vector<8x32xbf16> to vector<8x8xbf16>
    %cst_22 = arith.constant dense<0.000000e+00> : vector<8x8xf32>
    %55 = tpu.matmul %53, %54, %cst_22 {dimension_numbers = #tpu.dot_dimension_numbers<[1], [1], [0], [0], [0, 0, 1, 0], [], []>} : vector<8x8xbf16>, vector<8x8xbf16>, vector<8x8xf32> -> vector<8x8xf32>
    %cst_23 = arith.constant dense<0xFF800000> : vector<8xf32>
    %56 = vector.multi_reduction <maximumf>, %55, %cst_23 [1] : vector<8x8xf32> to vector<8xf32>
    %57 = vector.shape_cast %56 : vector<8xf32> to vector<8x1xf32>
    %58 = vector.broadcast %57 : vector<8x1xf32> to vector<8x8xf32>
    %59 = arith.subf %55, %58 : vector<8x8xf32>
    %60 = math.exp %59 : vector<8x8xf32>
    %cst_24 = arith.constant dense<0.000000e+00> : vector<8xf32>
    %61 = vector.multi_reduction <add>, %60, %cst_24 [1] : vector<8x8xf32> to vector<8xf32>
    %62 = vector.shape_cast %61 : vector<8xf32> to vector<8x1xf32>
    %63 = tpu.reciprocal %62 {approx = true} : vector<8x1xf32> -> vector<8x1xf32>
    %64 = vector.broadcast %63 : vector<8x1xf32> to vector<8x8xf32>
    %65 = arith.mulf %60, %64 : vector<8x8xf32>
    %66 = arith.truncf %65 : vector<8x8xf32> to vector<8x8xbf16>
    %67 = vector.extract_strided_slice %20 {offsets = [0, 16], sizes = [8, 8], strides = [1, 1]} : vector<8x32xbf16> to vector<8x8xbf16>
    %cst_25 = arith.constant dense<0.000000e+00> : vector<8x8xf32>
    %68 = tpu.matmul %66, %67, %cst_25 {dimension_numbers = #tpu.dot_dimension_numbers<[1], [0], [0], [1], [0, 0, 1, 1], [], []>} : vector<8x8xbf16>, vector<8x8xbf16>, vector<8x8xf32> -> vector<8x8xf32>
    %69 = vector.extract_strided_slice %18 {offsets = [0, 24], sizes = [8, 8], strides = [1, 1]} : vector<8x32xbf16> to vector<8x8xbf16>
    %70 = vector.extract_strided_slice %19 {offsets = [0, 24], sizes = [8, 8], strides = [1, 1]} : vector<8x32xbf16> to vector<8x8xbf16>
    %cst_26 = arith.constant dense<0.000000e+00> : vector<8x8xf32>
    %71 = tpu.matmul %69, %70, %cst_26 {dimension_numbers = #tpu.dot_dimension_numbers<[1], [1], [0], [0], [0, 0, 1, 0], [], []>} : vector<8x8xbf16>, vector<8x8xbf16>, vector<8x8xf32> -> vector<8x8xf32>
    %cst_27 = arith.constant dense<0xFF800000> : vector<8xf32>
    %72 = vector.multi_reduction <maximumf>, %71, %cst_27 [1] : vector<8x8xf32> to vector<8xf32>
    %73 = vector.shape_cast %72 : vector<8xf32> to vector<8x1xf32>
    %74 = vector.broadcast %73 : vector<8x1xf32> to vector<8x8xf32>
    %75 = arith.subf %71, %74 : vector<8x8xf32>
    %76 = math.exp %75 : vector<8x8xf32>
    %cst_28 = arith.constant dense<0.000000e+00> : vector<8xf32>
    %77 = vector.multi_reduction <add>, %76, %cst_28 [1] : vector<8x8xf32> to vector<8xf32>
    %78 = vector.shape_cast %77 : vector<8xf32> to vector<8x1xf32>
    %79 = tpu.reciprocal %78 {approx = true} : vector<8x1xf32> -> vector<8x1xf32>
    %80 = vector.broadcast %79 : vector<8x1xf32> to vector<8x8xf32>
    %81 = arith.mulf %76, %80 : vector<8x8xf32>
    %82 = arith.truncf %81 : vector<8x8xf32> to vector<8x8xbf16>
    %83 = vector.extract_strided_slice %20 {offsets = [0, 24], sizes = [8, 8], strides = [1, 1]} : vector<8x32xbf16> to vector<8x8xbf16>
    %cst_29 = arith.constant dense<0.000000e+00> : vector<8x8xf32>
    %84 = tpu.matmul %82, %83, %cst_29 {dimension_numbers = #tpu.dot_dimension_numbers<[1], [0], [0], [1], [0, 0, 1, 1], [], []>} : vector<8x8xbf16>, vector<8x8xbf16>, vector<8x8xf32> -> vector<8x8xf32>
    %85 = tpu.concatenate %36, %52, %68, %84 in 1 : vector<8x8xf32>, vector<8x8xf32>, vector<8x8xf32>, vector<8x8xf32> -> vector<8x32xf32>
    %86 = arith.truncf %85 : vector<8x32xf32> to vector<8x32xbf16>
    %c0_30 = arith.constant 0 : index
    %c0_31 = arith.constant 0 : index
    %87 = vector.load %arg8[%c0_30, %c0_31] : memref<32x32xbf16, #tpu.memory_space<vmem>>, vector<32x32xbf16>
    %cst_32 = arith.constant dense<0.000000e+00> : vector<8x32xf32>
    %88 = tpu.matmul %86, %87, %cst_32 {dimension_numbers = #tpu.dot_dimension_numbers<[1], [0], [0], [1], [0, 0, 1, 1], [], []>} : vector<8x32xbf16>, vector<32x32xbf16>, vector<8x32xf32> -> vector<8x32xf32>
    %c0_33 = arith.constant 0 : index
    %c0_34 = arith.constant 0 : index
    %89 = vector.load %arg9[%c0_33, %c0_34] : memref<1x32xf32, #tpu.memory_space<vmem>>, vector<1x32xf32>
    %90 = vector.broadcast %89 : vector<1x32xf32> to vector<8x32xf32>
    %91 = arith.addf %88, %90 : vector<8x32xf32>
    %92 = arith.addf %7, %91 : vector<8x32xf32>
    %cst_35 = arith.constant dense<0.000000e+00> : vector<8xf32>
    %93 = vector.multi_reduction <add>, %92, %cst_35 [1] : vector<8x32xf32> to vector<8xf32>
    %94 = vector.shape_cast %93 : vector<8xf32> to vector<8x1xf32>
    %cst_36 = arith.constant 3.200000e+01 : f32
    %95 = vector.broadcast %cst_36 : f32 to vector<8x1xf32>
    %96 = arith.divf %94, %95 : vector<8x1xf32>
    %97 = vector.broadcast %96 : vector<8x1xf32> to vector<8x32xf32>
    %98 = arith.subf %92, %97 : vector<8x32xf32>
    %99 = arith.mulf %98, %98 : vector<8x32xf32>
    %cst_37 = arith.constant dense<0.000000e+00> : vector<8xf32>
    %100 = vector.multi_reduction <add>, %99, %cst_37 [1] : vector<8x32xf32> to vector<8xf32>
    %101 = vector.shape_cast %100 : vector<8xf32> to vector<8x1xf32>
    %cst_38 = arith.constant 3.200000e+01 : f32
    %102 = vector.broadcast %cst_38 : f32 to vector<8x1xf32>
    %103 = arith.divf %101, %102 : vector<8x1xf32>
    %104 = vector.broadcast %96 : vector<8x1xf32> to vector<8x32xf32>
    %105 = arith.subf %92, %104 : vector<8x32xf32>
    %cst_39 = arith.constant 9.99999974E-6 : f32
    %106 = vector.broadcast %cst_39 : f32 to vector<8x1xf32>
    %107 = arith.addf %103, %106 : vector<8x1xf32>
    %108 = math.rsqrt %107 : vector<8x1xf32>
    %109 = vector.broadcast %108 : vector<8x1xf32> to vector<8x32xf32>
    %110 = arith.mulf %105, %109 : vector<8x32xf32>
    %c0_40 = arith.constant 0 : index
    %c0_41 = arith.constant 0 : index
    %111 = vector.load %arg10[%c0_40, %c0_41] : memref<1x32xf32, #tpu.memory_space<vmem>>, vector<1x32xf32>
    %112 = vector.broadcast %111 : vector<1x32xf32> to vector<8x32xf32>
    %113 = arith.mulf %110, %112 : vector<8x32xf32>
    %c0_42 = arith.constant 0 : index
    %c0_43 = arith.constant 0 : index
    %114 = vector.load %arg11[%c0_42, %c0_43] : memref<1x32xf32, #tpu.memory_space<vmem>>, vector<1x32xf32>
    %115 = vector.broadcast %114 : vector<1x32xf32> to vector<8x32xf32>
    %116 = arith.addf %113, %115 : vector<8x32xf32>
    %117 = arith.truncf %116 : vector<8x32xf32> to vector<8x32xbf16>
    %c0_44 = arith.constant 0 : index
    %c0_45 = arith.constant 0 : index
    %c0_46 = arith.constant 0 : index
    %118 = vector.load %arg12[%c0_44, %c0_45, %c0_46] : memref<1x8x32xbf16, #tpu.memory_space<vmem>>, vector<1x8x32xbf16>
    %119 = vector.shape_cast %118 : vector<1x8x32xbf16> to vector<8x32xbf16>
    %120 = vector.shape_cast %117 : vector<8x32xbf16> to vector<1x8x32xbf16>
    tpu.vector_store %arg12[%c0_44, %c0_45, %c0_46], %120 {strides = array<i32>} : memref<1x8x32xbf16, #tpu.memory_space<vmem>>, vector<1x8x32xbf16>,
    return
  }
  func.func @transform_0(%arg0: i32, %arg1: i32) -> (i32, i32, i32) {
    %c0_i32 = arith.constant 0 : i32
    %c0_i32_0 = arith.constant 0 : i32
    return %arg0, %arg1, %c0_i32 : i32, i32, i32
  }
  func.func @transform_1(%arg0: i32, %arg1: i32) -> (i32, i32, i32) {
    %c0_i32 = arith.constant 0 : i32
    %c0_i32_0 = arith.constant 0 : i32
    %c0_i32_1 = arith.constant 0 : i32
    return %c0_i32, %arg1, %c0_i32_0 : i32, i32, i32
  }
  func.func @transform_2(%arg0: i32, %arg1: i32) -> (i32, i32, i32) {
    %c0_i32 = arith.constant 0 : i32
    %c0_i32_0 = arith.constant 0 : i32
    %c0_i32_1 = arith.constant 0 : i32
    return %arg0, %c0_i32, %c0_i32_0 : i32, i32, i32
  }
  func.func @transform_3(%arg0: i32, %arg1: i32) -> (i32, i32, i32) {
    %c0_i32 = arith.constant 0 : i32
    %c0_i32_0 = arith.constant 0 : i32
    %c0_i32_1 = arith.constant 0 : i32
    %c0_i32_2 = arith.constant 0 : i32
    return %c0_i32, %c0_i32_0, %c0_i32_1 : i32, i32, i32
  }
  func.func @transform_4(%arg0: i32, %arg1: i32) -> (i32, i32) {
    %c0_i32 = arith.constant 0 : i32
    %c0_i32_0 = arith.constant 0 : i32
    %c0_i32_1 = arith.constant 0 : i32
    return %c0_i32, %c0_i32_0 : i32, i32
  }
  func.func @transform_5(%arg0: i32, %arg1: i32) -> (i32, i32) {
    %c0_i32 = arith.constant 0 : i32
    %c0_i32_0 = arith.constant 0 : i32
    %c0_i32_1 = arith.constant 0 : i32
    return %c0_i32, %c0_i32_0 : i32, i32
  }
  func.func @transform_6(%arg0: i32, %arg1: i32) -> (i32, i32) {
    %c0_i32 = arith.constant 0 : i32
    %c0_i32_0 = arith.constant 0 : i32
    %c0_i32_1 = arith.constant 0 : i32
    return %c0_i32, %c0_i32_0 : i32, i32
  }
  func.func @transform_7(%arg0: i32, %arg1: i32) -> (i32, i32) {
    %c0_i32 = arith.constant 0 : i32
    %c0_i32_0 = arith.constant 0 : i32
    %c0_i32_1 = arith.constant 0 : i32
    return %c0_i32, %c0_i32_0 : i32, i32
  }
  func.func @transform_8(%arg0: i32, %arg1: i32) -> (i32, i32) {
    %c0_i32 = arith.constant 0 : i32
    %c0_i32_0 = arith.constant 0 : i32
    %c0_i32_1 = arith.constant 0 : i32
    return %c0_i32, %c0_i32_0 : i32, i32
  }
  func.func @transform_9(%arg0: i32, %arg1: i32) -> (i32, i32) {
    %c0_i32 = arith.constant 0 : i32
    %c0_i32_0 = arith.constant 0 : i32
    %c0_i32_1 = arith.constant 0 : i32
    return %c0_i32, %c0_i32_0 : i32, i32
  }
  func.func @transform_10(%arg0: i32, %arg1: i32) -> (i32, i32, i32) {
    %c0_i32 = arith.constant 0 : i32
    %c0_i32_0 = arith.constant 0 : i32
    return %arg0, %arg1, %c0_i32 : i32, i32, i32
  }
}

module attributes {stable_mosaic.version = 11 : i64} {
  func.func @_ffn_block_kernel(%arg0: i32, %arg1: memref<32x32xbf16, #tpu.memory_space<vmem>>, %arg2: memref<32x64xbf16, #tpu.memory_space<vmem>>, %arg3: memref<1x64xf32, #tpu.memory_space<vmem>>, %arg4: memref<64x32xbf16, #tpu.memory_space<vmem>>, %arg5: memref<1x32xf32, #tpu.memory_space<vmem>>, %arg6: memref<1x32xf32, #tpu.memory_space<vmem>>, %arg7: memref<1x32xf32, #tpu.memory_space<vmem>>, %arg8: memref<32x32xbf16, #tpu.memory_space<vmem>>) attributes {dimension_semantics = [#tpu.dimension_semantics<parallel>], iteration_bounds = array<i64: 1>, scalar_prefetch = 0 : i64, scratch_operands = 0 : i64, tpu.core_type = #tpu.core_type<tc>, window_params = [{transform_indices = @transform_0, window_bounds = array<i64: 32, 32>}, {pipeline_mode = #tpu.pipeline_mode<synchronous>, transform_indices = @transform_1, window_bounds = array<i64: 32, 64>}, {pipeline_mode = #tpu.pipeline_mode<synchronous>, transform_indices = @transform_2, window_bounds = array<i64: 1, 64>}, {pipeline_mode = #tpu.pipeline_mode<synchronous>, transform_indices = @transform_3, window_bounds = array<i64: 64, 32>}, {pipeline_mode = #tpu.pipeline_mode<synchronous>, transform_indices = @transform_4, window_bounds = array<i64: 1, 32>}, {pipeline_mode = #tpu.pipeline_mode<synchronous>, transform_indices = @transform_5, window_bounds = array<i64: 1, 32>}, {pipeline_mode = #tpu.pipeline_mode<synchronous>, transform_indices = @transform_6, window_bounds = array<i64: 1, 32>}, {transform_indices = @transform_7, window_bounds = array<i64: 32, 32>}]} {
    %c0 = arith.constant 0 : index
    %c0_0 = arith.constant 0 : index
    %0 = vector.load %arg1[%c0, %c0_0] : memref<32x32xbf16, #tpu.memory_space<vmem>>, vector<32x32xbf16>
    %c0_1 = arith.constant 0 : index
    %c0_2 = arith.constant 0 : index
    %1 = vector.load %arg2[%c0_1, %c0_2] : memref<32x64xbf16, #tpu.memory_space<vmem>>, vector<32x64xbf16>
    %cst = arith.constant dense<0.000000e+00> : vector<32x64xf32>
    %2 = tpu.matmul %0, %1, %cst {dimension_numbers = #tpu.dot_dimension_numbers<[1], [0], [0], [1], [0, 0, 1, 1], [], []>} : vector<32x32xbf16>, vector<32x64xbf16>, vector<32x64xf32> -> vector<32x64xf32>
    %c0_3 = arith.constant 0 : index
    %c0_4 = arith.constant 0 : index
    %3 = vector.load %arg3[%c0_3, %c0_4] : memref<1x64xf32, #tpu.memory_space<vmem>>, vector<1x64xf32>
    %4 = vector.broadcast %3 : vector<1x64xf32> to vector<32x64xf32>
    %5 = arith.addf %2, %4 : vector<32x64xf32>
    %cst_5 = arith.constant 0.000000e+00 : f32
    %6 = vector.broadcast %cst_5 : f32 to vector<32x64xf32>
    %7 = arith.maximumf %5, %6 : vector<32x64xf32>
    %8 = arith.truncf %7 : vector<32x64xf32> to vector<32x64xbf16>
    %c0_6 = arith.constant 0 : index
    %c0_7 = arith.constant 0 : index
    %9 = vector.load %arg4[%c0_6, %c0_7] : memref<64x32xbf16, #tpu.memory_space<vmem>>, vector<64x32xbf16>
    %cst_8 = arith.constant dense<0.000000e+00> : vector<32x32xf32>
    %10 = tpu.matmul %8, %9, %cst_8 {dimension_numbers = #tpu.dot_dimension_numbers<[1], [0], [0], [1], [0, 0, 1, 1], [], []>} : vector<32x64xbf16>, vector<64x32xbf16>, vector<32x32xf32> -> vector<32x32xf32>
    %c0_9 = arith.constant 0 : index
    %c0_10 = arith.constant 0 : index
    %11 = vector.load %arg5[%c0_9, %c0_10] : memref<1x32xf32, #tpu.memory_space<vmem>>, vector<1x32xf32>
    %12 = vector.broadcast %11 : vector<1x32xf32> to vector<32x32xf32>
    %13 = arith.addf %10, %12 : vector<32x32xf32>
    %14 = arith.extf %0 : vector<32x32xbf16> to vector<32x32xf32>
    %15 = arith.addf %14, %13 : vector<32x32xf32>
    %cst_11 = arith.constant dense<0.000000e+00> : vector<32xf32>
    %16 = vector.multi_reduction <add>, %15, %cst_11 [1] : vector<32x32xf32> to vector<32xf32>
    %17 = vector.shape_cast %16 : vector<32xf32> to vector<32x1xf32>
    %cst_12 = arith.constant 3.200000e+01 : f32
    %18 = vector.broadcast %cst_12 : f32 to vector<32x1xf32>
    %19 = arith.divf %17, %18 : vector<32x1xf32>
    %20 = vector.broadcast %19 : vector<32x1xf32> to vector<32x32xf32>
    %21 = arith.subf %15, %20 : vector<32x32xf32>
    %22 = arith.mulf %21, %21 : vector<32x32xf32>
    %cst_13 = arith.constant dense<0.000000e+00> : vector<32xf32>
    %23 = vector.multi_reduction <add>, %22, %cst_13 [1] : vector<32x32xf32> to vector<32xf32>
    %24 = vector.shape_cast %23 : vector<32xf32> to vector<32x1xf32>
    %cst_14 = arith.constant 3.200000e+01 : f32
    %25 = vector.broadcast %cst_14 : f32 to vector<32x1xf32>
    %26 = arith.divf %24, %25 : vector<32x1xf32>
    %27 = vector.broadcast %19 : vector<32x1xf32> to vector<32x32xf32>
    %28 = arith.subf %15, %27 : vector<32x32xf32>
    %cst_15 = arith.constant 9.99999974E-6 : f32
    %29 = vector.broadcast %cst_15 : f32 to vector<32x1xf32>
    %30 = arith.addf %26, %29 : vector<32x1xf32>
    %31 = math.rsqrt %30 : vector<32x1xf32>
    %32 = vector.broadcast %31 : vector<32x1xf32> to vector<32x32xf32>
    %33 = arith.mulf %28, %32 : vector<32x32xf32>
    %c0_16 = arith.constant 0 : index
    %c0_17 = arith.constant 0 : index
    %34 = vector.load %arg6[%c0_16, %c0_17] : memref<1x32xf32, #tpu.memory_space<vmem>>, vector<1x32xf32>
    %35 = vector.broadcast %34 : vector<1x32xf32> to vector<32x32xf32>
    %36 = arith.mulf %33, %35 : vector<32x32xf32>
    %c0_18 = arith.constant 0 : index
    %c0_19 = arith.constant 0 : index
    %37 = vector.load %arg7[%c0_18, %c0_19] : memref<1x32xf32, #tpu.memory_space<vmem>>, vector<1x32xf32>
    %38 = vector.broadcast %37 : vector<1x32xf32> to vector<32x32xf32>
    %39 = arith.addf %36, %38 : vector<32x32xf32>
    %40 = arith.truncf %39 : vector<32x32xf32> to vector<32x32xbf16>
    %c0_20 = arith.constant 0 : index
    %c0_21 = arith.constant 0 : index
    %41 = vector.load %arg8[%c0_20, %c0_21] : memref<32x32xbf16, #tpu.memory_space<vmem>>, vector<32x32xbf16>
    tpu.vector_store %arg8[%c0_20, %c0_21], %40 {strides = array<i32>} : memref<32x32xbf16, #tpu.memory_space<vmem>>, vector<32x32xbf16>,
    return
  }
  func.func @transform_0(%arg0: i32) -> (i32, i32) {
    %c0_i32 = arith.constant 0 : i32
    %c0_i32_0 = arith.constant 0 : i32
    return %arg0, %c0_i32 : i32, i32
  }
  func.func @transform_1(%arg0: i32) -> (i32, i32) {
    %c0_i32 = arith.constant 0 : i32
    %c0_i32_0 = arith.constant 0 : i32
    %c0_i32_1 = arith.constant 0 : i32
    return %c0_i32, %c0_i32_0 : i32, i32
  }
  func.func @transform_2(%arg0: i32) -> (i32, i32) {
    %c0_i32 = arith.constant 0 : i32
    %c0_i32_0 = arith.constant 0 : i32
    %c0_i32_1 = arith.constant 0 : i32
    return %c0_i32, %c0_i32_0 : i32, i32
  }
  func.func @transform_3(%arg0: i32) -> (i32, i32) {
    %c0_i32 = arith.constant 0 : i32
    %c0_i32_0 = arith.constant 0 : i32
    %c0_i32_1 = arith.constant 0 : i32
    return %c0_i32, %c0_i32_0 : i32, i32
  }
  func.func @transform_4(%arg0: i32) -> (i32, i32) {
    %c0_i32 = arith.constant 0 : i32
    %c0_i32_0 = arith.constant 0 : i32
    %c0_i32_1 = arith.constant 0 : i32
    return %c0_i32, %c0_i32_0 : i32, i32
  }
  func.func @transform_5(%arg0: i32) -> (i32, i32) {
    %c0_i32 = arith.constant 0 : i32
    %c0_i32_0 = arith.constant 0 : i32
    %c0_i32_1 = arith.constant 0 : i32
    return %c0_i32, %c0_i32_0 : i32, i32
  }
  func.func @transform_6(%arg0: i32) -> (i32, i32) {
    %c0_i32 = arith.constant 0 : i32
    %c0_i32_0 = arith.constant 0 : i32
    %c0_i32_1 = arith.constant 0 : i32
    return %c0_i32, %c0_i32_0 : i32, i32
  }
  func.func @transform_7(%arg0: i32) -> (i32, i32) {
    %c0_i32 = arith.constant 0 : i32
    %c0_i32_0 = arith.constant 0 : i32
    return %arg0, %c0_i32 : i32, i32
  }
}

module attributes {stable_mosaic.version = 11 : i64} {
  func.func @_mha_block_kernel(%arg0: i32, %arg1: i32, %arg2: memref<1x8x32xbf16, #tpu.memory_space<vmem>>, %arg3: memref<1x8x32xbf16, #tpu.memory_space<vmem>>, %arg4: memref<1x16x32xbf16, #tpu.memory_space<vmem>>, %arg5: memref<1x16x32xbf16, #tpu.memory_space<vmem>>, %arg6: memref<1x1x16xf32, #tpu.memory_space<vmem>>, %arg7: memref<32x96xbf16, #tpu.memory_space<vmem>>, %arg8: memref<1x96xf32, #tpu.memory_space<vmem>>, %arg9: memref<32x32xbf16, #tpu.memory_space<vmem>>, %arg10: memref<1x32xf32, #tpu.memory_space<vmem>>, %arg11: memref<1x32xf32, #tpu.memory_space<vmem>>, %arg12: memref<1x32xf32, #tpu.memory_space<vmem>>, %arg13: memref<1x8x32xbf16, #tpu.memory_space<vmem>>, %arg14: memref<16x32xbf16, #tpu.memory_space<vmem>>, %arg15: memref<16x32xbf16, #tpu.memory_space<vmem>>) attributes {dimension_semantics = [#tpu.dimension_semantics<parallel>, #tpu.dimension_semantics<arbitrary>], iteration_bounds = array<i64: 2, 1>, scalar_prefetch = 0 : i64, scratch_operands = 2 : i64, tpu.core_type = #tpu.core_type<tc>, window_params = [{transform_indices = @transform_0, window_bounds = array<i64: 1, 8, 32>}, {transform_indices = @transform_1, window_bounds = array<i64: 1, 8, 32>}, {transform_indices = @transform_2, window_bounds = array<i64: 1, 16, 32>}, {transform_indices = @transform_3, window_bounds = array<i64: 1, 16, 32>}, {transform_indices = @transform_4, window_bounds = array<i64: 1, 1, 16>}, {pipeline_mode = #tpu.pipeline_mode<synchronous>, transform_indices = @transform_5, window_bounds = array<i64: 32, 96>}, {pipeline_mode = #tpu.pipeline_mode<synchronous>, transform_indices = @transform_6, window_bounds = array<i64: 1, 96>}, {pipeline_mode = #tpu.pipeline_mode<synchronous>, transform_indices = @transform_7, window_bounds = array<i64: 32, 32>}, {pipeline_mode = #tpu.pipeline_mode<synchronous>, transform_indices = @transform_8, window_bounds = array<i64: 1, 32>}, {pipeline_mode = #tpu.pipeline_mode<synchronous>, transform_indices = @transform_9, window_bounds = array<i64: 1, 32>}, {pipeline_mode = #tpu.pipeline_mode<synchronous>, transform_indices = @transform_10, window_bounds = array<i64: 1, 32>}, {transform_indices = @transform_11, window_bounds = array<i64: 1, 8, 32>}]} {
    %c0 = arith.constant 0 : index
    %c0_0 = arith.constant 0 : index
    %0 = vector.load %arg7[%c0, %c0_0] : memref<32x96xbf16, #tpu.memory_space<vmem>>, vector<32x96xbf16>
    %c0_1 = arith.constant 0 : index
    %c0_2 = arith.constant 0 : index
    %1 = vector.load %arg8[%c0_1, %c0_2] : memref<1x96xf32, #tpu.memory_space<vmem>>, vector<1x96xf32>
    %c0_i32 = arith.constant 0 : i32
    %2 = arith.cmpi eq, %arg1, %c0_i32 : i32
    %3 = arith.extui %2 : i1 to i32
    %c0_i32_3 = arith.constant 0 : i32
    %4 = arith.cmpi ne, %3, %c0_i32_3 : i32
    scf.if %4 {
      %c0_50 = arith.constant 0 : index
      %c0_51 = arith.constant 0 : index
      %c0_52 = arith.constant 0 : index
      %129 = vector.load %arg4[%c0_50, %c0_51, %c0_52] : memref<1x16x32xbf16, #tpu.memory_space<vmem>>, vector<1x16x32xbf16>
      %130 = vector.shape_cast %129 : vector<1x16x32xbf16> to vector<16x32xbf16>
      %131 = arith.extf %130 : vector<16x32xbf16> to vector<16x32xf32>
      %c0_53 = arith.constant 0 : index
      %c0_54 = arith.constant 0 : index
      %c0_55 = arith.constant 0 : index
      %132 = vector.load %arg5[%c0_53, %c0_54, %c0_55] : memref<1x16x32xbf16, #tpu.memory_space<vmem>>, vector<1x16x32xbf16>
      %133 = vector.shape_cast %132 : vector<1x16x32xbf16> to vector<16x32xbf16>
      %134 = arith.extf %133 : vector<16x32xbf16> to vector<16x32xf32>
      %135 = arith.addf %131, %134 : vector<16x32xf32>
      %136 = arith.truncf %135 : vector<16x32xf32> to vector<16x32xbf16>
      %137 = arith.truncf %131 : vector<16x32xf32> to vector<16x32xbf16>
      %138 = vector.extract_strided_slice %0 {offsets = [0, 32], sizes = [32, 32], strides = [1, 1]} : vector<32x96xbf16> to vector<32x32xbf16>
      %cst_56 = arith.constant dense<0.000000e+00> : vector<16x32xf32>
      %139 = tpu.matmul %136, %138, %cst_56 {dimension_numbers = #tpu.dot_dimension_numbers<[1], [0], [0], [1], [0, 0, 1, 1], [], []>} : vector<16x32xbf16>, vector<32x32xbf16>, vector<16x32xf32> -> vector<16x32xf32>
      %140 = vector.extract_strided_slice %1 {offsets = [0, 32], sizes = [1, 32], strides = [1, 1]} : vector<1x96xf32> to vector<1x32xf32>
      %141 = vector.broadcast %140 : vector<1x32xf32> to vector<16x32xf32>
      %142 = arith.addf %139, %141 : vector<16x32xf32>
      %143 = vector.extract_strided_slice %0 {offsets = [0, 64], sizes = [32, 32], strides = [1, 1]} : vector<32x96xbf16> to vector<32x32xbf16>
      %cst_57 = arith.constant dense<0.000000e+00> : vector<16x32xf32>
      %144 = tpu.matmul %137, %143, %cst_57 {dimension_numbers = #tpu.dot_dimension_numbers<[1], [0], [0], [1], [0, 0, 1, 1], [], []>} : vector<16x32xbf16>, vector<32x32xbf16>, vector<16x32xf32> -> vector<16x32xf32>
      %145 = vector.extract_strided_slice %1 {offsets = [0, 64], sizes = [1, 32], strides = [1, 1]} : vector<1x96xf32> to vector<1x32xf32>
      %146 = vector.broadcast %145 : vector<1x32xf32> to vector<16x32xf32>
      %147 = arith.addf %144, %146 : vector<16x32xf32>
      %148 = arith.truncf %142 : vector<16x32xf32> to vector<16x32xbf16>
      %c0_58 = arith.constant 0 : index
      %c0_59 = arith.constant 0 : index
      %149 = vector.load %arg14[%c0_58, %c0_59] : memref<16x32xbf16, #tpu.memory_space<vmem>>, vector<16x32xbf16>
      tpu.vector_store %arg14[%c0_58, %c0_59], %148 {strides = array<i32>} : memref<16x32xbf16, #tpu.memory_space<vmem>>, vector<16x32xbf16>,
      %150 = arith.truncf %147 : vector<16x32xf32> to vector<16x32xbf16>
      %c0_60 = arith.constant 0 : index
      %c0_61 = arith.constant 0 : index
      %151 = vector.load %arg15[%c0_60, %c0_61] : memref<16x32xbf16, #tpu.memory_space<vmem>>, vector<16x32xbf16>
      tpu.vector_store %arg15[%c0_60, %c0_61], %150 {strides = array<i32>} : memref<16x32xbf16, #tpu.memory_space<vmem>>, vector<16x32xbf16>,
    } else {
    }
    %c0_4 = arith.constant 0 : index
    %c0_5 = arith.constant 0 : index
    %c0_6 = arith.constant 0 : index
    %5 = vector.load %arg2[%c0_4, %c0_5, %c0_6] : memref<1x8x32xbf16, #tpu.memory_space<vmem>>, vector<1x8x32xbf16>
    %6 = vector.shape_cast %5 : vector<1x8x32xbf16> to vector<8x32xbf16>
    %7 = arith.extf %6 : vector<8x32xbf16> to vector<8x32xf32>
    %c0_7 = arith.constant 0 : index
    %c0_8 = arith.constant 0 : index
    %c0_9 = arith.constant 0 : index
    %8 = vector.load %arg3[%c0_7, %c0_8, %c0_9] : memref<1x8x32xbf16, #tpu.memory_space<vmem>>, vector<1x8x32xbf16>
    %9 = vector.shape_cast %8 : vector<1x8x32xbf16> to vector<8x32xbf16>
    %10 = arith.extf %9 : vector<8x32xbf16> to vector<8x32xf32>
    %11 = arith.addf %7, %10 : vector<8x32xf32>
    %12 = arith.truncf %11 : vector<8x32xf32> to vector<8x32xbf16>
    %13 = vector.extract_strided_slice %0 {offsets = [0, 0], sizes = [32, 32], strides = [1, 1]} : vector<32x96xbf16> to vector<32x32xbf16>
    %cst = arith.constant dense<0.000000e+00> : vector<8x32xf32>
    %14 = tpu.matmul %12, %13, %cst {dimension_numbers = #tpu.dot_dimension_numbers<[1], [0], [0], [1], [0, 0, 1, 1], [], []>} : vector<8x32xbf16>, vector<32x32xbf16>, vector<8x32xf32> -> vector<8x32xf32>
    %15 = vector.extract_strided_slice %1 {offsets = [0, 0], sizes = [1, 32], strides = [1, 1]} : vector<1x96xf32> to vector<1x32xf32>
    %16 = vector.broadcast %15 : vector<1x32xf32> to vector<8x32xf32>
    %17 = arith.addf %14, %16 : vector<8x32xf32>
    %18 = arith.truncf %17 : vector<8x32xf32> to vector<8x32xbf16>
    %c0_10 = arith.constant 0 : index
    %c0_11 = arith.constant 0 : index
    %19 = vector.load %arg14[%c0_10, %c0_11] : memref<16x32xbf16, #tpu.memory_space<vmem>>, vector<16x32xbf16>
    %c0_12 = arith.constant 0 : index
    %c0_13 = arith.constant 0 : index
    %20 = vector.load %arg15[%c0_12, %c0_13] : memref<16x32xbf16, #tpu.memory_space<vmem>>, vector<16x32xbf16>
    %c0_14 = arith.constant 0 : index
    %c0_15 = arith.constant 0 : index
    %c0_16 = arith.constant 0 : index
    %21 = vector.load %arg6[%c0_14, %c0_15, %c0_16] : memref<1x1x16xf32, #tpu.memory_space<vmem>>, vector<1x1x16xf32>
    %22 = vector.shape_cast %21 : vector<1x1x16xf32> to vector<1x16xf32>
    %23 = vector.shape_cast %22 : vector<1x16xf32> to vector<1x16xf32>
    %24 = vector.broadcast %23 : vector<1x16xf32> to vector<8x16xf32>
    %25 = vector.extract_strided_slice %18 {offsets = [0, 0], sizes = [8, 8], strides = [1, 1]} : vector<8x32xbf16> to vector<8x8xbf16>
    %26 = vector.extract_strided_slice %19 {offsets = [0, 0], sizes = [16, 8], strides = [1, 1]} : vector<16x32xbf16> to vector<16x8xbf16>
    %cst_17 = arith.constant dense<0.000000e+00> : vector<8x16xf32>
    %27 = tpu.matmul %25, %26, %cst_17 {dimension_numbers = #tpu.dot_dimension_numbers<[1], [1], [0], [0], [0, 0, 1, 0], [], []>} : vector<8x8xbf16>, vector<16x8xbf16>, vector<8x16xf32> -> vector<8x16xf32>
    %28 = arith.addf %27, %24 : vector<8x16xf32>
    %cst_18 = arith.constant dense<0xFF800000> : vector<8xf32>
    %29 = vector.multi_reduction <maximumf>, %28, %cst_18 [1] : vector<8x16xf32> to vector<8xf32>
    %30 = vector.shape_cast %29 : vector<8xf32> to vector<8x1xf32>
    %31 = vector.broadcast %30 : vector<8x1xf32> to vector<8x16xf32>
    %32 = arith.subf %28, %31 : vector<8x16xf32>
    %33 = math.exp %32 : vector<8x16xf32>
    %cst_19 = arith.constant dense<0.000000e+00> : vector<8xf32>
    %34 = vector.multi_reduction <add>, %33, %cst_19 [1] : vector<8x16xf32> to vector<8xf32>
    %35 = vector.shape_cast %34 : vector<8xf32> to vector<8x1xf32>
    %36 = tpu.reciprocal %35 {approx = true} : vector<8x1xf32> -> vector<8x1xf32>
    %37 = vector.broadcast %36 : vector<8x1xf32> to vector<8x16xf32>
    %38 = arith.mulf %33, %37 : vector<8x16xf32>
    %39 = arith.truncf %38 : vector<8x16xf32> to vector<8x16xbf16>
    %40 = vector.extract_strided_slice %20 {offsets = [0, 0], sizes = [16, 8], strides = [1, 1]} : vector<16x32xbf16> to vector<16x8xbf16>
    %cst_20 = arith.constant dense<0.000000e+00> : vector<8x8xf32>
    %41 = tpu.matmul %39, %40, %cst_20 {dimension_numbers = #tpu.dot_dimension_numbers<[1], [0], [0], [1], [0, 0, 1, 1], [], []>} : vector<8x16xbf16>, vector<16x8xbf16>, vector<8x8xf32> -> vector<8x8xf32>
    %42 = vector.extract_strided_slice %18 {offsets = [0, 8], sizes = [8, 8], strides = [1, 1]} : vector<8x32xbf16> to vector<8x8xbf16>
    %43 = vector.extract_strided_slice %19 {offsets = [0, 8], sizes = [16, 8], strides = [1, 1]} : vector<16x32xbf16> to vector<16x8xbf16>
    %cst_21 = arith.constant dense<0.000000e+00> : vector<8x16xf32>
    %44 = tpu.matmul %42, %43, %cst_21 {dimension_numbers = #tpu.dot_dimension_numbers<[1], [1], [0], [0], [0, 0, 1, 0], [], []>} : vector<8x8xbf16>, vector<16x8xbf16>, vector<8x16xf32> -> vector<8x16xf32>
    %45 = arith.addf %44, %24 : vector<8x16xf32>
    %cst_22 = arith.constant dense<0xFF800000> : vector<8xf32>
    %46 = vector.multi_reduction <maximumf>, %45, %cst_22 [1] : vector<8x16xf32> to vector<8xf32>
    %47 = vector.shape_cast %46 : vector<8xf32> to vector<8x1xf32>
    %48 = vector.broadcast %47 : vector<8x1xf32> to vector<8x16xf32>
    %49 = arith.subf %45, %48 : vector<8x16xf32>
    %50 = math.exp %49 : vector<8x16xf32>
    %cst_23 = arith.constant dense<0.000000e+00> : vector<8xf32>
    %51 = vector.multi_reduction <add>, %50, %cst_23 [1] : vector<8x16xf32> to vector<8xf32>
    %52 = vector.shape_cast %51 : vector<8xf32> to vector<8x1xf32>
    %53 = tpu.reciprocal %52 {approx = true} : vector<8x1xf32> -> vector<8x1xf32>
    %54 = vector.broadcast %53 : vector<8x1xf32> to vector<8x16xf32>
    %55 = arith.mulf %50, %54 : vector<8x16xf32>
    %56 = arith.truncf %55 : vector<8x16xf32> to vector<8x16xbf16>
    %57 = vector.extract_strided_slice %20 {offsets = [0, 8], sizes = [16, 8], strides = [1, 1]} : vector<16x32xbf16> to vector<16x8xbf16>
    %cst_24 = arith.constant dense<0.000000e+00> : vector<8x8xf32>
    %58 = tpu.matmul %56, %57, %cst_24 {dimension_numbers = #tpu.dot_dimension_numbers<[1], [0], [0], [1], [0, 0, 1, 1], [], []>} : vector<8x16xbf16>, vector<16x8xbf16>, vector<8x8xf32> -> vector<8x8xf32>
    %59 = vector.extract_strided_slice %18 {offsets = [0, 16], sizes = [8, 8], strides = [1, 1]} : vector<8x32xbf16> to vector<8x8xbf16>
    %60 = vector.extract_strided_slice %19 {offsets = [0, 16], sizes = [16, 8], strides = [1, 1]} : vector<16x32xbf16> to vector<16x8xbf16>
    %cst_25 = arith.constant dense<0.000000e+00> : vector<8x16xf32>
    %61 = tpu.matmul %59, %60, %cst_25 {dimension_numbers = #tpu.dot_dimension_numbers<[1], [1], [0], [0], [0, 0, 1, 0], [], []>} : vector<8x8xbf16>, vector<16x8xbf16>, vector<8x16xf32> -> vector<8x16xf32>
    %62 = arith.addf %61, %24 : vector<8x16xf32>
    %cst_26 = arith.constant dense<0xFF800000> : vector<8xf32>
    %63 = vector.multi_reduction <maximumf>, %62, %cst_26 [1] : vector<8x16xf32> to vector<8xf32>
    %64 = vector.shape_cast %63 : vector<8xf32> to vector<8x1xf32>
    %65 = vector.broadcast %64 : vector<8x1xf32> to vector<8x16xf32>
    %66 = arith.subf %62, %65 : vector<8x16xf32>
    %67 = math.exp %66 : vector<8x16xf32>
    %cst_27 = arith.constant dense<0.000000e+00> : vector<8xf32>
    %68 = vector.multi_reduction <add>, %67, %cst_27 [1] : vector<8x16xf32> to vector<8xf32>
    %69 = vector.shape_cast %68 : vector<8xf32> to vector<8x1xf32>
    %70 = tpu.reciprocal %69 {approx = true} : vector<8x1xf32> -> vector<8x1xf32>
    %71 = vector.broadcast %70 : vector<8x1xf32> to vector<8x16xf32>
    %72 = arith.mulf %67, %71 : vector<8x16xf32>
    %73 = arith.truncf %72 : vector<8x16xf32> to vector<8x16xbf16>
    %74 = vector.extract_strided_slice %20 {offsets = [0, 16], sizes = [16, 8], strides = [1, 1]} : vector<16x32xbf16> to vector<16x8xbf16>
    %cst_28 = arith.constant dense<0.000000e+00> : vector<8x8xf32>
    %75 = tpu.matmul %73, %74, %cst_28 {dimension_numbers = #tpu.dot_dimension_numbers<[1], [0], [0], [1], [0, 0, 1, 1], [], []>} : vector<8x16xbf16>, vector<16x8xbf16>, vector<8x8xf32> -> vector<8x8xf32>
    %76 = vector.extract_strided_slice %18 {offsets = [0, 24], sizes = [8, 8], strides = [1, 1]} : vector<8x32xbf16> to vector<8x8xbf16>
    %77 = vector.extract_strided_slice %19 {offsets = [0, 24], sizes = [16, 8], strides = [1, 1]} : vector<16x32xbf16> to vector<16x8xbf16>
    %cst_29 = arith.constant dense<0.000000e+00> : vector<8x16xf32>
    %78 = tpu.matmul %76, %77, %cst_29 {dimension_numbers = #tpu.dot_dimension_numbers<[1], [1], [0], [0], [0, 0, 1, 0], [], []>} : vector<8x8xbf16>, vector<16x8xbf16>, vector<8x16xf32> -> vector<8x16xf32>
    %79 = arith.addf %78, %24 : vector<8x16xf32>
    %cst_30 = arith.constant dense<0xFF800000> : vector<8xf32>
    %80 = vector.multi_reduction <maximumf>, %79, %cst_30 [1] : vector<8x16xf32> to vector<8xf32>
    %81 = vector.shape_cast %80 : vector<8xf32> to vector<8x1xf32>
    %82 = vector.broadcast %81 : vector<8x1xf32> to vector<8x16xf32>
    %83 = arith.subf %79, %82 : vector<8x16xf32>
    %84 = math.exp %83 : vector<8x16xf32>
    %cst_31 = arith.constant dense<0.000000e+00> : vector<8xf32>
    %85 = vector.multi_reduction <add>, %84, %cst_31 [1] : vector<8x16xf32> to vector<8xf32>
    %86 = vector.shape_cast %85 : vector<8xf32> to vector<8x1xf32>
    %87 = tpu.reciprocal %86 {approx = true} : vector<8x1xf32> -> vector<8x1xf32>
    %88 = vector.broadcast %87 : vector<8x1xf32> to vector<8x16xf32>
    %89 = arith.mulf %84, %88 : vector<8x16xf32>
    %90 = arith.truncf %89 : vector<8x16xf32> to vector<8x16xbf16>
    %91 = vector.extract_strided_slice %20 {offsets = [0, 24], sizes = [16, 8], strides = [1, 1]} : vector<16x32xbf16> to vector<16x8xbf16>
    %cst_32 = arith.constant dense<0.000000e+00> : vector<8x8xf32>
    %92 = tpu.matmul %90, %91, %cst_32 {dimension_numbers = #tpu.dot_dimension_numbers<[1], [0], [0], [1], [0, 0, 1, 1], [], []>} : vector<8x16xbf16>, vector<16x8xbf16>, vector<8x8xf32> -> vector<8x8xf32>
    %93 = tpu.concatenate %41, %58, %75, %92 in 1 : vector<8x8xf32>, vector<8x8xf32>, vector<8x8xf32>, vector<8x8xf32> -> vector<8x32xf32>
    %94 = arith.truncf %93 : vector<8x32xf32> to vector<8x32xbf16>
    %c0_33 = arith.constant 0 : index
    %c0_34 = arith.constant 0 : index
    %95 = vector.load %arg9[%c0_33, %c0_34] : memref<32x32xbf16, #tpu.memory_space<vmem>>, vector<32x32xbf16>
    %cst_35 = arith.constant dense<0.000000e+00> : vector<8x32xf32>
    %96 = tpu.matmul %94, %95, %cst_35 {dimension_numbers = #tpu.dot_dimension_numbers<[1], [0], [0], [1], [0, 0, 1, 1], [], []>} : vector<8x32xbf16>, vector<32x32xbf16>, vector<8x32xf32> -> vector<8x32xf32>
    %c0_36 = arith.constant 0 : index
    %c0_37 = arith.constant 0 : index
    %97 = vector.load %arg10[%c0_36, %c0_37] : memref<1x32xf32, #tpu.memory_space<vmem>>, vector<1x32xf32>
    %98 = vector.broadcast %97 : vector<1x32xf32> to vector<8x32xf32>
    %99 = arith.addf %96, %98 : vector<8x32xf32>
    %100 = arith.addf %7, %99 : vector<8x32xf32>
    %cst_38 = arith.constant dense<0.000000e+00> : vector<8xf32>
    %101 = vector.multi_reduction <add>, %100, %cst_38 [1] : vector<8x32xf32> to vector<8xf32>
    %102 = vector.shape_cast %101 : vector<8xf32> to vector<8x1xf32>
    %cst_39 = arith.constant 3.200000e+01 : f32
    %103 = vector.broadcast %cst_39 : f32 to vector<8x1xf32>
    %104 = arith.divf %102, %103 : vector<8x1xf32>
    %105 = vector.broadcast %104 : vector<8x1xf32> to vector<8x32xf32>
    %106 = arith.subf %100, %105 : vector<8x32xf32>
    %107 = arith.mulf %106, %106 : vector<8x32xf32>
    %cst_40 = arith.constant dense<0.000000e+00> : vector<8xf32>
    %108 = vector.multi_reduction <add>, %107, %cst_40 [1] : vector<8x32xf32> to vector<8xf32>
    %109 = vector.shape_cast %108 : vector<8xf32> to vector<8x1xf32>
    %cst_41 = arith.constant 3.200000e+01 : f32
    %110 = vector.broadcast %cst_41 : f32 to vector<8x1xf32>
    %111 = arith.divf %109, %110 : vector<8x1xf32>
    %112 = vector.broadcast %104 : vector<8x1xf32> to vector<8x32xf32>
    %113 = arith.subf %100, %112 : vector<8x32xf32>
    %cst_42 = arith.constant 9.99999974E-6 : f32
    %114 = vector.broadcast %cst_42 : f32 to vector<8x1xf32>
    %115 = arith.addf %111, %114 : vector<8x1xf32>
    %116 = math.rsqrt %115 : vector<8x1xf32>
    %117 = vector.broadcast %116 : vector<8x1xf32> to vector<8x32xf32>
    %118 = arith.mulf %113, %117 : vector<8x32xf32>
    %c0_43 = arith.constant 0 : index
    %c0_44 = arith.constant 0 : index
    %119 = vector.load %arg11[%c0_43, %c0_44] : memref<1x32xf32, #tpu.memory_space<vmem>>, vector<1x32xf32>
    %120 = vector.broadcast %119 : vector<1x32xf32> to vector<8x32xf32>
    %121 = arith.mulf %118, %120 : vector<8x32xf32>
    %c0_45 = arith.constant 0 : index
    %c0_46 = arith.constant 0 : index
    %122 = vector.load %arg12[%c0_45, %c0_46] : memref<1x32xf32, #tpu.memory_space<vmem>>, vector<1x32xf32>
    %123 = vector.broadcast %122 : vector<1x32xf32> to vector<8x32xf32>
    %124 = arith.addf %121, %123 : vector<8x32xf32>
    %125 = arith.truncf %124 : vector<8x32xf32> to vector<8x32xbf16>
    %c0_47 = arith.constant 0 : index
    %c0_48 = arith.constant 0 : index
    %c0_49 = arith.constant 0 : index
    %126 = vector.load %arg13[%c0_47, %c0_48, %c0_49] : memref<1x8x32xbf16, #tpu.memory_space<vmem>>, vector<1x8x32xbf16>
    %127 = vector.shape_cast %126 : vector<1x8x32xbf16> to vector<8x32xbf16>
    %128 = vector.shape_cast %125 : vector<8x32xbf16> to vector<1x8x32xbf16>
    tpu.vector_store %arg13[%c0_47, %c0_48, %c0_49], %128 {strides = array<i32>} : memref<1x8x32xbf16, #tpu.memory_space<vmem>>, vector<1x8x32xbf16>,
    return
  }
  func.func @transform_0(%arg0: i32, %arg1: i32) -> (i32, i32, i32) {
    %c0_i32 = arith.constant 0 : i32
    %c0_i32_0 = arith.constant 0 : i32
    return %arg0, %arg1, %c0_i32 : i32, i32, i32
  }
  func.func @transform_1(%arg0: i32, %arg1: i32) -> (i32, i32, i32) {
    %c0_i32 = arith.constant 0 : i32
    %c0_i32_0 = arith.constant 0 : i32
    %c0_i32_1 = arith.constant 0 : i32
    return %c0_i32, %arg1, %c0_i32_0 : i32, i32, i32
  }
  func.func @transform_2(%arg0: i32, %arg1: i32) -> (i32, i32, i32) {
    %c0_i32 = arith.constant 0 : i32
    %c0_i32_0 = arith.constant 0 : i32
    %c0_i32_1 = arith.constant 0 : i32
    return %arg0, %c0_i32, %c0_i32_0 : i32, i32, i32
  }
  func.func @transform_3(%arg0: i32, %arg1: i32) -> (i32, i32, i32) {
    %c0_i32 = arith.constant 0 : i32
    %c0_i32_0 = arith.constant 0 : i32
    %c0_i32_1 = arith.constant 0 : i32
    return %arg0, %c0_i32, %c0_i32_0 : i32, i32, i32
  }
  func.func @transform_4(%arg0: i32, %arg1: i32) -> (i32, i32, i32) {
    %c0_i32 = arith.constant 0 : i32
    %c0_i32_0 = arith.constant 0 : i32
    %c0_i32_1 = arith.constant 0 : i32
    return %arg0, %c0_i32, %c0_i32_0 : i32, i32, i32
  }
  func.func @transform_5(%arg0: i32, %arg1: i32) -> (i32, i32) {
    %c0_i32 = arith.constant 0 : i32
    %c0_i32_0 = arith.constant 0 : i32
    %c0_i32_1 = arith.constant 0 : i32
    return %c0_i32, %c0_i32_0 : i32, i32
  }
  func.func @transform_6(%arg0: i32, %arg1: i32) -> (i32, i32) {
    %c0_i32 = arith.constant 0 : i32
    %c0_i32_0 = arith.constant 0 : i32
    %c0_i32_1 = arith.constant 0 : i32
    return %c0_i32, %c0_i32_0 : i32, i32
  }
  func.func @transform_7(%arg0: i32, %arg1: i32) -> (i32, i32) {
    %c0_i32 = arith.constant 0 : i32
    %c0_i32_0 = arith.constant 0 : i32
    %c0_i32_1 = arith.constant 0 : i32
    return %c0_i32, %c0_i32_0 : i32, i32
  }
  func.func @transform_8(%arg0: i32, %arg1: i32) -> (i32, i32) {
    %c0_i32 = arith.constant 0 : i32
    %c0_i32_0 = arith.constant 0 : i32
    %c0_i32_1 = arith.constant 0 : i32
    return %c0_i32, %c0_i32_0 : i32, i32
  }
  func.func @transform_9(%arg0: i32, %arg1: i32) -> (i32, i32) {
    %c0_i32 = arith.constant 0 : i32
    %c0_i32_0 = arith.constant 0 : i32
    %c0_i32_1 = arith.constant 0 : i32
    return %c0_i32, %c0_i32_0 : i32, i32
  }
  func.func @transform_10(%arg0: i32, %arg1: i32) -> (i32, i32) {
    %c0_i32 = arith.constant 0 : i32
    %c0_i32_0 = arith.constant 0 : i32
    %c0_i32_1 = arith.constant 0 : i32
    return %c0_i32, %c0_i32_0 : i32, i32
  }
  func.func @transform_11(%arg0: i32, %arg1: i32) -> (i32, i32, i32) {
    %c0_i32 = arith.constant 0 : i32
    %c0_i32_0 = arith.constant 0 : i32
    return %arg0, %arg1, %c0_i32 : i32, i32, i32
  }
}

module attributes {stable_mosaic.version = 11 : i64} {
  func.func @_ln_kernel(%arg0: i32, %arg1: memref<16x32xbf16, #tpu.memory_space<vmem>>, %arg2: memref<1x32xf32, #tpu.memory_space<vmem>>, %arg3: memref<1x32xf32, #tpu.memory_space<vmem>>, %arg4: memref<16x32xf32, #tpu.memory_space<vmem>>) attributes {dimension_semantics = [#tpu.dimension_semantics<parallel>], iteration_bounds = array<i64: 1>, scalar_prefetch = 0 : i64, scratch_operands = 0 : i64, tpu.core_type = #tpu.core_type<tc>, window_params = [{transform_indices = @transform_0, window_bounds = array<i64: 16, 32>}, {pipeline_mode = #tpu.pipeline_mode<synchronous>, transform_indices = @transform_1, window_bounds = array<i64: 1, 32>}, {pipeline_mode = #tpu.pipeline_mode<synchronous>, transform_indices = @transform_2, window_bounds = array<i64: 1, 32>}, {transform_indices = @transform_3, window_bounds = array<i64: 16, 32>}]} {
    %c0 = arith.constant 0 : index
    %c0_0 = arith.constant 0 : index
    %0 = vector.load %arg1[%c0, %c0_0] : memref<16x32xbf16, #tpu.memory_space<vmem>>, vector<16x32xbf16>
    %1 = arith.extf %0 : vector<16x32xbf16> to vector<16x32xf32>
    %cst = arith.constant dense<0.000000e+00> : vector<16xf32>
    %2 = vector.multi_reduction <add>, %1, %cst [1] : vector<16x32xf32> to vector<16xf32>
    %3 = vector.shape_cast %2 : vector<16xf32> to vector<16x1xf32>
    %cst_1 = arith.constant 3.200000e+01 : f32
    %4 = vector.broadcast %cst_1 : f32 to vector<16x1xf32>
    %5 = arith.divf %3, %4 : vector<16x1xf32>
    %6 = vector.broadcast %5 : vector<16x1xf32> to vector<16x32xf32>
    %7 = arith.subf %1, %6 : vector<16x32xf32>
    %8 = arith.mulf %7, %7 : vector<16x32xf32>
    %cst_2 = arith.constant dense<0.000000e+00> : vector<16xf32>
    %9 = vector.multi_reduction <add>, %8, %cst_2 [1] : vector<16x32xf32> to vector<16xf32>
    %10 = vector.shape_cast %9 : vector<16xf32> to vector<16x1xf32>
    %cst_3 = arith.constant 3.200000e+01 : f32
    %11 = vector.broadcast %cst_3 : f32 to vector<16x1xf32>
    %12 = arith.divf %10, %11 : vector<16x1xf32>
    %13 = vector.broadcast %5 : vector<16x1xf32> to vector<16x32xf32>
    %14 = arith.subf %1, %13 : vector<16x32xf32>
    %cst_4 = arith.constant 9.99999974E-6 : f32
    %15 = vector.broadcast %cst_4 : f32 to vector<16x1xf32>
    %16 = arith.addf %12, %15 : vector<16x1xf32>
    %17 = math.rsqrt %16 : vector<16x1xf32>
    %18 = vector.broadcast %17 : vector<16x1xf32> to vector<16x32xf32>
    %19 = arith.mulf %14, %18 : vector<16x32xf32>
    %c0_5 = arith.constant 0 : index
    %c0_6 = arith.constant 0 : index
    %20 = vector.load %arg2[%c0_5, %c0_6] : memref<1x32xf32, #tpu.memory_space<vmem>>, vector<1x32xf32>
    %21 = vector.broadcast %20 : vector<1x32xf32> to vector<16x32xf32>
    %22 = arith.mulf %19, %21 : vector<16x32xf32>
    %c0_7 = arith.constant 0 : index
    %c0_8 = arith.constant 0 : index
    %23 = vector.load %arg3[%c0_7, %c0_8] : memref<1x32xf32, #tpu.memory_space<vmem>>, vector<1x32xf32>
    %24 = vector.broadcast %23 : vector<1x32xf32> to vector<16x32xf32>
    %25 = arith.addf %22, %24 : vector<16x32xf32>
    %c0_9 = arith.constant 0 : index
    %c0_10 = arith.constant 0 : index
    %26 = vector.load %arg4[%c0_9, %c0_10] : memref<16x32xf32, #tpu.memory_space<vmem>>, vector<16x32xf32>
    tpu.vector_store %arg4[%c0_9, %c0_10], %25 {strides = array<i32>} : memref<16x32xf32, #tpu.memory_space<vmem>>, vector<16x32xf32>,
    return
  }
  func.func @transform_0(%arg0: i32) -> (i32, i32) {
    %c0_i32 = arith.constant 0 : i32
    %c0_i32_0 = arith.constant 0 : i32
    return %arg0, %c0_i32 : i32, i32
  }
  func.func @transform_1(%arg0: i32) -> (i32, i32) {
    %c0_i32 = arith.constant 0 : i32
    %c0_i32_0 = arith.constant 0 : i32
    %c0_i32_1 = arith.constant 0 : i32
    return %c0_i32, %c0_i32_0 : i32, i32
  }
  func.func @transform_2(%arg0: i32) -> (i32, i32) {
    %c0_i32 = arith.constant 0 : i32
    %c0_i32_0 = arith.constant 0 : i32
    %c0_i32_1 = arith.constant 0 : i32
    return %c0_i32, %c0_i32_0 : i32, i32
  }
  func.func @transform_3(%arg0: i32) -> (i32, i32) {
    %c0_i32 = arith.constant 0 : i32
    %c0_i32_0 = arith.constant 0 : i32
    return %arg0, %c0_i32 : i32, i32
  }
}

module attributes {stable_mosaic.version = 11 : i64} {
  func.func @_ffn_block_kernel(%arg0: i32, %arg1: memref<16x32xbf16, #tpu.memory_space<vmem>>, %arg2: memref<32x64xbf16, #tpu.memory_space<vmem>>, %arg3: memref<1x64xf32, #tpu.memory_space<vmem>>, %arg4: memref<64x32xbf16, #tpu.memory_space<vmem>>, %arg5: memref<1x32xf32, #tpu.memory_space<vmem>>, %arg6: memref<1x32xf32, #tpu.memory_space<vmem>>, %arg7: memref<1x32xf32, #tpu.memory_space<vmem>>, %arg8: memref<16x32xbf16, #tpu.memory_space<vmem>>) attributes {dimension_semantics = [#tpu.dimension_semantics<parallel>], iteration_bounds = array<i64: 1>, scalar_prefetch = 0 : i64, scratch_operands = 0 : i64, tpu.core_type = #tpu.core_type<tc>, window_params = [{transform_indices = @transform_0, window_bounds = array<i64: 16, 32>}, {pipeline_mode = #tpu.pipeline_mode<synchronous>, transform_indices = @transform_1, window_bounds = array<i64: 32, 64>}, {pipeline_mode = #tpu.pipeline_mode<synchronous>, transform_indices = @transform_2, window_bounds = array<i64: 1, 64>}, {pipeline_mode = #tpu.pipeline_mode<synchronous>, transform_indices = @transform_3, window_bounds = array<i64: 64, 32>}, {pipeline_mode = #tpu.pipeline_mode<synchronous>, transform_indices = @transform_4, window_bounds = array<i64: 1, 32>}, {pipeline_mode = #tpu.pipeline_mode<synchronous>, transform_indices = @transform_5, window_bounds = array<i64: 1, 32>}, {pipeline_mode = #tpu.pipeline_mode<synchronous>, transform_indices = @transform_6, window_bounds = array<i64: 1, 32>}, {transform_indices = @transform_7, window_bounds = array<i64: 16, 32>}]} {
    %c0 = arith.constant 0 : index
    %c0_0 = arith.constant 0 : index
    %0 = vector.load %arg1[%c0, %c0_0] : memref<16x32xbf16, #tpu.memory_space<vmem>>, vector<16x32xbf16>
    %c0_1 = arith.constant 0 : index
    %c0_2 = arith.constant 0 : index
    %1 = vector.load %arg2[%c0_1, %c0_2] : memref<32x64xbf16, #tpu.memory_space<vmem>>, vector<32x64xbf16>
    %cst = arith.constant dense<0.000000e+00> : vector<16x64xf32>
    %2 = tpu.matmul %0, %1, %cst {dimension_numbers = #tpu.dot_dimension_numbers<[1], [0], [0], [1], [0, 0, 1, 1], [], []>} : vector<16x32xbf16>, vector<32x64xbf16>, vector<16x64xf32> -> vector<16x64xf32>
    %c0_3 = arith.constant 0 : index
    %c0_4 = arith.constant 0 : index
    %3 = vector.load %arg3[%c0_3, %c0_4] : memref<1x64xf32, #tpu.memory_space<vmem>>, vector<1x64xf32>
    %4 = vector.broadcast %3 : vector<1x64xf32> to vector<16x64xf32>
    %5 = arith.addf %2, %4 : vector<16x64xf32>
    %cst_5 = arith.constant 0.000000e+00 : f32
    %6 = vector.broadcast %cst_5 : f32 to vector<16x64xf32>
    %7 = arith.maximumf %5, %6 : vector<16x64xf32>
    %8 = arith.truncf %7 : vector<16x64xf32> to vector<16x64xbf16>
    %c0_6 = arith.constant 0 : index
    %c0_7 = arith.constant 0 : index
    %9 = vector.load %arg4[%c0_6, %c0_7] : memref<64x32xbf16, #tpu.memory_space<vmem>>, vector<64x32xbf16>
    %cst_8 = arith.constant dense<0.000000e+00> : vector<16x32xf32>
    %10 = tpu.matmul %8, %9, %cst_8 {dimension_numbers = #tpu.dot_dimension_numbers<[1], [0], [0], [1], [0, 0, 1, 1], [], []>} : vector<16x64xbf16>, vector<64x32xbf16>, vector<16x32xf32> -> vector<16x32xf32>
    %c0_9 = arith.constant 0 : index
    %c0_10 = arith.constant 0 : index
    %11 = vector.load %arg5[%c0_9, %c0_10] : memref<1x32xf32, #tpu.memory_space<vmem>>, vector<1x32xf32>
    %12 = vector.broadcast %11 : vector<1x32xf32> to vector<16x32xf32>
    %13 = arith.addf %10, %12 : vector<16x32xf32>
    %14 = arith.extf %0 : vector<16x32xbf16> to vector<16x32xf32>
    %15 = arith.addf %14, %13 : vector<16x32xf32>
    %cst_11 = arith.constant dense<0.000000e+00> : vector<16xf32>
    %16 = vector.multi_reduction <add>, %15, %cst_11 [1] : vector<16x32xf32> to vector<16xf32>
    %17 = vector.shape_cast %16 : vector<16xf32> to vector<16x1xf32>
    %cst_12 = arith.constant 3.200000e+01 : f32
    %18 = vector.broadcast %cst_12 : f32 to vector<16x1xf32>
    %19 = arith.divf %17, %18 : vector<16x1xf32>
    %20 = vector.broadcast %19 : vector<16x1xf32> to vector<16x32xf32>
    %21 = arith.subf %15, %20 : vector<16x32xf32>
    %22 = arith.mulf %21, %21 : vector<16x32xf32>
    %cst_13 = arith.constant dense<0.000000e+00> : vector<16xf32>
    %23 = vector.multi_reduction <add>, %22, %cst_13 [1] : vector<16x32xf32> to vector<16xf32>
    %24 = vector.shape_cast %23 : vector<16xf32> to vector<16x1xf32>
    %cst_14 = arith.constant 3.200000e+01 : f32
    %25 = vector.broadcast %cst_14 : f32 to vector<16x1xf32>
    %26 = arith.divf %24, %25 : vector<16x1xf32>
    %27 = vector.broadcast %19 : vector<16x1xf32> to vector<16x32xf32>
    %28 = arith.subf %15, %27 : vector<16x32xf32>
    %cst_15 = arith.constant 9.99999974E-6 : f32
    %29 = vector.broadcast %cst_15 : f32 to vector<16x1xf32>
    %30 = arith.addf %26, %29 : vector<16x1xf32>
    %31 = math.rsqrt %30 : vector<16x1xf32>
    %32 = vector.broadcast %31 : vector<16x1xf32> to vector<16x32xf32>
    %33 = arith.mulf %28, %32 : vector<16x32xf32>
    %c0_16 = arith.constant 0 : index
    %c0_17 = arith.constant 0 : index
    %34 = vector.load %arg6[%c0_16, %c0_17] : memref<1x32xf32, #tpu.memory_space<vmem>>, vector<1x32xf32>
    %35 = vector.broadcast %34 : vector<1x32xf32> to vector<16x32xf32>
    %36 = arith.mulf %33, %35 : vector<16x32xf32>
    %c0_18 = arith.constant 0 : index
    %c0_19 = arith.constant 0 : index
    %37 = vector.load %arg7[%c0_18, %c0_19] : memref<1x32xf32, #tpu.memory_space<vmem>>, vector<1x32xf32>
    %38 = vector.broadcast %37 : vector<1x32xf32> to vector<16x32xf32>
    %39 = arith.addf %36, %38 : vector<16x32xf32>
    %40 = arith.truncf %39 : vector<16x32xf32> to vector<16x32xbf16>
    %c0_20 = arith.constant 0 : index
    %c0_21 = arith.constant 0 : index
    %41 = vector.load %arg8[%c0_20, %c0_21] : memref<16x32xbf16, #tpu.memory_space<vmem>>, vector<16x32xbf16>
    tpu.vector_store %arg8[%c0_20, %c0_21], %40 {strides = array<i32>} : memref<16x32xbf16, #tpu.memory_space<vmem>>, vector<16x32xbf16>,
    return
  }
  func.func @transform_0(%arg0: i32) -> (i32, i32) {
    %c0_i32 = arith.constant 0 : i32
    %c0_i32_0 = arith.constant 0 : i32
    return %arg0, %c0_i32 : i32, i32
  }
  func.func @transform_1(%arg0: i32) -> (i32, i32) {
    %c0_i32 = arith.constant 0 : i32
    %c0_i32_0 = arith.constant 0 : i32
    %c0_i32_1 = arith.constant 0 : i32
    return %c0_i32, %c0_i32_0 : i32, i32
  }
  func.func @transform_2(%arg0: i32) -> (i32, i32) {
    %c0_i32 = arith.constant 0 : i32
    %c0_i32_0 = arith.constant 0 : i32
    %c0_i32_1 = arith.constant 0 : i32
    return %c0_i32, %c0_i32_0 : i32, i32
  }
  func.func @transform_3(%arg0: i32) -> (i32, i32) {
    %c0_i32 = arith.constant 0 : i32
    %c0_i32_0 = arith.constant 0 : i32
    %c0_i32_1 = arith.constant 0 : i32
    return %c0_i32, %c0_i32_0 : i32, i32
  }
  func.func @transform_4(%arg0: i32) -> (i32, i32) {
    %c0_i32 = arith.constant 0 : i32
    %c0_i32_0 = arith.constant 0 : i32
    %c0_i32_1 = arith.constant 0 : i32
    return %c0_i32, %c0_i32_0 : i32, i32
  }
  func.func @transform_5(%arg0: i32) -> (i32, i32) {
    %c0_i32 = arith.constant 0 : i32
    %c0_i32_0 = arith.constant 0 : i32
    %c0_i32_1 = arith.constant 0 : i32
    return %c0_i32, %c0_i32_0 : i32, i32
  }
  func.func @transform_6(%arg0: i32) -> (i32, i32) {
    %c0_i32 = arith.constant 0 : i32
    %c0_i32_0 = arith.constant 0 : i32
    %c0_i32_1 = arith.constant 0 : i32
    return %c0_i32, %c0_i32_0 : i32, i32
  }
  func.func @transform_7(%arg0: i32) -> (i32, i32) {
    %c0_i32 = arith.constant 0 : i32
    %c0_i32_0 = arith.constant 0 : i32
    return %arg0, %c0_i32 : i32, i32
  }
}

</mosaic_0001>

<llo_original>
// kernel: transformer_forward.11
$region0: #{transformer_forward.11}
  #allocation0 [shape = 'u32[]', space=smem, size = 0x4, offset = 0x4, fixed_abs, tag = 'smem constant byte address 0x4 - core index']
  #allocation1 [shape = 'u32[144,128]{1,0:T(1,128)}', space=vmem, size = 0x12000, scoped, tag = 'internal scratch']
  #allocation2 [shape = 'bf16[16,32]{1,0:T(16,128)(2,1)}', space=vmem, size = 0x1000, scoped, tag = 'scratch operand']
  #allocation3 [shape = 'bf16[16,32]{1,0:T(16,128)(2,1)}', space=vmem, size = 0x1000, scoped, tag = 'scratch operand']
  %s0 = inlined_call_operand.vmem [shape: bf16[2,16,32], index: 0, kind: input, shape index: {}, may-alias: {0,2}]
  %s1 = inlined_call_operand.vmem [shape: bf16[2,16,32], index: 1, kind: input, shape index: {}, may-alias: {1,3}]
  %s2 = inlined_call_operand.vmem [shape: bf16[2,16,32], index: 2, kind: input, shape index: {}, may-alias: {0,2}]
  %s3 = inlined_call_operand.vmem [shape: bf16[2,16,32], index: 3, kind: input, shape index: {}, may-alias: {1,3}]
  %s4 = inlined_call_operand.vmem [shape: f32[2,1,16], index: 4, kind: input, shape index: {}]
  %s5 = inlined_call_operand.vmem [shape: bf16[32,96], index: 5, kind: input, shape index: {}]
  %s6 = inlined_call_operand.vmem [shape: f32[1,96], index: 6, kind: input, shape index: {}]
  %s7 = inlined_call_operand.vmem [shape: bf16[32,32], index: 7, kind: input, shape index: {}]
  %s8 = inlined_call_operand.vmem [shape: f32[1,32], index: 8, kind: input, shape index: {}]
  %s9 = inlined_call_operand.vmem [shape: f32[1,32], index: 9, kind: input, shape index: {}]
  %s10 = inlined_call_operand.vmem [shape: f32[1,32], index: 10, kind: input, shape index: {}]
  %s11 = inlined_call_operand.vmem [shape: bf16[2,16,32], index: 11, kind: output, shape index: {}]
  %s12 = sld [smem:[#allocation0]]
  $region81: #{transformer_forward.11} parent=0
    _
  %s14 = ssub.s32 1, %s12
  %s15 = scalar_select 0, %s14, %s12
  loop: start=0, step=1, limit=4
  $region2: #{transformer_forward.11} parent=0 // loop_pre_header
    _
  $region3: #{transformer_forward.11} parent=0 // loop_header
    %s17 = sphi 0, %s21
    %p18 = scmp.ge.s32.totalorder %s17, 4
    %s24 = sphi 0, %s36
    %s25 = sphi 0, %s32
    %s26 = sphi 0, %s24
    %s27 = sphi 0, %s25
    %s28 = sphi 0, %s26
    %s29 = sphi 0, %s27
    %s41 = sphi 0, %s43
    %s44 = sphi 0, %s41
    %s45 = sphi 0, %s44
    %s61 = sphi 0, %s45
    %s69 = sphi 0, %s71
    %s72 = sphi 0, %s69
    %s73 = sphi 0, %s72
    %s89 = sphi 0, %s73
    %s95 = sphi 0, %s97
    %s98 = sphi 0, %s95
    %s99 = sphi 0, %s98
    %s115 = sphi 0, %s99
    %s121 = sphi 0, %s123
    %s124 = sphi 0, %s121
    %s125 = sphi 0, %s124
    %s141 = sphi 0, %s125
    %s147 = sphi 0, %s149
    %s150 = sphi 0, %s147
    %s151 = sphi 0, %s150
    %s167 = sphi 0, %s151
    %s171 = sphi 0, %s171
    %s173 = sphi 0, %s171
    %s174 = sphi 0, %s173
    %s188 = sphi 0, %s174
    %s192 = sphi 0, %s192
    %s194 = sphi 0, %s192
    %s195 = sphi 0, %s194
    %s209 = sphi 0, %s195
    %s213 = sphi 0, %s213
    %s215 = sphi 0, %s213
    %s216 = sphi 0, %s215
    %s230 = sphi 0, %s216
    %s234 = sphi 0, %s234
    %s236 = sphi 0, %s234
    %s237 = sphi 0, %s236
    %s251 = sphi 0, %s237
    %s255 = sphi 0, %s255
    %s257 = sphi 0, %s255
    %s258 = sphi 0, %s257
    %s272 = sphi 0, %s258
    %s276 = sphi 0, %s276
    %s278 = sphi 0, %s276
    %s279 = sphi 0, %s278
    %s293 = sphi 0, %s279
    %s301 = sphi 0, %s303
    %s304 = sphi 0, %s301
    %s305 = sphi 0, %s304
    %s321 = sphi 0, %s305
  $region4: #{transformer_forward.11} parent=0 // loop_header_branch
    %20 = sbr.rel (%p18) target = $region8
  $region5: #{transformer_forward.11} parent=0 // loop_body
    %s22 = ssub.s32 %s17, 1
    %s23 = ssub.s32 %s17, 2
    %s30 = sadd.s32 1, %s25
    %p31 = scmp.ge.s32.totalorder %s30, 1
    %s32 = scalar_select %p31, 0, %s30
    %s33 = sadd.s32 1, %s24
    %s34 = scalar_select %p31, %s33, %s24
    %p35 = scmp.ge.s32.totalorder %s34, 2
    %s36 = scalar_select %p35, 0, %s34
    %s37 = ssub.s32 %s24, %s36
    %s38 = ssub.s32 %s25, %s32
    %s39 = sor.u32 %s37, %s38
    %p40 = scmp.eq.s32.totalorder %s39, 0
    %s42 = sadd.s32 %s41, 1
    %s43 = scalar_select %p40, %s41, %s42
    %p46 = pneg %p40
    %p47 = scmp.eq.s32.totalorder %s17, 1
    %p48 = por %p46, %p47
    %p49 = scmp.ne.s32.totalorder %s41, %s44
    %p50 = scmp.eq.s32.totalorder %s17, 0
    %p51 = por %p49, %p50
    %p52 = scmp.ne.s32.totalorder %s41, %s44
    %p53 = scmp.eq.s32.totalorder %s22, 1
    %p54 = por %p52, %p53
    %p55 = scmp.ne.s32.totalorder %s44, %s45
    %p56 = scmp.eq.s32.totalorder %s22, 0
    %p57 = por %p55, %p56
    %p58 = scmp.ne.s32.totalorder %s44, %s45
    %p59 = scmp.eq.s32.totalorder %s23, 1
    %p60 = por %p58, %p59
    %p62 = scmp.ne.s32.totalorder %s45, %s61
    %p63 = scmp.eq.s32.totalorder %s23, 0
    %p64 = por %p62, %p63
    %s65 = ssub.s32 %s24, %s36
    %s66 = ssub.s32 %s25, %s32
    %s67 = sor.u32 %s65, %s66
    %p68 = scmp.eq.s32.totalorder %s67, 0
    %s70 = sadd.s32 %s69, 1
    %s71 = scalar_select %p68, %s69, %s70
    %p74 = pneg %p68
    %p75 = scmp.eq.s32.totalorder %s17, 1
    %p76 = por %p74, %p75
    %p77 = scmp.ne.s32.totalorder %s69, %s72
    %p78 = scmp.eq.s32.totalorder %s17, 0
    %p79 = por %p77, %p78
    %p80 = scmp.ne.s32.totalorder %s69, %s72
    %p81 = scmp.eq.s32.totalorder %s22, 1
    %p82 = por %p80, %p81
    %p83 = scmp.ne.s32.totalorder %s72, %s73
    %p84 = scmp.eq.s32.totalorder %s22, 0
    %p85 = por %p83, %p84
    %p86 = scmp.ne.s32.totalorder %s72, %s73
    %p87 = scmp.eq.s32.totalorder %s23, 1
    %p88 = por %p86, %p87
    %p90 = scmp.ne.s32.totalorder %s73, %s89
    %p91 = scmp.eq.s32.totalorder %s23, 0
    %p92 = por %p90, %p91
    %s93 = ssub.s32 %s24, %s36
    %p94 = scmp.eq.s32.totalorder %s93, 0
    %s96 = sadd.s32 %s95, 1
    %s97 = scalar_select %p94, %s95, %s96
    %p100 = pneg %p94
    %p101 = scmp.eq.s32.totalorder %s17, 1
    %p102 = por %p100, %p101
    %p103 = scmp.ne.s32.totalorder %s95, %s98
    %p104 = scmp.eq.s32.totalorder %s17, 0
    %p105 = por %p103, %p104
    %p106 = scmp.ne.s32.totalorder %s95, %s98
    %p107 = scmp.eq.s32.totalorder %s22, 1
    %p108 = por %p106, %p107
    %p109 = scmp.ne.s32.totalorder %s98, %s99
    %p110 = scmp.eq.s32.totalorder %s22, 0
    %p111 = por %p109, %p110
    %p112 = scmp.ne.s32.totalorder %s98, %s99
    %p113 = scmp.eq.s32.totalorder %s23, 1
    %p114 = por %p112, %p113
    %p116 = scmp.ne.s32.totalorder %s99, %s115
    %p117 = scmp.eq.s32.totalorder %s23, 0
    %p118 = por %p116, %p117
    %s119 = ssub.s32 %s24, %s36
    %p120 = scmp.eq.s32.totalorder %s119, 0
    %s122 = sadd.s32 %s121, 1
    %s123 = scalar_select %p120, %s121, %s122
    %p126 = pneg %p120
    %p127 = scmp.eq.s32.totalorder %s17, 1
    %p128 = por %p126, %p127
    %p129 = scmp.ne.s32.totalorder %s121, %s124
    %p130 = scmp.eq.s32.totalorder %s17, 0
    %p131 = por %p129, %p130
    %p132 = scmp.ne.s32.totalorder %s121, %s124
    %p133 = scmp.eq.s32.totalorder %s22, 1
    %p134 = por %p132, %p133
    %p135 = scmp.ne.s32.totalorder %s124, %s125
    %p136 = scmp.eq.s32.totalorder %s22, 0
    %p137 = por %p135, %p136
    %p138 = scmp.ne.s32.totalorder %s124, %s125
    %p139 = scmp.eq.s32.totalorder %s23, 1
    %p140 = por %p138, %p139
    %p142 = scmp.ne.s32.totalorder %s125, %s141
    %p143 = scmp.eq.s32.totalorder %s23, 0
    %p144 = por %p142, %p143
    %s145 = ssub.s32 %s24, %s36
    %p146 = scmp.eq.s32.totalorder %s145, 0
    %s148 = sadd.s32 %s147, 1
    %s149 = scalar_select %p146, %s147, %s148
    %p152 = pneg %p146
    %p153 = scmp.eq.s32.totalorder %s17, 1
    %p154 = por %p152, %p153
    %p155 = scmp.ne.s32.totalorder %s147, %s150
    %p156 = scmp.eq.s32.totalorder %s17, 0
    %p157 = por %p155, %p156
    %p158 = scmp.ne.s32.totalorder %s147, %s150
    %p159 = scmp.eq.s32.totalorder %s22, 1
    %p160 = por %p158, %p159
    %p161 = scmp.ne.s32.totalorder %s150, %s151
    %p162 = scmp.eq.s32.totalorder %s22, 0
    %p163 = por %p161, %p162
    %p164 = scmp.ne.s32.totalorder %s150, %s151
    %p165 = scmp.eq.s32.totalorder %s23, 1
    %p166 = por %p164, %p165
    %p168 = scmp.ne.s32.totalorder %s151, %s167
    %p169 = scmp.eq.s32.totalorder %s23, 0
    %p170 = por %p168, %p169
    %s172 = sadd.s32 %s171, 1
    %p175 = scmp.eq.s32.totalorder %s17, 1
    %p176 = scmp.ne.s32.totalorder %s171, %s173
    %p177 = scmp.eq.s32.totalorder %s17, 0
    %p178 = por %p176, %p177
    %p179 = scmp.ne.s32.totalorder %s171, %s173
    %p180 = scmp.eq.s32.totalorder %s22, 1
    %p181 = por %p179, %p180
    %p182 = scmp.ne.s32.totalorder %s173, %s174
    %p183 = scmp.eq.s32.totalorder %s22, 0
    %p184 = por %p182, %p183
    %p185 = scmp.ne.s32.totalorder %s173, %s174
    %p186 = scmp.eq.s32.totalorder %s23, 1
    %p187 = por %p185, %p186
    %p189 = scmp.ne.s32.totalorder %s174, %s188
    %p190 = scmp.eq.s32.totalorder %s23, 0
    %p191 = por %p189, %p190
    %s193 = sadd.s32 %s192, 1
    %p196 = scmp.eq.s32.totalorder %s17, 1
    %p197 = scmp.ne.s32.totalorder %s192, %s194
    %p198 = scmp.eq.s32.totalorder %s17, 0
    %p199 = por %p197, %p198
    %p200 = scmp.ne.s32.totalorder %s192, %s194
    %p201 = scmp.eq.s32.totalorder %s22, 1
    %p202 = por %p200, %p201
    %p203 = scmp.ne.s32.totalorder %s194, %s195
    %p204 = scmp.eq.s32.totalorder %s22, 0
    %p205 = por %p203, %p204
    %p206 = scmp.ne.s32.totalorder %s194, %s195
    %p207 = scmp.eq.s32.totalorder %s23, 1
    %p208 = por %p206, %p207
    %p210 = scmp.ne.s32.totalorder %s195, %s209
    %p211 = scmp.eq.s32.totalorder %s23, 0
    %p212 = por %p210, %p211
    %s214 = sadd.s32 %s213, 1
    %p217 = scmp.eq.s32.totalorder %s17, 1
    %p218 = scmp.ne.s32.totalorder %s213, %s215
    %p219 = scmp.eq.s32.totalorder %s17, 0
    %p220 = por %p218, %p219
    %p221 = scmp.ne.s32.totalorder %s213, %s215
    %p222 = scmp.eq.s32.totalorder %s22, 1
    %p223 = por %p221, %p222
    %p224 = scmp.ne.s32.totalorder %s215, %s216
    %p225 = scmp.eq.s32.totalorder %s22, 0
    %p226 = por %p224, %p225
    %p227 = scmp.ne.s32.totalorder %s215, %s216
    %p228 = scmp.eq.s32.totalorder %s23, 1
    %p229 = por %p227, %p228
    %p231 = scmp.ne.s32.totalorder %s216, %s230
    %p232 = scmp.eq.s32.totalorder %s23, 0
    %p233 = por %p231, %p232
    %s235 = sadd.s32 %s234, 1
    %p238 = scmp.eq.s32.totalorder %s17, 1
    %p239 = scmp.ne.s32.totalorder %s234, %s236
    %p240 = scmp.eq.s32.totalorder %s17, 0
    %p241 = por %p239, %p240
    %p242 = scmp.ne.s32.totalorder %s234, %s236
    %p243 = scmp.eq.s32.totalorder %s22, 1
    %p244 = por %p242, %p243
    %p245 = scmp.ne.s32.totalorder %s236, %s237
    %p246 = scmp.eq.s32.totalorder %s22, 0
    %p247 = por %p245, %p246
    %p248 = scmp.ne.s32.totalorder %s236, %s237
    %p249 = scmp.eq.s32.totalorder %s23, 1
    %p250 = por %p248, %p249
    %p252 = scmp.ne.s32.totalorder %s237, %s251
    %p253 = scmp.eq.s32.totalorder %s23, 0
    %p254 = por %p252, %p253
    %s256 = sadd.s32 %s255, 1
    %p259 = scmp.eq.s32.totalorder %s17, 1
    %p260 = scmp.ne.s32.totalorder %s255, %s257
    %p261 = scmp.eq.s32.totalorder %s17, 0
    %p262 = por %p260, %p261
    %p263 = scmp.ne.s32.totalorder %s255, %s257
    %p264 = scmp.eq.s32.totalorder %s22, 1
    %p265 = por %p263, %p264
    %p266 = scmp.ne.s32.totalorder %s257, %s258
    %p267 = scmp.eq.s32.totalorder %s22, 0
    %p268 = por %p266, %p267
    %p269 = scmp.ne.s32.totalorder %s257, %s258
    %p270 = scmp.eq.s32.totalorder %s23, 1
    %p271 = por %p269, %p270
    %p273 = scmp.ne.s32.totalorder %s258, %s272
    %p274 = scmp.eq.s32.totalorder %s23, 0
    %p275 = por %p273, %p274
    %s277 = sadd.s32 %s276, 1
    %p280 = scmp.eq.s32.totalorder %s17, 1
    %p281 = scmp.ne.s32.totalorder %s276, %s278
    %p282 = scmp.eq.s32.totalorder %s17, 0
    %p283 = por %p281, %p282
    %p284 = scmp.ne.s32.totalorder %s276, %s278
    %p285 = scmp.eq.s32.totalorder %s22, 1
    %p286 = por %p284, %p285
    %p287 = scmp.ne.s32.totalorder %s278, %s279
    %p288 = scmp.eq.s32.totalorder %s22, 0
    %p289 = por %p287, %p288
    %p290 = scmp.ne.s32.totalorder %s278, %s279
    %p291 = scmp.eq.s32.totalorder %s23, 1
    %p292 = por %p290, %p291
    %p294 = scmp.ne.s32.totalorder %s279, %s293
    %p295 = scmp.eq.s32.totalorder %s23, 0
    %p296 = por %p294, %p295
    %s297 = ssub.s32 %s24, %s36
    %s298 = ssub.s32 %s25, %s32
    %s299 = sor.u32 %s297, %s298
    %p300 = scmp.eq.s32.totalorder %s299, 0
    %s302 = sadd.s32 %s301, 1
    %s303 = scalar_select %p300, %s301, %s302
    %p306 = pneg %p300
    %p307 = scmp.eq.s32.totalorder %s17, 1
    %p308 = por %p306, %p307
    %p309 = scmp.ne.s32.totalorder %s301, %s304
    %p310 = scmp.eq.s32.totalorder %s17, 0
    %p311 = por %p309, %p310
    %p312 = scmp.ne.s32.totalorder %s301, %s304
    %p313 = scmp.eq.s32.totalorder %s22, 1
    %p314 = por %p312, %p313
    %p315 = scmp.ne.s32.totalorder %s304, %s305
    %p316 = scmp.eq.s32.totalorder %s22, 0
    %p317 = por %p315, %p316
    %p318 = scmp.ne.s32.totalorder %s304, %s305
    %p319 = scmp.eq.s32.totalorder %s23, 1
    %p320 = por %p318, %p319
    %p322 = scmp.ne.s32.totalorder %s305, %s321
    %p323 = scmp.eq.s32.totalorder %s23, 0
    %p324 = por %p322, %p323
    %p325 = scmp.le.s32.totalorder 1, %s17
    %p326 = scmp.lt.s32.totalorder %s17, 3
    %p327 = pnand %p325, %p326
    %p328 = pneg %p327
    // Predicated region
    $region9: #{transformer_forward.11} parent=5 // pred_check
      _
    $region10: #{transformer_forward.11} parent=5 // pred_check_branch
      %330 = sbr.rel (%p327) target = $region12
    $region11: #{transformer_forward.11} parent=5 // pred_region
      %s331 = ssub.s32 %s17, 1
      // Predicated region
      $region13: #{transformer_forward.11} parent=11 // pred_check
        %p332 = pneg %p184
      $region14: #{transformer_forward.11} parent=11 // pred_check_branch
        %334 = sbr.rel (%p332) target = $region16
      $region15: #{transformer_forward.11} parent=11 // pred_region
        _
      $region16: #{transformer_forward.11} parent=11 // pred_fallthru
        _
      // Predicated region
      $region17: #{transformer_forward.11} parent=11 // pred_check
        %p335 = pneg %p205
      $region18: #{transformer_forward.11} parent=11 // pred_check_branch
        %337 = sbr.rel (%p335) target = $region20
      $region19: #{transformer_forward.11} parent=11 // pred_region
        _
      $region20: #{transformer_forward.11} parent=11 // pred_fallthru
        _
      // Predicated region
      $region21: #{transformer_forward.11} parent=11 // pred_check
        %p338 = pneg %p226
      $region22: #{transformer_forward.11} parent=11 // pred_check_branch
        %340 = sbr.rel (%p338) target = $region24
      $region23: #{transformer_forward.11} parent=11 // pred_region
        _
      $region24: #{transformer_forward.11} parent=11 // pred_fallthru
        _
      // Predicated region
      $region25: #{transformer_forward.11} parent=11 // pred_check
        %p341 = pneg %p247
      $region26: #{transformer_forward.11} parent=11 // pred_check_branch
        %343 = sbr.rel (%p341) target = $region28
      $region27: #{transformer_forward.11} parent=11 // pred_region
        _
      $region28: #{transformer_forward.11} parent=11 // pred_fallthru
        _
      // Predicated region
      $region29: #{transformer_forward.11} parent=11 // pred_check
        %p344 = pneg %p268
      $region30: #{transformer_forward.11} parent=11 // pred_check_branch
        %346 = sbr.rel (%p344) target = $region32
      $region31: #{transformer_forward.11} parent=11 // pred_region
        _
      $region32: #{transformer_forward.11} parent=11 // pred_fallthru
        _
      // Predicated region
      $region33: #{transformer_forward.11} parent=11 // pred_check
        %p347 = pneg %p289
      $region34: #{transformer_forward.11} parent=11 // pred_check_branch
        %349 = sbr.rel (%p347) target = $region36
      $region35: #{transformer_forward.11} parent=11 // pred_region
        _
      $region36: #{transformer_forward.11} parent=11 // pred_fallthru
        _
    $region12: #{transformer_forward.11} parent=5 // pred_fallthru
      _
    %p350 = scmp.lt.s32.totalorder %s17, 2
    // Predicated region
    $region37: #{transformer_forward.11} parent=5 // pred_check
      %p351 = pneg %p350
    $region38: #{transformer_forward.11} parent=5 // pred_check_branch
      %353 = sbr.rel (%p351) target = $region40
    $region39: #{transformer_forward.11} parent=5 // pred_region
      // Predicated region
      $region41: #{transformer_forward.11} parent=39 // pred_check
        %p354 = pneg %p51
      $region42: #{transformer_forward.11} parent=39 // pred_check_branch
        %356 = sbr.rel (%p354) target = $region44
      $region43: #{transformer_forward.11} parent=39 // pred_region
        %s357 = smul.u32 2, %s25
        %p358 = scmp.lt.s32.totalorder %s24, 1
        %s359 = scalar_select %p358, %s24, 1
        %p360 = scmp.lt.s32.totalorder %s357, 1
        %s361 = scalar_select %p360, %s357, 1
        %s362 = smul.addr %s359, 2
        %s363 = sadd.s32 %s361, %s362
        %s364 = smul.addr %s363, 4
        %s365 = scalar_lea.vmem %s0, %s364
        %s366 = smul.u32 2, %s25
      $region44: #{transformer_forward.11} parent=39 // pred_fallthru
        _
      // Predicated region
      $region45: #{transformer_forward.11} parent=39 // pred_check
        %p367 = pneg %p79
      $region46: #{transformer_forward.11} parent=39 // pred_check_branch
        %369 = sbr.rel (%p367) target = $region48
      $region47: #{transformer_forward.11} parent=39 // pred_region
        %s370 = smul.u32 2, %s25
        %p371 = scmp.lt.s32.totalorder %s24, 1
        %s372 = scalar_select %p371, %s24, 1
        %p373 = scmp.lt.s32.totalorder %s370, 1
        %s374 = scalar_select %p373, %s370, 1
        %s375 = smul.addr %s372, 2
        %s376 = sadd.s32 %s374, %s375
        %s377 = smul.addr %s376, 4
        %s378 = scalar_lea.vmem %s1, %s377
        %s379 = smul.u32 2, %s25
      $region48: #{transformer_forward.11} parent=39 // pred_fallthru
        _
      // Predicated region
      $region49: #{transformer_forward.11} parent=39 // pred_check
        %p380 = pneg %p105
      $region50: #{transformer_forward.11} parent=39 // pred_check_branch
        %382 = sbr.rel (%p380) target = $region52
      $region51: #{transformer_forward.11} parent=39 // pred_region
        %p383 = scmp.lt.s32.totalorder %s24, 1
        %s384 = scalar_select %p383, %s24, 1
        %s385 = smul.addr %s384, 2
        %s386 = smul.addr %s385, 4
        %s387 = scalar_lea.vmem %s2, %s386
      $region52: #{transformer_forward.11} parent=39 // pred_fallthru
        _
      // Predicated region
      $region53: #{transformer_forward.11} parent=39 // pred_check
        %p388 = pneg %p131
      $region54: #{transformer_forward.11} parent=39 // pred_check_branch
        %390 = sbr.rel (%p388) target = $region56
      $region55: #{transformer_forward.11} parent=39 // pred_region
        %p391 = scmp.lt.s32.totalorder %s24, 1
        %s392 = scalar_select %p391, %s24, 1
        %s393 = smul.addr %s392, 2
        %s394 = smul.addr %s393, 4
        %s395 = scalar_lea.vmem %s3, %s394
      $region56: #{transformer_forward.11} parent=39 // pred_fallthru
        _
      // Predicated region
      $region57: #{transformer_forward.11} parent=39 // pred_check
        %p396 = pneg %p157
      $region58: #{transformer_forward.11} parent=39 // pred_check_branch
        %398 = sbr.rel (%p396) target = $region60
      $region59: #{transformer_forward.11} parent=39 // pred_region
        %p399 = scmp.lt.s32.totalorder %s24, 1
        %s400 = scalar_select %p399, %s24, 1
        %s401 = scalar_lea.vmem %s4, %s400
      $region60: #{transformer_forward.11} parent=39 // pred_fallthru
        _
    $region40: #{transformer_forward.11} parent=5 // pred_fallthru
      _
    %p402 = scmp.le.s32.totalorder 1, %s17
    %p403 = scmp.lt.s32.totalorder %s17, 3
    %p404 = pnand %p402, %p403
    %p405 = pneg %p404
    // Predicated region
    $region61: #{transformer_forward.11} parent=5 // pred_check
      _
    $region62: #{transformer_forward.11} parent=5 // pred_check_branch
      %407 = sbr.rel (%p404) target = $region64
    $region63: #{transformer_forward.11} parent=5 // pred_region
      %s408 = ssub.s32 %s17, 1
      %s409 = smul.u32 2, %s27
      %p410 = scmp.lt.s32.totalorder %s26, 1
      %s411 = scalar_select %p410, %s26, 1
      %p412 = scmp.lt.s32.totalorder %s409, 1
      %s413 = scalar_select %p412, %s409, 1
      %s414 = smul.addr %s411, 2
      %s415 = sadd.s32 %s413, %s414
      %s416 = smul.addr %s415, 4
      %s417 = scalar_lea.vmem %s0, %s416
      %p418 = pneg %p57
      %p419 = pneg %p54
      %s420 = smul.u32 2, %s27
      %p421 = scmp.lt.s32.totalorder %s26, 1
      %s422 = scalar_select %p421, %s26, 1
      %p423 = scmp.lt.s32.totalorder %s420, 1
      %s424 = scalar_select %p423, %s420, 1
      %s425 = smul.addr %s422, 2
      %s426 = sadd.s32 %s424, %s425
      %s427 = smul.addr %s426, 4
      %s428 = scalar_lea.vmem %s1, %s427
      %p429 = pneg %p85
      %p430 = pneg %p82
      %p431 = scmp.lt.s32.totalorder %s26, 1
      %s432 = scalar_select %p431, %s26, 1
      %s433 = smul.addr %s432, 2
      %s434 = smul.addr %s433, 4
      %s435 = scalar_lea.vmem %s2, %s434
      %p436 = pneg %p111
      %p437 = pneg %p108
      %p438 = scmp.lt.s32.totalorder %s26, 1
      %s439 = scalar_select %p438, %s26, 1
      %s440 = smul.addr %s439, 2
      %s441 = smul.addr %s440, 4
      %s442 = scalar_lea.vmem %s3, %s441
      %p443 = pneg %p137
      %p444 = pneg %p134
      %p445 = scmp.lt.s32.totalorder %s26, 1
      %s446 = scalar_select %p445, %s26, 1
      %s447 = scalar_lea.vmem %s4, %s446
      %p448 = pneg %p163
      %p449 = pneg %p160
      %p450 = pneg %p184
      %p451 = pneg %p181
      %p452 = pneg %p205
      %p453 = pneg %p202
      %p454 = pneg %p226
      %p455 = pneg %p223
      %p456 = pneg %p247
      %p457 = pneg %p244
      %p458 = pneg %p268
      %p459 = pneg %p265
      %p460 = pneg %p289
      %p461 = pneg %p286
      %p462 = pneg %p317
      %p463 = pneg %p314
      %s464 = smul.u32 2, %s27
      %p465 = scmp.lt.s32.totalorder %s26, 1
      %s466 = scalar_select %p465, %s26, 1
      %p467 = scmp.lt.s32.totalorder %s464, 1
      %s468 = scalar_select %p467, %s464, 1
      %s469 = smul.addr %s466, 2
      %s470 = sadd.s32 %s468, %s469
      %s471 = smul.addr %s470, 4
      %s472 = scalar_lea.vmem %s11, %s471
      %s473 = smul.u32 2, %s27
      %p474 = scmp.lt.s32.totalorder %s26, 1
      %s475 = scalar_select %p474, %s26, 1
      %p476 = scmp.lt.s32.totalorder %s473, 1
      %s477 = scalar_select %p476, %s473, 1
      %s478 = smul.addr %s475, 2
      %s479 = sadd.s32 %s477, %s478
      %s480 = smul.addr %s479, 4
      %s481 = scalar_lea.vmem %s0, %s480
      %s482 = smul.u32 2, %s27
      %s483 = smul.u32 2, %s27
      %p484 = scmp.lt.s32.totalorder %s26, 1
      %s485 = scalar_select %p484, %s26, 1
      %p486 = scmp.lt.s32.totalorder %s483, 1
      %s487 = scalar_select %p486, %s483, 1
      %s488 = smul.addr %s485, 2
      %s489 = sadd.s32 %s487, %s488
      %s490 = smul.addr %s489, 4
      %s491 = scalar_lea.vmem %s1, %s490
      %s492 = smul.u32 2, %s27
      %p493 = scmp.lt.s32.totalorder %s26, 1
      %s494 = scalar_select %p493, %s26, 1
      %s495 = smul.addr %s494, 2
      %s496 = smul.addr %s495, 4
      %s497 = scalar_lea.vmem %s2, %s496
      %p498 = scmp.lt.s32.totalorder %s26, 1
      %s499 = scalar_select %p498, %s26, 1
      %s500 = smul.addr %s499, 2
      %s501 = smul.addr %s500, 4
      %s502 = scalar_lea.vmem %s3, %s501
      %p503 = scmp.lt.s32.totalorder %s26, 1
      %s504 = scalar_select %p503, %s26, 1
      %s505 = scalar_lea.vmem %s4, %s504
      %s506 = smul.u32 2, %s27
      %p507 = scmp.lt.s32.totalorder %s26, 1
      %s508 = scalar_select %p507, %s26, 1
      %p509 = scmp.lt.s32.totalorder %s506, 1
      %s510 = scalar_select %p509, %s506, 1
      %s511 = smul.addr %s508, 2
      %s512 = sadd.s32 %s510, %s511
      %s513 = smul.addr %s512, 4
      %s514 = scalar_lea.vmem %s11, %s513
      %s515 = smul.u32 2, %s27
      %v517 = vld [vmem:[%s5] sm:$0xf]
      %v518 = vld [vmem:[%s5 + $0x4] sm:$0xf]
      %v519 = vld [vmem:[%s5 + $0x8] sm:$0xf]
      %v520 = vld [vmem:[%s5 + $0xc] sm:$0xf]
      %v521 = vld [vmem:[%s6] sm:$0x1]
      %p522 = scmp.eq.s32.totalorder %s27, 0
      // Predicated region
      $region65: #{transformer_forward.11} parent=63 // pred_check
        %p523 = pneg %p522
      $region66: #{transformer_forward.11} parent=63 // pred_check_branch
        %525 = sbr.rel (%p523) target = $region68
      $region67: #{transformer_forward.11} parent=63 // pred_region
        %v526 = vld [vmem:[%s497] sm:$0xf]
        %v527 = vld [vmem:[%s497 + $0x4] sm:$0xf]
        %v528 = vunpack.c.l.bf16 %v526
        %v529 = vunpack.c.l.bf16 %v527
        %v530 = vld [vmem:[%s502] sm:$0xf]
        %v531 = vld [vmem:[%s502 + $0x4] sm:$0xf]
        %v532 = vunpack.c.l.bf16 %v530
        %v533 = vunpack.c.l.bf16 %v531
        %v534 = vadd.f32 %v528, %v532
        %v535 = vadd.f32 %v529, %v533
        %v536 = vpack.c.bf16 %v535, %v534
        %v538 = vlaneseq
        %v539 = vshrl.u32 %v538, 7
        %v540 = vsub.s32 0, %v539
        %v541 = vrot.slane %v521, %v540
        %v546 = vunpack.c.l.b16 %v517
        %v547 = vunpack.c.l.b16 %v518
        %v548 = vunpack.c.l.b16 %v519
        %v549 = vunpack.c.l.b16 %v520
        %v550 = vpack.c.b16 %v547, %v546
        %v551 = vpack.c.b16 %v549, %v548
        %552 = vrot.lane.b32.xlu0 %v550, 96
        %v553 = vpop.permute.xlu0 %552
        %554 = vrot.lane.b32.xlu0 %v551, 96
        %v555 = vpop.permute.xlu0 %554
        %558 = vrot.lane.b32.xlu0 %v541, 96
        %v559 = vpop.permute.xlu0 %558
        %vm561 = vcmask 261120
        %v563 = vsel %vm561, %v536, 0
        %565 = vmatprep.subr.bf16.mxu0 0
        %566 = vmatpush1.bf16.msra.mxu0 %v553
        %567 = vmatprep.subr.bf16.mxu0 0
        %568 = vmatpush1.bf16.msra.mxu0 %v555
        %569 = vmatprep.subr.bf16.mxu0 0
        %570 = vmatpush1.bf16.msra.mxu0 0
        %571 = vmatprep.subr.bf16.mxu0 0
        %572 = vmatpush1.bf16.msra.mxu0 0
        %573 = vmatprep.subr.bf16.mxu0 0
        %574 = vmatpush1.bf16.msra.mxu0 0
        %575 = vmatprep.subr.bf16.mxu0 0
        %576 = vmatpush1.bf16.msra.mxu0 0
        %577 = vmatprep.subr.bf16.mxu0 0
        %578 = vmatpush1.bf16.msra.mxu0 0
        %579 = vmatprep.subr.bf16.mxu0 0
        %580 = vmatpush1.bf16.msra.mxu0 0
        %581 = vmatprep.subr.bf16.mxu0 0
        %582 = vmatpush1.bf16.msra.mxu0 0
        %583 = vmatprep.subr.bf16.mxu0 0
        %584 = vmatpush1.bf16.msra.mxu0 0
        %585 = vmatprep.subr.bf16.mxu0 0
        %586 = vmatpush1.bf16.msra.mxu0 0
        %587 = vmatprep.subr.bf16.mxu0 0
        %588 = vmatpush1.bf16.msra.mxu0 0
        %589 = vmatprep.subr.bf16.mxu0 0
        %590 = vmatpush1.bf16.msra.mxu0 0
        %591 = vmatprep.subr.bf16.mxu0 0
        %592 = vmatpush1.bf16.msra.mxu0 0
        %593 = vmatprep.subr.bf16.mxu0 0
        %594 = vmatpush1.bf16.msra.mxu0 0
        %595 = vmatprep.subr.bf16.mxu0 0
        %596 = vmatpush1.bf16.msra.mxu0 0
        %597 = vmatprep.mubr.bf16.mxu0 0
        %598 = vmatmul.mubr.bf16.gmra.mrb[0].mxu0 %v563
        %v599 = vpop.f32.mrb[0].mxu0
        %v600 = vadd.f32 %v559, %v599
        %v601 = vpop.f32.mrb[0].mxu0
        %v602 = vpop.f32.mrb[0].mxu0
        %v603 = vadd.f32 %v559, %v602
        %v604 = vpop.f32.mrb[0].mxu0
        %605 = vdwg.mxu0
        %v608 = vunpack.c.l.b16 %v526
        %v609 = vunpack.c.l.b16 %v527
        %v610 = vpack.c.b16 %v609, %v608
        %611 = vrot.lane.b32.xlu0 %v550, 64
        %v612 = vpop.permute.xlu0 %611
        %613 = vrot.lane.b32.xlu0 %v551, 64
        %v614 = vpop.permute.xlu0 %613
        %617 = vrot.lane.b32.xlu0 %v541, 64
        %v618 = vpop.permute.xlu0 %617
        %v621 = vsel %vm561, %v610, 0
        %623 = vmatprep.subr.bf16.mxu0 0
        %624 = vmatpush1.bf16.msra.mxu0 %v612
        %625 = vmatprep.subr.bf16.mxu0 0
        %626 = vmatpush1.bf16.msra.mxu0 %v614
        %627 = vmatprep.subr.bf16.mxu0 0
        %628 = vmatpush1.bf16.msra.mxu0 0
        %629 = vmatprep.subr.bf16.mxu0 0
        %630 = vmatpush1.bf16.msra.mxu0 0
        %631 = vmatprep.subr.bf16.mxu0 0
        %632 = vmatpush1.bf16.msra.mxu0 0
        %633 = vmatprep.subr.bf16.mxu0 0
        %634 = vmatpush1.bf16.msra.mxu0 0
        %635 = vmatprep.subr.bf16.mxu0 0
        %636 = vmatpush1.bf16.msra.mxu0 0
        %637 = vmatprep.subr.bf16.mxu0 0
        %638 = vmatpush1.bf16.msra.mxu0 0
        %639 = vmatprep.subr.bf16.mxu0 0
        %640 = vmatpush1.bf16.msra.mxu0 0
        %641 = vmatprep.subr.bf16.mxu0 0
        %642 = vmatpush1.bf16.msra.mxu0 0
        %643 = vmatprep.subr.bf16.mxu0 0
        %644 = vmatpush1.bf16.msra.mxu0 0
        %645 = vmatprep.subr.bf16.mxu0 0
        %646 = vmatpush1.bf16.msra.mxu0 0
        %647 = vmatprep.subr.bf16.mxu0 0
        %648 = vmatpush1.bf16.msra.mxu0 0
        %649 = vmatprep.subr.bf16.mxu0 0
        %650 = vmatpush1.bf16.msra.mxu0 0
        %651 = vmatprep.subr.bf16.mxu0 0
        %652 = vmatpush1.bf16.msra.mxu0 0
        %653 = vmatprep.subr.bf16.mxu0 0
        %654 = vmatpush1.bf16.msra.mxu0 0
        %655 = vmatprep.mubr.bf16.mxu0 0
        %656 = vmatmul.mubr.bf16.gmra.mrb[0].mxu0 %v621
        %v657 = vpop.f32.mrb[0].mxu0
        %v658 = vadd.f32 %v618, %v657
        %v659 = vpop.f32.mrb[0].mxu0
        %v660 = vpop.f32.mrb[0].mxu0
        %v661 = vadd.f32 %v618, %v660
        %v662 = vpop.f32.mrb[0].mxu0
        %663 = vdwg.mxu0
        %v664 = vpack.c.bf16 %v603, %v600
        %665 = vst.msk [vmem:[#allocation2] sm:$0xff] %vm561, %v664
        %v666 = vpack.c.bf16 %v661, %v658
        %667 = vst.msk [vmem:[#allocation3] sm:$0xff] %vm561, %v666
      $region68: #{transformer_forward.11} parent=63 // pred_fallthru
        _
      %v668 = vld [vmem:[%s481] sm:$0xf]
      %v669 = vld [vmem:[%s481 + $0x4] sm:$0xf]
      %v670 = vunpack.c.l.bf16 %v668
      %v671 = vunpack.c.l.bf16 %v669
      %v672 = vld [vmem:[%s491] sm:$0xf]
      %v673 = vld [vmem:[%s491 + $0x4] sm:$0xf]
      %v674 = vunpack.c.l.bf16 %v672
      %v675 = vunpack.c.l.bf16 %v673
      %v676 = vadd.f32 %v670, %v674
      %v677 = vadd.f32 %v671, %v675
      %v678 = vpack.c.bf16 %v677, %v676
      %v680 = vlaneseq
      %v681 = vshrl.u32 %v680, 7
      %v682 = vsub.s32 0, %v681
      %v683 = vrot.slane %v521, %v682
      %v689 = vunpack.c.l.b16 %v517
      %v690 = vunpack.c.l.b16 %v518
      %v691 = vunpack.c.l.b16 %v519
      %v692 = vunpack.c.l.b16 %v520
      %v693 = vpack.c.b16 %v690, %v689
      %v694 = vpack.c.b16 %v692, %v691
      %vm697 = vcmask 261120
      %v699 = vsel %vm697, %v678, 0
      %701 = vmatprep.subr.bf16.mxu0 0
      %702 = vmatpush1.bf16.msra.mxu0 %v693
      %703 = vmatprep.subr.bf16.mxu0 0
      %704 = vmatpush1.bf16.msra.mxu0 %v694
      %705 = vmatprep.subr.bf16.mxu0 0
      %706 = vmatpush1.bf16.msra.mxu0 0
      %707 = vmatprep.subr.bf16.mxu0 0
      %708 = vmatpush1.bf16.msra.mxu0 0
      %709 = vmatprep.subr.bf16.mxu0 0
      %710 = vmatpush1.bf16.msra.mxu0 0
      %711 = vmatprep.subr.bf16.mxu0 0
      %712 = vmatpush1.bf16.msra.mxu0 0
      %713 = vmatprep.subr.bf16.mxu0 0
      %714 = vmatpush1.bf16.msra.mxu0 0
      %715 = vmatprep.subr.bf16.mxu0 0
      %716 = vmatpush1.bf16.msra.mxu0 0
      %717 = vmatprep.subr.bf16.mxu0 0
      %718 = vmatpush1.bf16.msra.mxu0 0
      %719 = vmatprep.subr.bf16.mxu0 0
      %720 = vmatpush1.bf16.msra.mxu0 0
      %721 = vmatprep.subr.bf16.mxu0 0
      %722 = vmatpush1.bf16.msra.mxu0 0
      %723 = vmatprep.subr.bf16.mxu0 0
      %724 = vmatpush1.bf16.msra.mxu0 0
      %725 = vmatprep.subr.bf16.mxu0 0
      %726 = vmatpush1.bf16.msra.mxu0 0
      %727 = vmatprep.subr.bf16.mxu0 0
      %728 = vmatpush1.bf16.msra.mxu0 0
      %729 = vmatprep.subr.bf16.mxu0 0
      %730 = vmatpush1.bf16.msra.mxu0 0
      %731 = vmatprep.subr.bf16.mxu0 0
      %732 = vmatpush1.bf16.msra.mxu0 0
      %733 = vmatprep.mubr.bf16.mxu0 0
      %734 = vmatmul.mubr.bf16.gmra.mrb[0].mxu0 %v699
      %v735 = vpop.f32.mrb[0].mxu0
      %v736 = vadd.f32 %v683, %v735
      %v737 = vpop.f32.mrb[0].mxu0
      %v738 = vpop.f32.mrb[0].mxu0
      %v739 = vadd.f32 %v683, %v738
      %v740 = vpop.f32.mrb[0].mxu0
      %741 = vdwg.mxu0
      %v742 = vpack.c.bf16 %v739, %v736
      %v743 = vld [vmem:[#allocation2] sm:$0xff]
      %v744 = vld [vmem:[#allocation3] sm:$0xff]
      %v745 = vld [vmem:[%s505] sm:$0x1]
      %v747 = vlaneseq
      %v748 = vshrl.u32 %v747, 7
      %v749 = vsub.s32 0, %v748
      %v750 = vrot.slane %v745, %v749
      %vm752 = vcmask 64512
      %v754 = vsel %vm752, %v742, 0
      %v757 = vsel %vm752, %v743, 0
      %759 = vmatprep.subr.bf16.mxu0 0
      %760 = vmatpush1.bf16.xpose.msra.mxu0 %v757
      %761 = vmatprep.subr.bf16.mxu0 0
      %762 = vmatpush1.bf16.xpose.msra.mxu0 0
      %763 = vmatprep.subr.bf16.mxu0 0
      %764 = vmatpush1.bf16.xpose.msra.mxu0 0
      %765 = vmatprep.subr.bf16.mxu0 0
      %766 = vmatpush1.bf16.xpose.msra.mxu0 0
      %767 = vmatprep.subr.bf16.mxu0 0
      %768 = vmatpush1.bf16.xpose.msra.mxu0 0
      %769 = vmatprep.subr.bf16.mxu0 0
      %770 = vmatpush1.bf16.xpose.msra.mxu0 0
      %771 = vmatprep.subr.bf16.mxu0 0
      %772 = vmatpush1.bf16.xpose.msra.mxu0 0
      %773 = vmatprep.subr.bf16.mxu0 0
      %774 = vmatpush1.bf16.xpose.msra.mxu0 0
      %775 = vmatprep.subr.bf16.mxu0 0
      %776 = vmatpush1.bf16.xpose.msra.mxu0 0
      %777 = vmatprep.subr.bf16.mxu0 0
      %778 = vmatpush1.bf16.xpose.msra.mxu0 0
      %779 = vmatprep.subr.bf16.mxu0 0
      %780 = vmatpush1.bf16.xpose.msra.mxu0 0
      %781 = vmatprep.subr.bf16.mxu0 0
      %782 = vmatpush1.bf16.xpose.msra.mxu0 0
      %783 = vmatprep.subr.bf16.mxu0 0
      %784 = vmatpush1.bf16.xpose.msra.mxu0 0
      %785 = vmatprep.subr.bf16.mxu0 0
      %786 = vmatpush1.bf16.xpose.msra.mxu0 0
      %787 = vmatprep.subr.bf16.mxu0 0
      %788 = vmatpush1.bf16.xpose.msra.mxu0 0
      %789 = vmatprep.subr.bf16.mxu0 0
      %790 = vmatpush1.bf16.xpose.msra.mxu0 0
      %791 = vmatprep.mubr.bf16.mxu0 0
      %792 = vmatmul.mubr.bf16.gmra.mrb[0].mxu0 %v754
      %v793 = vpop.f32.mrb[0].mxu0
      %v794 = vadd.f32 %v750, %v793
      %v795 = vpop.f32.mrb[0].mxu0
      %v796 = vpop.f32.mrb[0].mxu0
      %v797 = vadd.f32 %v750, %v796
      %v798 = vpop.f32.mrb[0].mxu0
      %799 = vdwg.mxu0
      %vm800 = vcmask 130048
      %v801 = vsel %vm800, %v794, -inf
      %802 = vmax.xlane.f32.xlu0 %v801
      %v803 = vpop.xlane.xlu0 %802
      %v804 = vsel %vm800, %v797, -inf
      %805 = vmax.xlane.f32.xlu0 %v804
      %v806 = vpop.xlane.xlu0 %805
      %v807 = vsub.f32 %v794, %v803
      %v808 = vsub.f32 %v797, %v806
      %v809 = vmul.f32 %v807, 1.442695
      %v810 = vpow.pop %v809
      %v811 = vmul.f32 %v808, 1.442695
      %v812 = vpow.pop %v811
      %v813 = vsel %vm800, %v810, 0.0
      %814 = vadd.xlane.f32.xlu0 %v813
      %v815 = vpop.xlane.xlu0 %814
      %v816 = vsel %vm800, %v812, 0.0
      %817 = vadd.xlane.f32.xlu0 %v816
      %v818 = vpop.xlane.xlu0 %817
      %v819 = vrcp.pop %v815
      %v820 = vrcp.pop %v818
      %v821 = vmul.f32 %v810, %v819
      %v822 = vmul.f32 %v812, %v820
      %v823 = vpack.c.bf16 %v822, %v821
      %v825 = vsel %vm800, %v823, 0
      %827 = vmatprep.subr.bf16.mxu0 0
      %828 = vmatpush1.bf16.msra.mxu0 %v744
      %829 = vmatprep.subr.bf16.mxu0 0
      %830 = vmatpush1.bf16.msra.mxu0 0
      %831 = vmatprep.subr.bf16.mxu0 0
      %832 = vmatpush1.bf16.msra.mxu0 0
      %833 = vmatprep.subr.bf16.mxu0 0
      %834 = vmatpush1.bf16.msra.mxu0 0
      %835 = vmatprep.subr.bf16.mxu0 0
      %836 = vmatpush1.bf16.msra.mxu0 0
      %837 = vmatprep.subr.bf16.mxu0 0
      %838 = vmatpush1.bf16.msra.mxu0 0
      %839 = vmatprep.subr.bf16.mxu0 0
      %840 = vmatpush1.bf16.msra.mxu0 0
      %841 = vmatprep.subr.bf16.mxu0 0
      %842 = vmatpush1.bf16.msra.mxu0 0
      %843 = vmatprep.subr.bf16.mxu0 0
      %844 = vmatpush1.bf16.msra.mxu0 0
      %845 = vmatprep.subr.bf16.mxu0 0
      %846 = vmatpush1.bf16.msra.mxu0 0
      %847 = vmatprep.subr.bf16.mxu0 0
      %848 = vmatpush1.bf16.msra.mxu0 0
      %849 = vmatprep.subr.bf16.mxu0 0
      %850 = vmatpush1.bf16.msra.mxu0 0
      %851 = vmatprep.subr.bf16.mxu0 0
      %852 = vmatpush1.bf16.msra.mxu0 0
      %853 = vmatprep.subr.bf16.mxu0 0
      %854 = vmatpush1.bf16.msra.mxu0 0
      %855 = vmatprep.subr.bf16.mxu0 0
      %856 = vmatpush1.bf16.msra.mxu0 0
      %857 = vmatprep.subr.bf16.mxu0 0
      %858 = vmatpush1.bf16.msra.mxu0 0
      %859 = vmatprep.mubr.bf16.mxu0 0
      %860 = vmatmul.mubr.bf16.gmra.mrb[0].mxu0 %v825
      %v861 = vpop.f32.mrb[0].mxu0
      %v862 = vadd.f32 0.0, %v861
      %v863 = vpop.f32.mrb[0].mxu0
      %v864 = vpop.f32.mrb[0].mxu0
      %v865 = vadd.f32 0.0, %v864
      %v866 = vpop.f32.mrb[0].mxu0
      %867 = vdwg.mxu0
      %869 = vrot.lane.b32.xlu0 %v742, 120
      %v870 = vpop.permute.xlu0 %869
      %872 = vrot.lane.b32.xlu0 %v743, 120
      %v873 = vpop.permute.xlu0 %872
      %v875 = vsel %vm752, %v870, 0
      %v878 = vsel %vm752, %v873, 0
      %880 = vmatprep.subr.bf16.mxu0 0
      %881 = vmatpush1.bf16.xpose.msra.mxu0 %v878
      %882 = vmatprep.subr.bf16.mxu0 0
      %883 = vmatpush1.bf16.xpose.msra.mxu0 0
      %884 = vmatprep.subr.bf16.mxu0 0
      %885 = vmatpush1.bf16.xpose.msra.mxu0 0
      %886 = vmatprep.subr.bf16.mxu0 0
      %887 = vmatpush1.bf16.xpose.msra.mxu0 0
      %888 = vmatprep.subr.bf16.mxu0 0
      %889 = vmatpush1.bf16.xpose.msra.mxu0 0
      %890 = vmatprep.subr.bf16.mxu0 0
      %891 = vmatpush1.bf16.xpose.msra.mxu0 0
      %892 = vmatprep.subr.bf16.mxu0 0
      %893 = vmatpush1.bf16.xpose.msra.mxu0 0
      %894 = vmatprep.subr.bf16.mxu0 0
      %895 = vmatpush1.bf16.xpose.msra.mxu0 0
      %896 = vmatprep.subr.bf16.mxu0 0
      %897 = vmatpush1.bf16.xpose.msra.mxu0 0
      %898 = vmatprep.subr.bf16.mxu0 0
      %899 = vmatpush1.bf16.xpose.msra.mxu0 0
      %900 = vmatprep.subr.bf16.mxu0 0
      %901 = vmatpush1.bf16.xpose.msra.mxu0 0
      %902 = vmatprep.subr.bf16.mxu0 0
      %903 = vmatpush1.bf16.xpose.msra.mxu0 0
      %904 = vmatprep.subr.bf16.mxu0 0
      %905 = vmatpush1.bf16.xpose.msra.mxu0 0
      %906 = vmatprep.subr.bf16.mxu0 0
      %907 = vmatpush1.bf16.xpose.msra.mxu0 0
      %908 = vmatprep.subr.bf16.mxu0 0
      %909 = vmatpush1.bf16.xpose.msra.mxu0 0
      %910 = vmatprep.subr.bf16.mxu0 0
      %911 = vmatpush1.bf16.xpose.msra.mxu0 0
      %912 = vmatprep.mubr.bf16.mxu0 0
      %913 = vmatmul.mubr.bf16.gmra.mrb[0].mxu0 %v875
      %v914 = vpop.f32.mrb[0].mxu0
      %v915 = vadd.f32 %v750, %v914
      %v916 = vpop.f32.mrb[0].mxu0
      %v917 = vpop.f32.mrb[0].mxu0
      %v918 = vadd.f32 %v750, %v917
      %v919 = vpop.f32.mrb[0].mxu0
      %920 = vdwg.mxu0
      %v921 = vsel %vm800, %v915, -inf
      %922 = vmax.xlane.f32.xlu0 %v921
      %v923 = vpop.xlane.xlu0 %922
      %v924 = vsel %vm800, %v918, -inf
      %925 = vmax.xlane.f32.xlu0 %v924
      %v926 = vpop.xlane.xlu0 %925
      %v927 = vsub.f32 %v915, %v923
      %v928 = vsub.f32 %v918, %v926
      %v929 = vmul.f32 %v927, 1.442695
      %v930 = vpow.pop %v929
      %v931 = vmul.f32 %v928, 1.442695
      %v932 = vpow.pop %v931
      %v933 = vsel %vm800, %v930, 0.0
      %934 = vadd.xlane.f32.xlu0 %v933
      %v935 = vpop.xlane.xlu0 %934
      %v936 = vsel %vm800, %v932, 0.0
      %937 = vadd.xlane.f32.xlu0 %v936
      %v938 = vpop.xlane.xlu0 %937
      %v939 = vrcp.pop %v935
      %v940 = vrcp.pop %v938
      %v941 = vmul.f32 %v930, %v939
      %v942 = vmul.f32 %v932, %v940
      %v943 = vpack.c.bf16 %v942, %v941
      %945 = vrot.lane.b32.xlu0 %v744, 120
      %v946 = vpop.permute.xlu0 %945
      %v949 = vsel %vm800, %v943, 0
      %951 = vmatprep.subr.bf16.mxu0 0
      %952 = vmatpush1.bf16.msra.mxu0 %v946
      %953 = vmatprep.subr.bf16.mxu0 0
      %954 = vmatpush1.bf16.msra.mxu0 0
      %955 = vmatprep.subr.bf16.mxu0 0
      %956 = vmatpush1.bf16.msra.mxu0 0
      %957 = vmatprep.subr.bf16.mxu0 0
      %958 = vmatpush1.bf16.msra.mxu0 0
      %959 = vmatprep.subr.bf16.mxu0 0
      %960 = vmatpush1.bf16.msra.mxu0 0
      %961 = vmatprep.subr.bf16.mxu0 0
      %962 = vmatpush1.bf16.msra.mxu0 0
      %963 = vmatprep.subr.bf16.mxu0 0
      %964 = vmatpush1.bf16.msra.mxu0 0
      %965 = vmatprep.subr.bf16.mxu0 0
      %966 = vmatpush1.bf16.msra.mxu0 0
      %967 = vmatprep.subr.bf16.mxu0 0
      %968 = vmatpush1.bf16.msra.mxu0 0
      %969 = vmatprep.subr.bf16.mxu0 0
      %970 = vmatpush1.bf16.msra.mxu0 0
      %971 = vmatprep.subr.bf16.mxu0 0
      %972 = vmatpush1.bf16.msra.mxu0 0
      %973 = vmatprep.subr.bf16.mxu0 0
      %974 = vmatpush1.bf16.msra.mxu0 0
      %975 = vmatprep.subr.bf16.mxu0 0
      %976 = vmatpush1.bf16.msra.mxu0 0
      %977 = vmatprep.subr.bf16.mxu0 0
      %978 = vmatpush1.bf16.msra.mxu0 0
      %979 = vmatprep.subr.bf16.mxu0 0
      %980 = vmatpush1.bf16.msra.mxu0 0
      %981 = vmatprep.subr.bf16.mxu0 0
      %982 = vmatpush1.bf16.msra.mxu0 0
      %983 = vmatprep.mubr.bf16.mxu0 0
      %984 = vmatmul.mubr.bf16.gmra.mrb[0].mxu0 %v949
      %v985 = vpop.f32.mrb[0].mxu0
      %v986 = vadd.f32 0.0, %v985
      %v987 = vpop.f32.mrb[0].mxu0
      %v988 = vpop.f32.mrb[0].mxu0
      %v989 = vadd.f32 0.0, %v988
      %v990 = vpop.f32.mrb[0].mxu0
      %991 = vdwg.mxu0
      %992 = vrot.lane.b32.xlu0 %v742, 112
      %v993 = vpop.permute.xlu0 %992
      %994 = vrot.lane.b32.xlu0 %v743, 112
      %v995 = vpop.permute.xlu0 %994
      %v997 = vsel %vm752, %v993, 0
      %v1000 = vsel %vm752, %v995, 0
      %1002 = vmatprep.subr.bf16.mxu0 0
      %1003 = vmatpush1.bf16.xpose.msra.mxu0 %v1000
      %1004 = vmatprep.subr.bf16.mxu0 0
      %1005 = vmatpush1.bf16.xpose.msra.mxu0 0
      %1006 = vmatprep.subr.bf16.mxu0 0
      %1007 = vmatpush1.bf16.xpose.msra.mxu0 0
      %1008 = vmatprep.subr.bf16.mxu0 0
      %1009 = vmatpush1.bf16.xpose.msra.mxu0 0
      %1010 = vmatprep.subr.bf16.mxu0 0
      %1011 = vmatpush1.bf16.xpose.msra.mxu0 0
      %1012 = vmatprep.subr.bf16.mxu0 0
      %1013 = vmatpush1.bf16.xpose.msra.mxu0 0
      %1014 = vmatprep.subr.bf16.mxu0 0
      %1015 = vmatpush1.bf16.xpose.msra.mxu0 0
      %1016 = vmatprep.subr.bf16.mxu0 0
      %1017 = vmatpush1.bf16.xpose.msra.mxu0 0
      %1018 = vmatprep.subr.bf16.mxu0 0
      %1019 = vmatpush1.bf16.xpose.msra.mxu0 0
      %1020 = vmatprep.subr.bf16.mxu0 0
      %1021 = vmatpush1.bf16.xpose.msra.mxu0 0
      %1022 = vmatprep.subr.bf16.mxu0 0
      %1023 = vmatpush1.bf16.xpose.msra.mxu0 0
      %1024 = vmatprep.subr.bf16.mxu0 0
      %1025 = vmatpush1.bf16.xpose.msra.mxu0 0
      %1026 = vmatprep.subr.bf16.mxu0 0
      %1027 = vmatpush1.bf16.xpose.msra.mxu0 0
      %1028 = vmatprep.subr.bf16.mxu0 0
      %1029 = vmatpush1.bf16.xpose.msra.mxu0 0
      %1030 = vmatprep.subr.bf16.mxu0 0
      %1031 = vmatpush1.bf16.xpose.msra.mxu0 0
      %1032 = vmatprep.subr.bf16.mxu0 0
      %1033 = vmatpush1.bf16.xpose.msra.mxu0 0
      %1034 = vmatprep.mubr.bf16.mxu0 0
      %1035 = vmatmul.mubr.bf16.gmra.mrb[0].mxu0 %v997
      %v1036 = vpop.f32.mrb[0].mxu0
      %v1037 = vadd.f32 %v750, %v1036
      %v1038 = vpop.f32.mrb[0].mxu0
      %v1039 = vpop.f32.mrb[0].mxu0
      %v1040 = vadd.f32 %v750, %v1039
      %v1041 = vpop.f32.mrb[0].mxu0
      %1042 = vdwg.mxu0
      %v1043 = vsel %vm800, %v1037, -inf
      %1044 = vmax.xlane.f32.xlu0 %v1043
      %v1045 = vpop.xlane.xlu0 %1044
      %v1046 = vsel %vm800, %v1040, -inf
      %1047 = vmax.xlane.f32.xlu0 %v1046
      %v1048 = vpop.xlane.xlu0 %1047
      %v1049 = vsub.f32 %v1037, %v1045
      %v1050 = vsub.f32 %v1040, %v1048
      %v1051 = vmul.f32 %v1049, 1.442695
      %v1052 = vpow.pop %v1051
      %v1053 = vmul.f32 %v1050, 1.442695
      %v1054 = vpow.pop %v1053
      %v1055 = vsel %vm800, %v1052, 0.0
      %1056 = vadd.xlane.f32.xlu0 %v1055
      %v1057 = vpop.xlane.xlu0 %1056
      %v1058 = vsel %vm800, %v1054, 0.0
      %1059 = vadd.xlane.f32.xlu0 %v1058
      %v1060 = vpop.xlane.xlu0 %1059
      %v1061 = vrcp.pop %v1057
      %v1062 = vrcp.pop %v1060
      %v1063 = vmul.f32 %v1052, %v1061
      %v1064 = vmul.f32 %v1054, %v1062
      %v1065 = vpack.c.bf16 %v1064, %v1063
      %1066 = vrot.lane.b32.xlu0 %v744, 112
      %v1067 = vpop.permute.xlu0 %1066
      %v1070 = vsel %vm800, %v1065, 0
      %1072 = vmatprep.subr.bf16.mxu0 0
      %1073 = vmatpush1.bf16.msra.mxu0 %v1067
      %1074 = vmatprep.subr.bf16.mxu0 0
      %1075 = vmatpush1.bf16.msra.mxu0 0
      %1076 = vmatprep.subr.bf16.mxu0 0
      %1077 = vmatpush1.bf16.msra.mxu0 0
      %1078 = vmatprep.subr.bf16.mxu0 0
      %1079 = vmatpush1.bf16.msra.mxu0 0
      %1080 = vmatprep.subr.bf16.mxu0 0
      %1081 = vmatpush1.bf16.msra.mxu0 0
      %1082 = vmatprep.subr.bf16.mxu0 0
      %1083 = vmatpush1.bf16.msra.mxu0 0
      %1084 = vmatprep.subr.bf16.mxu0 0
      %1085 = vmatpush1.bf16.msra.mxu0 0
      %1086 = vmatprep.subr.bf16.mxu0 0
      %1087 = vmatpush1.bf16.msra.mxu0 0
      %1088 = vmatprep.subr.bf16.mxu0 0
      %1089 = vmatpush1.bf16.msra.mxu0 0
      %1090 = vmatprep.subr.bf16.mxu0 0
      %1091 = vmatpush1.bf16.msra.mxu0 0
      %1092 = vmatprep.subr.bf16.mxu0 0
      %1093 = vmatpush1.bf16.msra.mxu0 0
      %1094 = vmatprep.subr.bf16.mxu0 0
      %1095 = vmatpush1.bf16.msra.mxu0 0
      %1096 = vmatprep.subr.bf16.mxu0 0
      %1097 = vmatpush1.bf16.msra.mxu0 0
      %1098 = vmatprep.subr.bf16.mxu0 0
      %1099 = vmatpush1.bf16.msra.mxu0 0
      %1100 = vmatprep.subr.bf16.mxu0 0
      %1101 = vmatpush1.bf16.msra.mxu0 0
      %1102 = vmatprep.subr.bf16.mxu0 0
      %1103 = vmatpush1.bf16.msra.mxu0 0
      %1104 = vmatprep.mubr.bf16.mxu0 0
      %1105 = vmatmul.mubr.bf16.gmra.mrb[0].mxu0 %v1070
      %v1106 = vpop.f32.mrb[0].mxu0
      %v1107 = vadd.f32 0.0, %v1106
      %v1108 = vpop.f32.mrb[0].mxu0
      %v1109 = vpop.f32.mrb[0].mxu0
      %v1110 = vadd.f32 0.0, %v1109
      %v1111 = vpop.f32.mrb[0].mxu0
      %1112 = vdwg.mxu0
      %1113 = vrot.lane.b32.xlu0 %v742, 104
      %v1114 = vpop.permute.xlu0 %1113
      %1115 = vrot.lane.b32.xlu0 %v743, 104
      %v1116 = vpop.permute.xlu0 %1115
      %v1118 = vsel %vm752, %v1114, 0
      %v1121 = vsel %vm752, %v1116, 0
      %1123 = vmatprep.subr.bf16.mxu0 0
      %1124 = vmatpush1.bf16.xpose.msra.mxu0 %v1121
      %1125 = vmatprep.subr.bf16.mxu0 0
      %1126 = vmatpush1.bf16.xpose.msra.mxu0 0
      %1127 = vmatprep.subr.bf16.mxu0 0
      %1128 = vmatpush1.bf16.xpose.msra.mxu0 0
      %1129 = vmatprep.subr.bf16.mxu0 0
      %1130 = vmatpush1.bf16.xpose.msra.mxu0 0
      %1131 = vmatprep.subr.bf16.mxu0 0
      %1132 = vmatpush1.bf16.xpose.msra.mxu0 0
      %1133 = vmatprep.subr.bf16.mxu0 0
      %1134 = vmatpush1.bf16.xpose.msra.mxu0 0
      %1135 = vmatprep.subr.bf16.mxu0 0
      %1136 = vmatpush1.bf16.xpose.msra.mxu0 0
      %1137 = vmatprep.subr.bf16.mxu0 0
      %1138 = vmatpush1.bf16.xpose.msra.mxu0 0
      %1139 = vmatprep.subr.bf16.mxu0 0
      %1140 = vmatpush1.bf16.xpose.msra.mxu0 0
      %1141 = vmatprep.subr.bf16.mxu0 0
      %1142 = vmatpush1.bf16.xpose.msra.mxu0 0
      %1143 = vmatprep.subr.bf16.mxu0 0
      %1144 = vmatpush1.bf16.xpose.msra.mxu0 0
      %1145 = vmatprep.subr.bf16.mxu0 0
      %1146 = vmatpush1.bf16.xpose.msra.mxu0 0
      %1147 = vmatprep.subr.bf16.mxu0 0
      %1148 = vmatpush1.bf16.xpose.msra.mxu0 0
      %1149 = vmatprep.subr.bf16.mxu0 0
      %1150 = vmatpush1.bf16.xpose.msra.mxu0 0
      %1151 = vmatprep.subr.bf16.mxu0 0
      %1152 = vmatpush1.bf16.xpose.msra.mxu0 0
      %1153 = vmatprep.subr.bf16.mxu0 0
      %1154 = vmatpush1.bf16.xpose.msra.mxu0 0
      %1155 = vmatprep.mubr.bf16.mxu0 0
      %1156 = vmatmul.mubr.bf16.gmra.mrb[0].mxu0 %v1118
      %v1157 = vpop.f32.mrb[0].mxu0
      %v1158 = vadd.f32 %v750, %v1157
      %v1159 = vpop.f32.mrb[0].mxu0
      %v1160 = vpop.f32.mrb[0].mxu0
      %v1161 = vadd.f32 %v750, %v1160
      %v1162 = vpop.f32.mrb[0].mxu0
      %1163 = vdwg.mxu0
      %v1164 = vsel %vm800, %v1158, -inf
      %1165 = vmax.xlane.f32.xlu0 %v1164
      %v1166 = vpop.xlane.xlu0 %1165
      %v1167 = vsel %vm800, %v1161, -inf
      %1168 = vmax.xlane.f32.xlu0 %v1167
      %v1169 = vpop.xlane.xlu0 %1168
      %v1170 = vsub.f32 %v1158, %v1166
      %v1171 = vsub.f32 %v1161, %v1169
      %v1172 = vmul.f32 %v1170, 1.442695
      %v1173 = vpow.pop %v1172
      %v1174 = vmul.f32 %v1171, 1.442695
      %v1175 = vpow.pop %v1174
      %v1176 = vsel %vm800, %v1173, 0.0
      %1177 = vadd.xlane.f32.xlu0 %v1176
      %v1178 = vpop.xlane.xlu0 %1177
      %v1179 = vsel %vm800, %v1175, 0.0
      %1180 = vadd.xlane.f32.xlu0 %v1179
      %v1181 = vpop.xlane.xlu0 %1180
      %v1182 = vrcp.pop %v1178
      %v1183 = vrcp.pop %v1181
      %v1184 = vmul.f32 %v1173, %v1182
      %v1185 = vmul.f32 %v1175, %v1183
      %v1186 = vpack.c.bf16 %v1185, %v1184
      %1187 = vrot.lane.b32.xlu0 %v744, 104
      %v1188 = vpop.permute.xlu0 %1187
      %v1191 = vsel %vm800, %v1186, 0
      %1193 = vmatprep.subr.bf16.mxu0 0
      %1194 = vmatpush1.bf16.msra.mxu0 %v1188
      %1195 = vmatprep.subr.bf16.mxu0 0
      %1196 = vmatpush1.bf16.msra.mxu0 0
      %1197 = vmatprep.subr.bf16.mxu0 0
      %1198 = vmatpush1.bf16.msra.mxu0 0
      %1199 = vmatprep.subr.bf16.mxu0 0
      %1200 = vmatpush1.bf16.msra.mxu0 0
      %1201 = vmatprep.subr.bf16.mxu0 0
      %1202 = vmatpush1.bf16.msra.mxu0 0
      %1203 = vmatprep.subr.bf16.mxu0 0
      %1204 = vmatpush1.bf16.msra.mxu0 0
      %1205 = vmatprep.subr.bf16.mxu0 0
      %1206 = vmatpush1.bf16.msra.mxu0 0
      %1207 = vmatprep.subr.bf16.mxu0 0
      %1208 = vmatpush1.bf16.msra.mxu0 0
      %1209 = vmatprep.subr.bf16.mxu0 0
      %1210 = vmatpush1.bf16.msra.mxu0 0
      %1211 = vmatprep.subr.bf16.mxu0 0
      %1212 = vmatpush1.bf16.msra.mxu0 0
      %1213 = vmatprep.subr.bf16.mxu0 0
      %1214 = vmatpush1.bf16.msra.mxu0 0
      %1215 = vmatprep.subr.bf16.mxu0 0
      %1216 = vmatpush1.bf16.msra.mxu0 0
      %1217 = vmatprep.subr.bf16.mxu0 0
      %1218 = vmatpush1.bf16.msra.mxu0 0
      %1219 = vmatprep.subr.bf16.mxu0 0
      %1220 = vmatpush1.bf16.msra.mxu0 0
      %1221 = vmatprep.subr.bf16.mxu0 0
      %1222 = vmatpush1.bf16.msra.mxu0 0
      %1223 = vmatprep.subr.bf16.mxu0 0
      %1224 = vmatpush1.bf16.msra.mxu0 0
      %1225 = vmatprep.mubr.bf16.mxu0 0
      %1226 = vmatmul.mubr.bf16.gmra.mrb[0].mxu0 %v1191
      %v1227 = vpop.f32.mrb[0].mxu0
      %v1228 = vadd.f32 0.0, %v1227
      %v1229 = vpop.f32.mrb[0].mxu0
      %v1230 = vpop.f32.mrb[0].mxu0
      %v1231 = vadd.f32 0.0, %v1230
      %v1232 = vpop.f32.mrb[0].mxu0
      %1233 = vdwg.mxu0
      %1236 = vrot.lane.b32.xlu0 %v986, 8
      %v1237 = vpop.permute.xlu0 %1236
      %1238 = vrot.lane.b32.xlu0 %v989, 8
      %v1239 = vpop.permute.xlu0 %1238
      %1244 = vrot.lane.b32.xlu0 %v1107, 16
      %v1245 = vpop.permute.xlu0 %1244
      %1246 = vrot.lane.b32.xlu0 %v1110, 16
      %v1247 = vpop.permute.xlu0 %1246
      %1252 = vrot.lane.b32.xlu0 %v1228, 24
      %v1253 = vpop.permute.xlu0 %1252
      %1254 = vrot.lane.b32.xlu0 %v1231, 24
      %v1255 = vpop.permute.xlu0 %1254
      %v1258 = vsel %vm752, %v862, %v1237
      %v1259 = vsel %vm752, %v865, %v1239
      %v1260 = vsel %vm800, %v1258, %v1245
      %v1261 = vsel %vm800, %v1259, %v1247
      %vm1262 = vcmask 195584
      %v1263 = vsel %vm1262, %v1260, %v1253
      %v1264 = vsel %vm1262, %v1261, %v1255
      %v1265 = vpack.c.bf16 %v1264, %v1263
      %v1266 = vld [vmem:[%s7] sm:$0xf]
      %v1267 = vld [vmem:[%s7 + $0x4] sm:$0xf]
      %v1268 = vld [vmem:[%s7 + $0x8] sm:$0xf]
      %v1269 = vld [vmem:[%s7 + $0xc] sm:$0xf]
      %v1270 = vld [vmem:[%s8] sm:$0x1]
      %v1272 = vlaneseq
      %v1273 = vshrl.u32 %v1272, 7
      %v1274 = vsub.s32 0, %v1273
      %v1275 = vrot.slane %v1270, %v1274
      %v1281 = vunpack.c.l.b16 %v1266
      %v1282 = vunpack.c.l.b16 %v1267
      %v1283 = vunpack.c.l.b16 %v1268
      %v1284 = vunpack.c.l.b16 %v1269
      %v1285 = vpack.c.b16 %v1282, %v1281
      %v1286 = vpack.c.b16 %v1284, %v1283
      %v1290 = vsel %vm697, %v1265, 0
      %1292 = vmatprep.subr.bf16.mxu0 0
      %1293 = vmatpush1.bf16.msra.mxu0 %v1285
      %1294 = vmatprep.subr.bf16.mxu0 0
      %1295 = vmatpush1.bf16.msra.mxu0 %v1286
      %1296 = vmatprep.subr.bf16.mxu0 0
      %1297 = vmatpush1.bf16.msra.mxu0 0
      %1298 = vmatprep.subr.bf16.mxu0 0
      %1299 = vmatpush1.bf16.msra.mxu0 0
      %1300 = vmatprep.subr.bf16.mxu0 0
      %1301 = vmatpush1.bf16.msra.mxu0 0
      %1302 = vmatprep.subr.bf16.mxu0 0
      %1303 = vmatpush1.bf16.msra.mxu0 0
      %1304 = vmatprep.subr.bf16.mxu0 0
      %1305 = vmatpush1.bf16.msra.mxu0 0
      %1306 = vmatprep.subr.bf16.mxu0 0
      %1307 = vmatpush1.bf16.msra.mxu0 0
      %1308 = vmatprep.subr.bf16.mxu0 0
      %1309 = vmatpush1.bf16.msra.mxu0 0
      %1310 = vmatprep.subr.bf16.mxu0 0
      %1311 = vmatpush1.bf16.msra.mxu0 0
      %1312 = vmatprep.subr.bf16.mxu0 0
      %1313 = vmatpush1.bf16.msra.mxu0 0
      %1314 = vmatprep.subr.bf16.mxu0 0
      %1315 = vmatpush1.bf16.msra.mxu0 0
      %1316 = vmatprep.subr.bf16.mxu0 0
      %1317 = vmatpush1.bf16.msra.mxu0 0
      %1318 = vmatprep.subr.bf16.mxu0 0
      %1319 = vmatpush1.bf16.msra.mxu0 0
      %1320 = vmatprep.subr.bf16.mxu0 0
      %1321 = vmatpush1.bf16.msra.mxu0 0
      %1322 = vmatprep.subr.bf16.mxu0 0
      %1323 = vmatpush1.bf16.msra.mxu0 0
      %1324 = vmatprep.mubr.bf16.mxu0 0
      %1325 = vmatmul.mubr.bf16.gmra.mrb[0].mxu0 %v1290
      %v1326 = vpop.f32.mrb[0].mxu0
      %v1327 = vadd.f32 %v1275, %v1326
      %v1328 = vpop.f32.mrb[0].mxu0
      %v1329 = vpop.f32.mrb[0].mxu0
      %v1330 = vadd.f32 %v1275, %v1329
      %v1331 = vpop.f32.mrb[0].mxu0
      %1332 = vdwg.mxu0
      %v1333 = vadd.f32 %v670, %v1327
      %v1334 = vadd.f32 %v671, %v1330
      %v1335 = vsel %vm697, %v1333, 0.0
      %1336 = vadd.xlane.f32.xlu0 %v1335
      %v1337 = vpop.xlane.xlu0 %1336
      %v1338 = vsel %vm697, %v1334, 0.0
      %1339 = vadd.xlane.f32.xlu0 %v1338
      %v1340 = vpop.xlane.xlu0 %1339
      %v1341 = vrcp.pop 32.0
      %v1342 = vmul.f32 %v1337, %v1341
      %v1343 = vmul.f32 %v1340, %v1341
      %v1344 = vsub.f32 %v1333, %v1342
      %v1345 = vsub.f32 %v1334, %v1343
      %v1346 = vmul.f32 %v1344, %v1344
      %v1347 = vmul.f32 %v1345, %v1345
      %v1348 = vsel %vm697, %v1346, 0.0
      %1349 = vadd.xlane.f32.xlu0 %v1348
      %v1350 = vpop.xlane.xlu0 %1349
      %v1351 = vsel %vm697, %v1347, 0.0
      %1352 = vadd.xlane.f32.xlu0 %v1351
      %v1353 = vpop.xlane.xlu0 %1352
      %v1354 = vmul.f32 %v1350, %v1341
      %v1355 = vmul.f32 %v1353, %v1341
      %v1356 = vadd.f32 %v1354, 1e-05
      %v1357 = vadd.f32 %v1355, 1e-05
      %v1358 = vrsqrt.pop %v1356
      %v1359 = vrsqrt.pop %v1357
      %v1360 = vmul.f32 %v1344, %v1358
      %v1361 = vmul.f32 %v1345, %v1359
      %v1362 = vld [vmem:[%s9] sm:$0x1]
      %v1364 = vlaneseq
      %v1365 = vshrl.u32 %v1364, 7
      %v1366 = vsub.s32 0, %v1365
      %v1367 = vrot.slane %v1362, %v1366
      %v1369 = vmul.f32 %v1360, %v1367
      %v1370 = vmul.f32 %v1361, %v1367
      %v1371 = vld [vmem:[%s10] sm:$0x1]
      %v1373 = vlaneseq
      %v1374 = vshrl.u32 %v1373, 7
      %v1375 = vsub.s32 0, %v1374
      %v1376 = vrot.slane %v1371, %v1375
      %v1378 = vadd.f32 %v1369, %v1376
      %v1379 = vadd.f32 %v1370, %v1376
      %v1380 = vpack.c.bf16 %v1379, %v1378
      %v1382 = vunpack.c.l.b16 %v1380
      %v1383 = vunpack.c.h.b16 %v1380
      %v1384 = vpack.c.b16 %v1382, %v1382
      %v1385 = vpack.c.b16 %v1383, %v1383
      %vm1388 = vcmask 257024
      %1389 = vst.msk [vmem:[%s514] sm:$0xf] %vm1388, %v1384
      %1390 = vst.msk [vmem:[%s514 + $0x4] sm:$0xf] %vm1388, %v1385
      %s1391 = smul.u32 2, %s27
      %p1392 = scmp.lt.s32.totalorder %s26, 1
      %s1393 = scalar_select %p1392, %s26, 1
      %p1394 = scmp.lt.s32.totalorder %s1391, 1
      %s1395 = scalar_select %p1394, %s1391, 1
      %s1396 = smul.addr %s1393, 2
      %s1397 = sadd.s32 %s1395, %s1396
      %s1398 = smul.addr %s1397, 4
      %s1399 = scalar_lea.vmem %s11, %s1398
      // Predicated region
      $region69: #{transformer_forward.11} parent=63 // pred_check
        %p1400 = pneg %p314
      $region70: #{transformer_forward.11} parent=63 // pred_check_branch
        %1402 = sbr.rel (%p1400) target = $region72
      $region71: #{transformer_forward.11} parent=63 // pred_region
        %s1403 = smul.u32 2, %s27
      $region72: #{transformer_forward.11} parent=63 // pred_fallthru
        _
    $region64: #{transformer_forward.11} parent=5 // pred_fallthru
      _
    %p1404 = scmp.le.s32.totalorder 2, %s17
    // Predicated region
    $region73: #{transformer_forward.11} parent=5 // pred_check
      %p1405 = pneg %p1404
    $region74: #{transformer_forward.11} parent=5 // pred_check_branch
      %1407 = sbr.rel (%p1405) target = $region76
    $region75: #{transformer_forward.11} parent=5 // pred_region
      %s1408 = ssub.s32 %s17, 2
      // Predicated region
      $region77: #{transformer_forward.11} parent=75 // pred_check
        %p1409 = pneg %p320
      $region78: #{transformer_forward.11} parent=75 // pred_check_branch
        %1411 = sbr.rel (%p1409) target = $region80
      $region79: #{transformer_forward.11} parent=75 // pred_region
        %s1412 = smul.u32 2, %s29
        %p1413 = scmp.lt.s32.totalorder %s28, 1
        %s1414 = scalar_select %p1413, %s28, 1
        %p1415 = scmp.lt.s32.totalorder %s1412, 1
        %s1416 = scalar_select %p1415, %s1412, 1
        %s1417 = smul.addr %s1414, 2
        %s1418 = sadd.s32 %s1416, %s1417
        %s1419 = smul.addr %s1418, 4
        %s1420 = scalar_lea.vmem %s11, %s1419
      $region80: #{transformer_forward.11} parent=75 // pred_fallthru
        _
    $region76: #{transformer_forward.11} parent=5 // pred_fallthru
      _
  $region6: #{transformer_forward.11} parent=0 // loop_footer
    %s21 = sadd.s32 1, %s17
  $region7: #{transformer_forward.11} parent=0 // loop_footer_branch
    %16 = sbr.rel target = $region3
  $region8: #{transformer_forward.11} parent=0 // loop_exit
    _

// kernel: transformer_forward.12
$region0: #{transformer_forward.12}
  #allocation0 [shape = 'u32[]', space=smem, size = 0x4, offset = 0x4, fixed_abs, tag = 'smem constant byte address 0x4 - core index']
  #allocation1 [shape = 'u32[144,128]{1,0:T(1,128)}', space=vmem, size = 0x12000, scoped, tag = 'internal scratch']
  %s0 = inlined_call_operand.vmem [shape: bf16[32,32], index: 0, kind: input, shape index: {}]
  %s1 = inlined_call_operand.vmem [shape: bf16[32,64], index: 1, kind: input, shape index: {}]
  %s2 = inlined_call_operand.vmem [shape: f32[1,64], index: 2, kind: input, shape index: {}]
  %s3 = inlined_call_operand.vmem [shape: bf16[64,32], index: 3, kind: input, shape index: {}]
  %s4 = inlined_call_operand.vmem [shape: f32[1,32], index: 4, kind: input, shape index: {}]
  %s5 = inlined_call_operand.vmem [shape: f32[1,32], index: 5, kind: input, shape index: {}]
  %s6 = inlined_call_operand.vmem [shape: f32[1,32], index: 6, kind: input, shape index: {}]
  %s7 = inlined_call_operand.vmem [shape: bf16[32,32], index: 7, kind: output, shape index: {}]
  %s8 = sld [smem:[#allocation0]]
  $region38: #{transformer_forward.12} parent=0
    _
  %s10 = ssub.s32 1, %s8
  %s11 = scalar_select 0, %s10, %s8
  // Predicated region
  $region2: #{transformer_forward.12} parent=0 // pred_check
    _
  $region3: #{transformer_forward.12} parent=0 // pred_check_branch
    %13 = sbr.rel (0) target = $region5
  $region4: #{transformer_forward.12} parent=0 // pred_region
    _
  $region5: #{transformer_forward.12} parent=0 // pred_fallthru
    _
  // Predicated region
  $region6: #{transformer_forward.12} parent=0 // pred_check
    _
  $region7: #{transformer_forward.12} parent=0 // pred_check_branch
    %15 = sbr.rel (0) target = $region9
  $region8: #{transformer_forward.12} parent=0 // pred_region
    _
  $region9: #{transformer_forward.12} parent=0 // pred_fallthru
    _
  // Predicated region
  $region10: #{transformer_forward.12} parent=0 // pred_check
    _
  $region11: #{transformer_forward.12} parent=0 // pred_check_branch
    %17 = sbr.rel (0) target = $region13
  $region12: #{transformer_forward.12} parent=0 // pred_region
    _
  $region13: #{transformer_forward.12} parent=0 // pred_fallthru
    _
  // Predicated region
  $region14: #{transformer_forward.12} parent=0 // pred_check
    _
  $region15: #{transformer_forward.12} parent=0 // pred_check_branch
    %19 = sbr.rel (0) target = $region17
  $region16: #{transformer_forward.12} parent=0 // pred_region
    _
  $region17: #{transformer_forward.12} parent=0 // pred_fallthru
    _
  // Predicated region
  $region18: #{transformer_forward.12} parent=0 // pred_check
    _
  $region19: #{transformer_forward.12} parent=0 // pred_check_branch
    %21 = sbr.rel (0) target = $region21
  $region20: #{transformer_forward.12} parent=0 // pred_region
    _
  $region21: #{transformer_forward.12} parent=0 // pred_fallthru
    _
  // Predicated region
  $region22: #{transformer_forward.12} parent=0 // pred_check
    _
  $region23: #{transformer_forward.12} parent=0 // pred_check_branch
    %23 = sbr.rel (0) target = $region25
  $region24: #{transformer_forward.12} parent=0 // pred_region
    _
  $region25: #{transformer_forward.12} parent=0 // pred_fallthru
    _
  // Predicated region
  $region26: #{transformer_forward.12} parent=0 // pred_check
    _
  $region27: #{transformer_forward.12} parent=0 // pred_check_branch
    %25 = sbr.rel (0) target = $region29
  $region28: #{transformer_forward.12} parent=0 // pred_region
    _
  $region29: #{transformer_forward.12} parent=0 // pred_fallthru
    _
  %v27 = vld [vmem:[%s0] sm:$0xf]
  %v28 = vld [vmem:[%s0 + $0x4] sm:$0xf]
  %v29 = vld [vmem:[%s0 + $0x8] sm:$0xf]
  %v30 = vld [vmem:[%s0 + $0xc] sm:$0xf]
  %v31 = vld [vmem:[%s1] sm:$0xf]
  %v32 = vld [vmem:[%s1 + $0x4] sm:$0xf]
  %v33 = vld [vmem:[%s1 + $0x8] sm:$0xf]
  %v34 = vld [vmem:[%s1 + $0xc] sm:$0xf]
  %v35 = vld [vmem:[%s2] sm:$0x1]
  %v37 = vlaneseq
  %v38 = vshrl.u32 %v37, 7
  %v39 = vsub.s32 0, %v38
  %v40 = vrot.slane %v35, %v39
  %v46 = vunpack.c.l.b16 %v27
  %v47 = vunpack.c.l.b16 %v28
  %v48 = vunpack.c.l.b16 %v29
  %v49 = vunpack.c.l.b16 %v30
  %v50 = vpack.c.b16 %v47, %v46
  %v51 = vpack.c.b16 %v49, %v48
  %v56 = vunpack.c.l.b16 %v31
  %v57 = vunpack.c.l.b16 %v32
  %v58 = vunpack.c.l.b16 %v33
  %v59 = vunpack.c.l.b16 %v34
  %v60 = vpack.c.b16 %v57, %v56
  %v61 = vpack.c.b16 %v59, %v58
  %vm64 = vcmask 261120
  %v66 = vsel %vm64, %v50, 0
  %v69 = vsel %vm64, %v51, 0
  %71 = vmatprep.subr.bf16.mxu0 0
  %72 = vmatpush1.bf16.msra.mxu0 %v60
  %73 = vmatprep.subr.bf16.mxu0 0
  %74 = vmatpush1.bf16.msra.mxu0 %v61
  %75 = vmatprep.subr.bf16.mxu0 0
  %76 = vmatpush1.bf16.msra.mxu0 0
  %77 = vmatprep.subr.bf16.mxu0 0
  %78 = vmatpush1.bf16.msra.mxu0 0
  %79 = vmatprep.subr.bf16.mxu0 0
  %80 = vmatpush1.bf16.msra.mxu0 0
  %81 = vmatprep.subr.bf16.mxu0 0
  %82 = vmatpush1.bf16.msra.mxu0 0
  %83 = vmatprep.subr.bf16.mxu0 0
  %84 = vmatpush1.bf16.msra.mxu0 0
  %85 = vmatprep.subr.bf16.mxu0 0
  %86 = vmatpush1.bf16.msra.mxu0 0
  %87 = vmatprep.subr.bf16.mxu0 0
  %88 = vmatpush1.bf16.msra.mxu0 0
  %89 = vmatprep.subr.bf16.mxu0 0
  %90 = vmatpush1.bf16.msra.mxu0 0
  %91 = vmatprep.subr.bf16.mxu0 0
  %92 = vmatpush1.bf16.msra.mxu0 0
  %93 = vmatprep.subr.bf16.mxu0 0
  %94 = vmatpush1.bf16.msra.mxu0 0
  %95 = vmatprep.subr.bf16.mxu0 0
  %96 = vmatpush1.bf16.msra.mxu0 0
  %97 = vmatprep.subr.bf16.mxu0 0
  %98 = vmatpush1.bf16.msra.mxu0 0
  %99 = vmatprep.subr.bf16.mxu0 0
  %100 = vmatpush1.bf16.msra.mxu0 0
  %101 = vmatprep.subr.bf16.mxu0 0
  %102 = vmatpush1.bf16.msra.mxu0 0
  %103 = vmatprep.mubr.bf16.mxu0 0
  %104 = vmatmul.mubr.bf16.gmra.mrb[0].mxu0 %v66
  %v105 = vpop.f32.mrb[0].mxu0
  %v106 = vadd.f32 %v40, %v105
  %v107 = vpop.f32.mrb[0].mxu0
  %v108 = vpop.f32.mrb[0].mxu0
  %v109 = vadd.f32 %v40, %v108
  %v110 = vpop.f32.mrb[0].mxu0
  %111 = vmatprep.mubr.bf16.mxu0 0
  %112 = vmatmul.mubr.bf16.gmra.mrb[0].mxu0 %v69
  %v113 = vpop.f32.mrb[0].mxu0
  %v114 = vadd.f32 %v40, %v113
  %v115 = vpop.f32.mrb[0].mxu0
  %v116 = vpop.f32.mrb[0].mxu0
  %v117 = vadd.f32 %v40, %v116
  %v118 = vpop.f32.mrb[0].mxu0
  %119 = vdwg.mxu0
  %v120 = vmax.f32 %v106, 0.0
  %v121 = vmax.f32 %v109, 0.0
  %v122 = vmax.f32 %v114, 0.0
  %v123 = vmax.f32 %v117, 0.0
  %v124 = vpack.c.bf16 %v121, %v120
  %v125 = vpack.c.bf16 %v123, %v122
  %v126 = vld [vmem:[%s3] sm:$0xf]
  %v127 = vld [vmem:[%s3 + $0x4] sm:$0xf]
  %v128 = vld [vmem:[%s3 + $0x8] sm:$0xf]
  %v129 = vld [vmem:[%s3 + $0xc] sm:$0xf]
  %v130 = vld [vmem:[%s3 + $0x10] sm:$0xf]
  %v131 = vld [vmem:[%s3 + $0x14] sm:$0xf]
  %v132 = vld [vmem:[%s3 + $0x18] sm:$0xf]
  %v133 = vld [vmem:[%s3 + $0x1c] sm:$0xf]
  %v134 = vld [vmem:[%s4] sm:$0x1]
  %v136 = vlaneseq
  %v137 = vshrl.u32 %v136, 7
  %v138 = vsub.s32 0, %v137
  %v139 = vrot.slane %v134, %v138
  %v149 = vunpack.c.l.b16 %v126
  %v150 = vunpack.c.l.b16 %v127
  %v151 = vunpack.c.l.b16 %v128
  %v152 = vunpack.c.l.b16 %v129
  %v153 = vunpack.c.l.b16 %v130
  %v154 = vunpack.c.l.b16 %v131
  %v155 = vunpack.c.l.b16 %v132
  %v156 = vunpack.c.l.b16 %v133
  %v157 = vpack.c.b16 %v150, %v149
  %v158 = vpack.c.b16 %v152, %v151
  %v159 = vpack.c.b16 %v154, %v153
  %v160 = vpack.c.b16 %v156, %v155
  %vm165 = vcmask 523264
  %v167 = vsel %vm165, %v124, 0
  %v170 = vsel %vm165, %v125, 0
  %172 = vmatprep.subr.bf16.mxu0 0
  %173 = vmatpush1.bf16.msra.mxu0 %v157
  %174 = vmatprep.subr.bf16.mxu0 0
  %175 = vmatpush1.bf16.msra.mxu0 %v158
  %176 = vmatprep.subr.bf16.mxu0 0
  %177 = vmatpush1.bf16.msra.mxu0 %v159
  %178 = vmatprep.subr.bf16.mxu0 0
  %179 = vmatpush1.bf16.msra.mxu0 %v160
  %180 = vmatprep.subr.bf16.mxu0 0
  %181 = vmatpush1.bf16.msra.mxu0 0
  %182 = vmatprep.subr.bf16.mxu0 0
  %183 = vmatpush1.bf16.msra.mxu0 0
  %184 = vmatprep.subr.bf16.mxu0 0
  %185 = vmatpush1.bf16.msra.mxu0 0
  %186 = vmatprep.subr.bf16.mxu0 0
  %187 = vmatpush1.bf16.msra.mxu0 0
  %188 = vmatprep.subr.bf16.mxu0 0
  %189 = vmatpush1.bf16.msra.mxu0 0
  %190 = vmatprep.subr.bf16.mxu0 0
  %191 = vmatpush1.bf16.msra.mxu0 0
  %192 = vmatprep.subr.bf16.mxu0 0
  %193 = vmatpush1.bf16.msra.mxu0 0
  %194 = vmatprep.subr.bf16.mxu0 0
  %195 = vmatpush1.bf16.msra.mxu0 0
  %196 = vmatprep.subr.bf16.mxu0 0
  %197 = vmatpush1.bf16.msra.mxu0 0
  %198 = vmatprep.subr.bf16.mxu0 0
  %199 = vmatpush1.bf16.msra.mxu0 0
  %200 = vmatprep.subr.bf16.mxu0 0
  %201 = vmatpush1.bf16.msra.mxu0 0
  %202 = vmatprep.subr.bf16.mxu0 0
  %203 = vmatpush1.bf16.msra.mxu0 0
  %204 = vmatprep.mubr.bf16.mxu0 0
  %205 = vmatmul.mubr.bf16.gmra.mrb[0].mxu0 %v167
  %v206 = vpop.f32.mrb[0].mxu0
  %v207 = vadd.f32 %v139, %v206
  %v208 = vpop.f32.mrb[0].mxu0
  %v209 = vpop.f32.mrb[0].mxu0
  %v210 = vadd.f32 %v139, %v209
  %v211 = vpop.f32.mrb[0].mxu0
  %212 = vmatprep.mubr.bf16.mxu0 0
  %213 = vmatmul.mubr.bf16.gmra.mrb[0].mxu0 %v170
  %v214 = vpop.f32.mrb[0].mxu0
  %v215 = vadd.f32 %v139, %v214
  %v216 = vpop.f32.mrb[0].mxu0
  %v217 = vpop.f32.mrb[0].mxu0
  %v218 = vadd.f32 %v139, %v217
  %v219 = vpop.f32.mrb[0].mxu0
  %220 = vdwg.mxu0
  %v221 = vunpack.c.l.bf16 %v27
  %v222 = vunpack.c.l.bf16 %v28
  %v223 = vunpack.c.l.bf16 %v29
  %v224 = vunpack.c.l.bf16 %v30
  %v225 = vadd.f32 %v221, %v207
  %v226 = vadd.f32 %v222, %v210
  %v227 = vadd.f32 %v223, %v215
  %v228 = vadd.f32 %v224, %v218
  %v229 = vsel %vm64, %v225, 0.0
  %230 = vadd.xlane.f32.xlu0 %v229
  %v231 = vpop.xlane.xlu0 %230
  %v232 = vsel %vm64, %v226, 0.0
  %233 = vadd.xlane.f32.xlu0 %v232
  %v234 = vpop.xlane.xlu0 %233
  %v235 = vsel %vm64, %v227, 0.0
  %236 = vadd.xlane.f32.xlu0 %v235
  %v237 = vpop.xlane.xlu0 %236
  %v238 = vsel %vm64, %v228, 0.0
  %239 = vadd.xlane.f32.xlu0 %v238
  %v240 = vpop.xlane.xlu0 %239
  %v241 = vrcp.pop 32.0
  %v242 = vmul.f32 %v231, %v241
  %v243 = vmul.f32 %v234, %v241
  %v244 = vmul.f32 %v237, %v241
  %v245 = vmul.f32 %v240, %v241
  %v246 = vsub.f32 %v225, %v242
  %v247 = vsub.f32 %v226, %v243
  %v248 = vsub.f32 %v227, %v244
  %v249 = vsub.f32 %v228, %v245
  %v250 = vmul.f32 %v246, %v246
  %v251 = vmul.f32 %v247, %v247
  %v252 = vmul.f32 %v248, %v248
  %v253 = vmul.f32 %v249, %v249
  %v254 = vsel %vm64, %v250, 0.0
  %255 = vadd.xlane.f32.xlu0 %v254
  %v256 = vpop.xlane.xlu0 %255
  %v257 = vsel %vm64, %v251, 0.0
  %258 = vadd.xlane.f32.xlu0 %v257
  %v259 = vpop.xlane.xlu0 %258
  %v260 = vsel %vm64, %v252, 0.0
  %261 = vadd.xlane.f32.xlu0 %v260
  %v262 = vpop.xlane.xlu0 %261
  %v263 = vsel %vm64, %v253, 0.0
  %264 = vadd.xlane.f32.xlu0 %v263
  %v265 = vpop.xlane.xlu0 %264
  %v266 = vmul.f32 %v256, %v241
  %v267 = vmul.f32 %v259, %v241
  %v268 = vmul.f32 %v262, %v241
  %v269 = vmul.f32 %v265, %v241
  %v270 = vadd.f32 %v266, 1e-05
  %v271 = vadd.f32 %v267, 1e-05
  %v272 = vadd.f32 %v268, 1e-05
  %v273 = vadd.f32 %v269, 1e-05
  %v274 = vrsqrt.pop %v270
  %v275 = vrsqrt.pop %v271
  %v276 = vrsqrt.pop %v272
  %v277 = vrsqrt.pop %v273
  %v278 = vmul.f32 %v246, %v274
  %v279 = vmul.f32 %v247, %v275
  %v280 = vmul.f32 %v248, %v276
  %v281 = vmul.f32 %v249, %v277
  %v282 = vld [vmem:[%s5] sm:$0x1]
  %v284 = vlaneseq
  %v285 = vshrl.u32 %v284, 7
  %v286 = vsub.s32 0, %v285
  %v287 = vrot.slane %v282, %v286
  %v289 = vmul.f32 %v278, %v287
  %v290 = vmul.f32 %v279, %v287
  %v291 = vmul.f32 %v280, %v287
  %v292 = vmul.f32 %v281, %v287
  %v293 = vld [vmem:[%s6] sm:$0x1]
  %v295 = vlaneseq
  %v296 = vshrl.u32 %v295, 7
  %v297 = vsub.s32 0, %v296
  %v298 = vrot.slane %v293, %v297
  %v300 = vadd.f32 %v289, %v298
  %v301 = vadd.f32 %v290, %v298
  %v302 = vadd.f32 %v291, %v298
  %v303 = vadd.f32 %v292, %v298
  %v304 = vpack.c.bf16 %v301, %v300
  %v305 = vpack.c.bf16 %v303, %v302
  %v308 = vunpack.c.l.b16 %v304
  %v309 = vunpack.c.h.b16 %v304
  %v310 = vunpack.c.l.b16 %v305
  %v311 = vunpack.c.h.b16 %v305
  %v312 = vpack.c.b16 %v308, %v308
  %v313 = vpack.c.b16 %v309, %v309
  %v314 = vpack.c.b16 %v310, %v310
  %v315 = vpack.c.b16 %v311, %v311
  %vm320 = vcmask 257024
  %321 = vst.msk [vmem:[%s7] sm:$0xf] %vm320, %v312
  %322 = vst.msk [vmem:[%s7 + $0x4] sm:$0xf] %vm320, %v313
  %323 = vst.msk [vmem:[%s7 + $0x8] sm:$0xf] %vm320, %v314
  %324 = vst.msk [vmem:[%s7 + $0xc] sm:$0xf] %vm320, %v315
  // Predicated region
  $region30: #{transformer_forward.12} parent=0 // pred_check
    _
  $region31: #{transformer_forward.12} parent=0 // pred_check_branch
    %326 = sbr.rel (0) target = $region33
  $region32: #{transformer_forward.12} parent=0 // pred_region
    _
  $region33: #{transformer_forward.12} parent=0 // pred_fallthru
    _
  // Predicated region
  $region34: #{transformer_forward.12} parent=0 // pred_check
    _
  $region35: #{transformer_forward.12} parent=0 // pred_check_branch
    %328 = sbr.rel (0) target = $region37
  $region36: #{transformer_forward.12} parent=0 // pred_region
    _
  $region37: #{transformer_forward.12} parent=0 // pred_fallthru
    _

// kernel: transformer_forward.15
$region0: #{transformer_forward.15}
  #allocation0 [shape = 'u32[]', space=smem, size = 0x4, offset = 0x4, fixed_abs, tag = 'smem constant byte address 0x4 - core index']
  #allocation1 [shape = 'u32[144,128]{1,0:T(1,128)}', space=vmem, size = 0x12000, scoped, tag = 'internal scratch']
  #allocation2 [shape = 'bf16[8,32]{1,0:T(8,128)(2,1)}', space=vmem, size = 0x800, scoped, tag = 'scratch operand']
  #allocation3 [shape = 'bf16[8,32]{1,0:T(8,128)(2,1)}', space=vmem, size = 0x800, scoped, tag = 'scratch operand']
  %s0 = inlined_call_operand.vmem [shape: bf16[2,8,32], index: 0, kind: input, shape index: {}, may-alias: {0,2}]
  %s1 = inlined_call_operand.vmem [shape: bf16[1,8,32], index: 1, kind: input, shape index: {}, may-alias: {1,3}]
  %s2 = inlined_call_operand.vmem [shape: bf16[2,8,32], index: 2, kind: input, shape index: {}, may-alias: {0,2}]
  %s3 = inlined_call_operand.vmem [shape: bf16[1,8,32], index: 3, kind: input, shape index: {}, may-alias: {1,3}]
  %s4 = inlined_call_operand.vmem [shape: bf16[32,96], index: 4, kind: input, shape index: {}]
  %s5 = inlined_call_operand.vmem [shape: f32[1,96], index: 5, kind: input, shape index: {}]
  %s6 = inlined_call_operand.vmem [shape: bf16[32,32], index: 6, kind: input, shape index: {}]
  %s7 = inlined_call_operand.vmem [shape: f32[1,32], index: 7, kind: input, shape index: {}]
  %s8 = inlined_call_operand.vmem [shape: f32[1,32], index: 8, kind: input, shape index: {}]
  %s9 = inlined_call_operand.vmem [shape: f32[1,32], index: 9, kind: input, shape index: {}]
  %s10 = inlined_call_operand.vmem [shape: bf16[2,8,32], index: 10, kind: output, shape index: {}]
  %s11 = sld [smem:[#allocation0]]
  $region77: #{transformer_forward.15} parent=0
    _
  %s13 = ssub.s32 1, %s11
  %s14 = scalar_select 0, %s13, %s11
  loop: start=0, step=1, limit=4
  $region2: #{transformer_forward.15} parent=0 // loop_pre_header
    _
  $region3: #{transformer_forward.15} parent=0 // loop_header
    %s16 = sphi 0, %s20
    %p17 = scmp.ge.s32.totalorder %s16, 4
    %s23 = sphi 0, %s35
    %s24 = sphi 0, %s31
    %s25 = sphi 0, %s23
    %s26 = sphi 0, %s24
    %s27 = sphi 0, %s25
    %s28 = sphi 0, %s26
    %s40 = sphi 0, %s42
    %s43 = sphi 0, %s40
    %s44 = sphi 0, %s43
    %s60 = sphi 0, %s44
    %s66 = sphi 0, %s68
    %s69 = sphi 0, %s66
    %s70 = sphi 0, %s69
    %s86 = sphi 0, %s70
    %s92 = sphi 0, %s94
    %s95 = sphi 0, %s92
    %s96 = sphi 0, %s95
    %s112 = sphi 0, %s96
    %s116 = sphi 0, %s116
    %s118 = sphi 0, %s116
    %s119 = sphi 0, %s118
    %s133 = sphi 0, %s119
    %s137 = sphi 0, %s137
    %s139 = sphi 0, %s137
    %s140 = sphi 0, %s139
    %s154 = sphi 0, %s140
    %s158 = sphi 0, %s158
    %s160 = sphi 0, %s158
    %s161 = sphi 0, %s160
    %s175 = sphi 0, %s161
    %s179 = sphi 0, %s179
    %s181 = sphi 0, %s179
    %s182 = sphi 0, %s181
    %s196 = sphi 0, %s182
    %s200 = sphi 0, %s200
    %s202 = sphi 0, %s200
    %s203 = sphi 0, %s202
    %s217 = sphi 0, %s203
    %s221 = sphi 0, %s221
    %s223 = sphi 0, %s221
    %s224 = sphi 0, %s223
    %s238 = sphi 0, %s224
    %s242 = sphi 0, %s242
    %s244 = sphi 0, %s242
    %s245 = sphi 0, %s244
    %s259 = sphi 0, %s245
    %s267 = sphi 0, %s269
    %s270 = sphi 0, %s267
    %s271 = sphi 0, %s270
    %s287 = sphi 0, %s271
  $region4: #{transformer_forward.15} parent=0 // loop_header_branch
    %19 = sbr.rel (%p17) target = $region8
  $region5: #{transformer_forward.15} parent=0 // loop_body
    %s21 = ssub.s32 %s16, 1
    %s22 = ssub.s32 %s16, 2
    %s29 = sadd.s32 1, %s24
    %p30 = scmp.ge.s32.totalorder %s29, 1
    %s31 = scalar_select %p30, 0, %s29
    %s32 = sadd.s32 1, %s23
    %s33 = scalar_select %p30, %s32, %s23
    %p34 = scmp.ge.s32.totalorder %s33, 2
    %s35 = scalar_select %p34, 0, %s33
    %s36 = ssub.s32 %s23, %s35
    %s37 = ssub.s32 %s24, %s31
    %s38 = sor.u32 %s36, %s37
    %p39 = scmp.eq.s32.totalorder %s38, 0
    %s41 = sadd.s32 %s40, 1
    %s42 = scalar_select %p39, %s40, %s41
    %p45 = pneg %p39
    %p46 = scmp.eq.s32.totalorder %s16, 1
    %p47 = por %p45, %p46
    %p48 = scmp.ne.s32.totalorder %s40, %s43
    %p49 = scmp.eq.s32.totalorder %s16, 0
    %p50 = por %p48, %p49
    %p51 = scmp.ne.s32.totalorder %s40, %s43
    %p52 = scmp.eq.s32.totalorder %s21, 1
    %p53 = por %p51, %p52
    %p54 = scmp.ne.s32.totalorder %s43, %s44
    %p55 = scmp.eq.s32.totalorder %s21, 0
    %p56 = por %p54, %p55
    %p57 = scmp.ne.s32.totalorder %s43, %s44
    %p58 = scmp.eq.s32.totalorder %s22, 1
    %p59 = por %p57, %p58
    %p61 = scmp.ne.s32.totalorder %s44, %s60
    %p62 = scmp.eq.s32.totalorder %s22, 0
    %p63 = por %p61, %p62
    %s64 = ssub.s32 %s24, %s31
    %p65 = scmp.eq.s32.totalorder %s64, 0
    %s67 = sadd.s32 %s66, 1
    %s68 = scalar_select %p65, %s66, %s67
    %p71 = pneg %p65
    %p72 = scmp.eq.s32.totalorder %s16, 1
    %p73 = por %p71, %p72
    %p74 = scmp.ne.s32.totalorder %s66, %s69
    %p75 = scmp.eq.s32.totalorder %s16, 0
    %p76 = por %p74, %p75
    %p77 = scmp.ne.s32.totalorder %s66, %s69
    %p78 = scmp.eq.s32.totalorder %s21, 1
    %p79 = por %p77, %p78
    %p80 = scmp.ne.s32.totalorder %s69, %s70
    %p81 = scmp.eq.s32.totalorder %s21, 0
    %p82 = por %p80, %p81
    %p83 = scmp.ne.s32.totalorder %s69, %s70
    %p84 = scmp.eq.s32.totalorder %s22, 1
    %p85 = por %p83, %p84
    %p87 = scmp.ne.s32.totalorder %s70, %s86
    %p88 = scmp.eq.s32.totalorder %s22, 0
    %p89 = por %p87, %p88
    %s90 = ssub.s32 %s23, %s35
    %p91 = scmp.eq.s32.totalorder %s90, 0
    %s93 = sadd.s32 %s92, 1
    %s94 = scalar_select %p91, %s92, %s93
    %p97 = pneg %p91
    %p98 = scmp.eq.s32.totalorder %s16, 1
    %p99 = por %p97, %p98
    %p100 = scmp.ne.s32.totalorder %s92, %s95
    %p101 = scmp.eq.s32.totalorder %s16, 0
    %p102 = por %p100, %p101
    %p103 = scmp.ne.s32.totalorder %s92, %s95
    %p104 = scmp.eq.s32.totalorder %s21, 1
    %p105 = por %p103, %p104
    %p106 = scmp.ne.s32.totalorder %s95, %s96
    %p107 = scmp.eq.s32.totalorder %s21, 0
    %p108 = por %p106, %p107
    %p109 = scmp.ne.s32.totalorder %s95, %s96
    %p110 = scmp.eq.s32.totalorder %s22, 1
    %p111 = por %p109, %p110
    %p113 = scmp.ne.s32.totalorder %s96, %s112
    %p114 = scmp.eq.s32.totalorder %s22, 0
    %p115 = por %p113, %p114
    %s117 = sadd.s32 %s116, 1
    %p120 = scmp.eq.s32.totalorder %s16, 1
    %p121 = scmp.ne.s32.totalorder %s116, %s118
    %p122 = scmp.eq.s32.totalorder %s16, 0
    %p123 = por %p121, %p122
    %p124 = scmp.ne.s32.totalorder %s116, %s118
    %p125 = scmp.eq.s32.totalorder %s21, 1
    %p126 = por %p124, %p125
    %p127 = scmp.ne.s32.totalorder %s118, %s119
    %p128 = scmp.eq.s32.totalorder %s21, 0
    %p129 = por %p127, %p128
    %p130 = scmp.ne.s32.totalorder %s118, %s119
    %p131 = scmp.eq.s32.totalorder %s22, 1
    %p132 = por %p130, %p131
    %p134 = scmp.ne.s32.totalorder %s119, %s133
    %p135 = scmp.eq.s32.totalorder %s22, 0
    %p136 = por %p134, %p135
    %s138 = sadd.s32 %s137, 1
    %p141 = scmp.eq.s32.totalorder %s16, 1
    %p142 = scmp.ne.s32.totalorder %s137, %s139
    %p143 = scmp.eq.s32.totalorder %s16, 0
    %p144 = por %p142, %p143
    %p145 = scmp.ne.s32.totalorder %s137, %s139
    %p146 = scmp.eq.s32.totalorder %s21, 1
    %p147 = por %p145, %p146
    %p148 = scmp.ne.s32.totalorder %s139, %s140
    %p149 = scmp.eq.s32.totalorder %s21, 0
    %p150 = por %p148, %p149
    %p151 = scmp.ne.s32.totalorder %s139, %s140
    %p152 = scmp.eq.s32.totalorder %s22, 1
    %p153 = por %p151, %p152
    %p155 = scmp.ne.s32.totalorder %s140, %s154
    %p156 = scmp.eq.s32.totalorder %s22, 0
    %p157 = por %p155, %p156
    %s159 = sadd.s32 %s158, 1
    %p162 = scmp.eq.s32.totalorder %s16, 1
    %p163 = scmp.ne.s32.totalorder %s158, %s160
    %p164 = scmp.eq.s32.totalorder %s16, 0
    %p165 = por %p163, %p164
    %p166 = scmp.ne.s32.totalorder %s158, %s160
    %p167 = scmp.eq.s32.totalorder %s21, 1
    %p168 = por %p166, %p167
    %p169 = scmp.ne.s32.totalorder %s160, %s161
    %p170 = scmp.eq.s32.totalorder %s21, 0
    %p171 = por %p169, %p170
    %p172 = scmp.ne.s32.totalorder %s160, %s161
    %p173 = scmp.eq.s32.totalorder %s22, 1
    %p174 = por %p172, %p173
    %p176 = scmp.ne.s32.totalorder %s161, %s175
    %p177 = scmp.eq.s32.totalorder %s22, 0
    %p178 = por %p176, %p177
    %s180 = sadd.s32 %s179, 1
    %p183 = scmp.eq.s32.totalorder %s16, 1
    %p184 = scmp.ne.s32.totalorder %s179, %s181
    %p185 = scmp.eq.s32.totalorder %s16, 0
    %p186 = por %p184, %p185
    %p187 = scmp.ne.s32.totalorder %s179, %s181
    %p188 = scmp.eq.s32.totalorder %s21, 1
    %p189 = por %p187, %p188
    %p190 = scmp.ne.s32.totalorder %s181, %s182
    %p191 = scmp.eq.s32.totalorder %s21, 0
    %p192 = por %p190, %p191
    %p193 = scmp.ne.s32.totalorder %s181, %s182
    %p194 = scmp.eq.s32.totalorder %s22, 1
    %p195 = por %p193, %p194
    %p197 = scmp.ne.s32.totalorder %s182, %s196
    %p198 = scmp.eq.s32.totalorder %s22, 0
    %p199 = por %p197, %p198
    %s201 = sadd.s32 %s200, 1
    %p204 = scmp.eq.s32.totalorder %s16, 1
    %p205 = scmp.ne.s32.totalorder %s200, %s202
    %p206 = scmp.eq.s32.totalorder %s16, 0
    %p207 = por %p205, %p206
    %p208 = scmp.ne.s32.totalorder %s200, %s202
    %p209 = scmp.eq.s32.totalorder %s21, 1
    %p210 = por %p208, %p209
    %p211 = scmp.ne.s32.totalorder %s202, %s203
    %p212 = scmp.eq.s32.totalorder %s21, 0
    %p213 = por %p211, %p212
    %p214 = scmp.ne.s32.totalorder %s202, %s203
    %p215 = scmp.eq.s32.totalorder %s22, 1
    %p216 = por %p214, %p215
    %p218 = scmp.ne.s32.totalorder %s203, %s217
    %p219 = scmp.eq.s32.totalorder %s22, 0
    %p220 = por %p218, %p219
    %s222 = sadd.s32 %s221, 1
    %p225 = scmp.eq.s32.totalorder %s16, 1
    %p226 = scmp.ne.s32.totalorder %s221, %s223
    %p227 = scmp.eq.s32.totalorder %s16, 0
    %p228 = por %p226, %p227
    %p229 = scmp.ne.s32.totalorder %s221, %s223
    %p230 = scmp.eq.s32.totalorder %s21, 1
    %p231 = por %p229, %p230
    %p232 = scmp.ne.s32.totalorder %s223, %s224
    %p233 = scmp.eq.s32.totalorder %s21, 0
    %p234 = por %p232, %p233
    %p235 = scmp.ne.s32.totalorder %s223, %s224
    %p236 = scmp.eq.s32.totalorder %s22, 1
    %p237 = por %p235, %p236
    %p239 = scmp.ne.s32.totalorder %s224, %s238
    %p240 = scmp.eq.s32.totalorder %s22, 0
    %p241 = por %p239, %p240
    %s243 = sadd.s32 %s242, 1
    %p246 = scmp.eq.s32.totalorder %s16, 1
    %p247 = scmp.ne.s32.totalorder %s242, %s244
    %p248 = scmp.eq.s32.totalorder %s16, 0
    %p249 = por %p247, %p248
    %p250 = scmp.ne.s32.totalorder %s242, %s244
    %p251 = scmp.eq.s32.totalorder %s21, 1
    %p252 = por %p250, %p251
    %p253 = scmp.ne.s32.totalorder %s244, %s245
    %p254 = scmp.eq.s32.totalorder %s21, 0
    %p255 = por %p253, %p254
    %p256 = scmp.ne.s32.totalorder %s244, %s245
    %p257 = scmp.eq.s32.totalorder %s22, 1
    %p258 = por %p256, %p257
    %p260 = scmp.ne.s32.totalorder %s245, %s259
    %p261 = scmp.eq.s32.totalorder %s22, 0
    %p262 = por %p260, %p261
    %s263 = ssub.s32 %s23, %s35
    %s264 = ssub.s32 %s24, %s31
    %s265 = sor.u32 %s263, %s264
    %p266 = scmp.eq.s32.totalorder %s265, 0
    %s268 = sadd.s32 %s267, 1
    %s269 = scalar_select %p266, %s267, %s268
    %p272 = pneg %p266
    %p273 = scmp.eq.s32.totalorder %s16, 1
    %p274 = por %p272, %p273
    %p275 = scmp.ne.s32.totalorder %s267, %s270
    %p276 = scmp.eq.s32.totalorder %s16, 0
    %p277 = por %p275, %p276
    %p278 = scmp.ne.s32.totalorder %s267, %s270
    %p279 = scmp.eq.s32.totalorder %s21, 1
    %p280 = por %p278, %p279
    %p281 = scmp.ne.s32.totalorder %s270, %s271
    %p282 = scmp.eq.s32.totalorder %s21, 0
    %p283 = por %p281, %p282
    %p284 = scmp.ne.s32.totalorder %s270, %s271
    %p285 = scmp.eq.s32.totalorder %s22, 1
    %p286 = por %p284, %p285
    %p288 = scmp.ne.s32.totalorder %s271, %s287
    %p289 = scmp.eq.s32.totalorder %s22, 0
    %p290 = por %p288, %p289
    %p291 = scmp.le.s32.totalorder 1, %s16
    %p292 = scmp.lt.s32.totalorder %s16, 3
    %p293 = pnand %p291, %p292
    %p294 = pneg %p293
    // Predicated region
    $region9: #{transformer_forward.15} parent=5 // pred_check
      _
    $region10: #{transformer_forward.15} parent=5 // pred_check_branch
      %296 = sbr.rel (%p293) target = $region12
    $region11: #{transformer_forward.15} parent=5 // pred_region
      %s297 = ssub.s32 %s16, 1
      // Predicated region
      $region13: #{transformer_forward.15} parent=11 // pred_check
        %p298 = pneg %p82
      $region14: #{transformer_forward.15} parent=11 // pred_check_branch
        %300 = sbr.rel (%p298) target = $region16
      $region15: #{transformer_forward.15} parent=11 // pred_region
        %p301 = scmp.lt.s32.totalorder %s26, 0
        %s302 = scalar_select %p301, %s26, 0
        %s303 = smul.addr %s302, 4
        %s304 = scalar_lea.vmem %s1, %s303
      $region16: #{transformer_forward.15} parent=11 // pred_fallthru
        _
      // Predicated region
      $region17: #{transformer_forward.15} parent=11 // pred_check
        %p305 = pneg %p129
      $region18: #{transformer_forward.15} parent=11 // pred_check_branch
        %307 = sbr.rel (%p305) target = $region20
      $region19: #{transformer_forward.15} parent=11 // pred_region
        _
      $region20: #{transformer_forward.15} parent=11 // pred_fallthru
        _
      // Predicated region
      $region21: #{transformer_forward.15} parent=11 // pred_check
        %p308 = pneg %p150
      $region22: #{transformer_forward.15} parent=11 // pred_check_branch
        %310 = sbr.rel (%p308) target = $region24
      $region23: #{transformer_forward.15} parent=11 // pred_region
        _
      $region24: #{transformer_forward.15} parent=11 // pred_fallthru
        _
      // Predicated region
      $region25: #{transformer_forward.15} parent=11 // pred_check
        %p311 = pneg %p171
      $region26: #{transformer_forward.15} parent=11 // pred_check_branch
        %313 = sbr.rel (%p311) target = $region28
      $region27: #{transformer_forward.15} parent=11 // pred_region
        _
      $region28: #{transformer_forward.15} parent=11 // pred_fallthru
        _
      // Predicated region
      $region29: #{transformer_forward.15} parent=11 // pred_check
        %p314 = pneg %p192
      $region30: #{transformer_forward.15} parent=11 // pred_check_branch
        %316 = sbr.rel (%p314) target = $region32
      $region31: #{transformer_forward.15} parent=11 // pred_region
        _
      $region32: #{transformer_forward.15} parent=11 // pred_fallthru
        _
      // Predicated region
      $region33: #{transformer_forward.15} parent=11 // pred_check
        %p317 = pneg %p213
      $region34: #{transformer_forward.15} parent=11 // pred_check_branch
        %319 = sbr.rel (%p317) target = $region36
      $region35: #{transformer_forward.15} parent=11 // pred_region
        _
      $region36: #{transformer_forward.15} parent=11 // pred_fallthru
        _
      // Predicated region
      $region37: #{transformer_forward.15} parent=11 // pred_check
        %p320 = pneg %p234
      $region38: #{transformer_forward.15} parent=11 // pred_check_branch
        %322 = sbr.rel (%p320) target = $region40
      $region39: #{transformer_forward.15} parent=11 // pred_region
        _
      $region40: #{transformer_forward.15} parent=11 // pred_fallthru
        _
      // Predicated region
      $region41: #{transformer_forward.15} parent=11 // pred_check
        %p323 = pneg %p255
      $region42: #{transformer_forward.15} parent=11 // pred_check_branch
        %325 = sbr.rel (%p323) target = $region44
      $region43: #{transformer_forward.15} parent=11 // pred_region
        _
      $region44: #{transformer_forward.15} parent=11 // pred_fallthru
        _
    $region12: #{transformer_forward.15} parent=5 // pred_fallthru
      _
    %p326 = scmp.lt.s32.totalorder %s16, 2
    // Predicated region
    $region45: #{transformer_forward.15} parent=5 // pred_check
      %p327 = pneg %p326
    $region46: #{transformer_forward.15} parent=5 // pred_check_branch
      %329 = sbr.rel (%p327) target = $region48
    $region47: #{transformer_forward.15} parent=5 // pred_region
      // Predicated region
      $region49: #{transformer_forward.15} parent=47 // pred_check
        %p330 = pneg %p50
      $region50: #{transformer_forward.15} parent=47 // pred_check_branch
        %332 = sbr.rel (%p330) target = $region52
      $region51: #{transformer_forward.15} parent=47 // pred_region
        %p333 = scmp.lt.s32.totalorder %s23, 1
        %s334 = scalar_select %p333, %s23, 1
        %p335 = scmp.lt.s32.totalorder %s24, 0
        %s336 = scalar_select %p335, %s24, 0
        %s337 = sadd.s32 %s336, %s334
        %s338 = smul.addr %s337, 4
        %s339 = scalar_lea.vmem %s0, %s338
      $region52: #{transformer_forward.15} parent=47 // pred_fallthru
        _
      // Predicated region
      $region53: #{transformer_forward.15} parent=47 // pred_check
        %p340 = pneg %p102
      $region54: #{transformer_forward.15} parent=47 // pred_check_branch
        %342 = sbr.rel (%p340) target = $region56
      $region55: #{transformer_forward.15} parent=47 // pred_region
        %p343 = scmp.lt.s32.totalorder %s23, 1
        %s344 = scalar_select %p343, %s23, 1
        %s345 = smul.addr %s344, 4
        %s346 = scalar_lea.vmem %s2, %s345
      $region56: #{transformer_forward.15} parent=47 // pred_fallthru
        _
    $region48: #{transformer_forward.15} parent=5 // pred_fallthru
      _
    %p347 = scmp.le.s32.totalorder 1, %s16
    %p348 = scmp.lt.s32.totalorder %s16, 3
    %p349 = pnand %p347, %p348
    %p350 = pneg %p349
    // Predicated region
    $region57: #{transformer_forward.15} parent=5 // pred_check
      _
    $region58: #{transformer_forward.15} parent=5 // pred_check_branch
      %352 = sbr.rel (%p349) target = $region60
    $region59: #{transformer_forward.15} parent=5 // pred_region
      %s353 = ssub.s32 %s16, 1
      %p354 = scmp.lt.s32.totalorder %s25, 1
      %s355 = scalar_select %p354, %s25, 1
      %p356 = scmp.lt.s32.totalorder %s26, 0
      %s357 = scalar_select %p356, %s26, 0
      %s358 = sadd.s32 %s357, %s355
      %s359 = smul.addr %s358, 4
      %s360 = scalar_lea.vmem %s0, %s359
      %p361 = pneg %p56
      %p362 = pneg %p53
      %p363 = scmp.lt.s32.totalorder %s26, 0
      %s364 = scalar_select %p363, %s26, 0
      %s365 = smul.addr %s364, 4
      %s366 = scalar_lea.vmem %s1, %s365
      %p367 = pneg %p82
      %p368 = pneg %p79
      %p369 = scmp.lt.s32.totalorder %s25, 1
      %s370 = scalar_select %p369, %s25, 1
      %s371 = smul.addr %s370, 4
      %s372 = scalar_lea.vmem %s2, %s371
      %p373 = pneg %p108
      %p374 = pneg %p105
      %p375 = pneg %p129
      %p376 = pneg %p126
      %p377 = pneg %p150
      %p378 = pneg %p147
      %p379 = pneg %p171
      %p380 = pneg %p168
      %p381 = pneg %p192
      %p382 = pneg %p189
      %p383 = pneg %p213
      %p384 = pneg %p210
      %p385 = pneg %p234
      %p386 = pneg %p231
      %p387 = pneg %p255
      %p388 = pneg %p252
      %p389 = pneg %p283
      %p390 = pneg %p280
      %p391 = scmp.lt.s32.totalorder %s25, 1
      %s392 = scalar_select %p391, %s25, 1
      %p393 = scmp.lt.s32.totalorder %s26, 0
      %s394 = scalar_select %p393, %s26, 0
      %s395 = sadd.s32 %s394, %s392
      %s396 = smul.addr %s395, 4
      %s397 = scalar_lea.vmem %s10, %s396
      %p398 = scmp.lt.s32.totalorder %s25, 1
      %s399 = scalar_select %p398, %s25, 1
      %p400 = scmp.lt.s32.totalorder %s26, 0
      %s401 = scalar_select %p400, %s26, 0
      %s402 = sadd.s32 %s401, %s399
      %s403 = smul.addr %s402, 4
      %s404 = scalar_lea.vmem %s0, %s403
      %p405 = scmp.lt.s32.totalorder %s26, 0
      %s406 = scalar_select %p405, %s26, 0
      %s407 = smul.addr %s406, 4
      %s408 = scalar_lea.vmem %s1, %s407
      %p409 = scmp.lt.s32.totalorder %s25, 1
      %s410 = scalar_select %p409, %s25, 1
      %s411 = smul.addr %s410, 4
      %s412 = scalar_lea.vmem %s2, %s411
      %p413 = scmp.lt.s32.totalorder %s25, 1
      %s414 = scalar_select %p413, %s25, 1
      %p415 = scmp.lt.s32.totalorder %s26, 0
      %s416 = scalar_select %p415, %s26, 0
      %s417 = sadd.s32 %s416, %s414
      %s418 = smul.addr %s417, 4
      %s419 = scalar_lea.vmem %s10, %s418
      %v421 = vld [vmem:[%s4] sm:$0xf]
      %v422 = vld [vmem:[%s4 + $0x4] sm:$0xf]
      %v423 = vld [vmem:[%s4 + $0x8] sm:$0xf]
      %v424 = vld [vmem:[%s4 + $0xc] sm:$0xf]
      %v425 = vld [vmem:[%s5] sm:$0x1]
      %p426 = scmp.eq.s32.totalorder %s26, 0
      // Predicated region
      $region61: #{transformer_forward.15} parent=59 // pred_check
        %p427 = pneg %p426
      $region62: #{transformer_forward.15} parent=59 // pred_check_branch
        %429 = sbr.rel (%p427) target = $region64
      $region63: #{transformer_forward.15} parent=59 // pred_region
        %v430 = vld [vmem:[%s412] sm:$0xf]
        %v431 = vunpack.c.l.bf16 %v430
        %v432 = vld [vmem:[%s3] sm:$0xf]
        %v433 = vunpack.c.l.bf16 %v432
        %v434 = vadd.f32 %v431, %v433
        %v435 = vpack.c.bf16 %v434, %v434
        %v437 = vlaneseq
        %v438 = vshrl.u32 %v437, 7
        %v439 = vsub.s32 0, %v438
        %v440 = vrot.slane %v425, %v439
        %v445 = vunpack.c.l.b16 %v421
        %v446 = vunpack.c.l.b16 %v422
        %v447 = vunpack.c.l.b16 %v423
        %v448 = vunpack.c.l.b16 %v424
        %v449 = vpack.c.b16 %v446, %v445
        %v450 = vpack.c.b16 %v448, %v447
        %451 = vrot.lane.b32.xlu0 %v449, 96
        %v452 = vpop.permute.xlu0 %451
        %453 = vrot.lane.b32.xlu0 %v450, 96
        %v454 = vpop.permute.xlu0 %453
        %457 = vrot.lane.b32.xlu0 %v440, 96
        %v458 = vpop.permute.xlu0 %457
        %vm460 = vcmask 261120
        %v462 = vsel %vm460, %v435, 0
        %464 = vmatprep.subr.bf16.mxu0 0
        %465 = vmatpush1.bf16.msra.mxu0 %v452
        %466 = vmatprep.subr.bf16.mxu0 0
        %467 = vmatpush1.bf16.msra.mxu0 %v454
        %468 = vmatprep.subr.bf16.mxu0 0
        %469 = vmatpush1.bf16.msra.mxu0 0
        %470 = vmatprep.subr.bf16.mxu0 0
        %471 = vmatpush1.bf16.msra.mxu0 0
        %472 = vmatprep.subr.bf16.mxu0 0
        %473 = vmatpush1.bf16.msra.mxu0 0
        %474 = vmatprep.subr.bf16.mxu0 0
        %475 = vmatpush1.bf16.msra.mxu0 0
        %476 = vmatprep.subr.bf16.mxu0 0
        %477 = vmatpush1.bf16.msra.mxu0 0
        %478 = vmatprep.subr.bf16.mxu0 0
        %479 = vmatpush1.bf16.msra.mxu0 0
        %480 = vmatprep.subr.bf16.mxu0 0
        %481 = vmatpush1.bf16.msra.mxu0 0
        %482 = vmatprep.subr.bf16.mxu0 0
        %483 = vmatpush1.bf16.msra.mxu0 0
        %484 = vmatprep.subr.bf16.mxu0 0
        %485 = vmatpush1.bf16.msra.mxu0 0
        %486 = vmatprep.subr.bf16.mxu0 0
        %487 = vmatpush1.bf16.msra.mxu0 0
        %488 = vmatprep.subr.bf16.mxu0 0
        %489 = vmatpush1.bf16.msra.mxu0 0
        %490 = vmatprep.subr.bf16.mxu0 0
        %491 = vmatpush1.bf16.msra.mxu0 0
        %492 = vmatprep.subr.bf16.mxu0 0
        %493 = vmatpush1.bf16.msra.mxu0 0
        %494 = vmatprep.subr.bf16.mxu0 0
        %495 = vmatpush1.bf16.msra.mxu0 0
        %496 = vmatprep.mubr.bf16.mxu0 0
        %497 = vmatmul.mubr.bf16.gmra.mrb[0].mxu0 %v462
        %v498 = vpop.f32.mrb[0].mxu0
        %v499 = vadd.f32 %v458, %v498
        %v500 = vpop.f32.mrb[0].mxu0
        %v501 = vpop.f32.mrb[0].mxu0
        %v502 = vpop.f32.mrb[0].mxu0
        %503 = vdwg.mxu0
        %504 = vrot.lane.b32.xlu0 %v449, 64
        %v505 = vpop.permute.xlu0 %504
        %506 = vrot.lane.b32.xlu0 %v450, 64
        %v507 = vpop.permute.xlu0 %506
        %510 = vrot.lane.b32.xlu0 %v440, 64
        %v511 = vpop.permute.xlu0 %510
        %v514 = vsel %vm460, %v430, 0
        %516 = vmatprep.subr.bf16.mxu0 0
        %517 = vmatpush1.bf16.msra.mxu0 %v505
        %518 = vmatprep.subr.bf16.mxu0 0
        %519 = vmatpush1.bf16.msra.mxu0 %v507
        %520 = vmatprep.subr.bf16.mxu0 0
        %521 = vmatpush1.bf16.msra.mxu0 0
        %522 = vmatprep.subr.bf16.mxu0 0
        %523 = vmatpush1.bf16.msra.mxu0 0
        %524 = vmatprep.subr.bf16.mxu0 0
        %525 = vmatpush1.bf16.msra.mxu0 0
        %526 = vmatprep.subr.bf16.mxu0 0
        %527 = vmatpush1.bf16.msra.mxu0 0
        %528 = vmatprep.subr.bf16.mxu0 0
        %529 = vmatpush1.bf16.msra.mxu0 0
        %530 = vmatprep.subr.bf16.mxu0 0
        %531 = vmatpush1.bf16.msra.mxu0 0
        %532 = vmatprep.subr.bf16.mxu0 0
        %533 = vmatpush1.bf16.msra.mxu0 0
        %534 = vmatprep.subr.bf16.mxu0 0
        %535 = vmatpush1.bf16.msra.mxu0 0
        %536 = vmatprep.subr.bf16.mxu0 0
        %537 = vmatpush1.bf16.msra.mxu0 0
        %538 = vmatprep.subr.bf16.mxu0 0
        %539 = vmatpush1.bf16.msra.mxu0 0
        %540 = vmatprep.subr.bf16.mxu0 0
        %541 = vmatpush1.bf16.msra.mxu0 0
        %542 = vmatprep.subr.bf16.mxu0 0
        %543 = vmatpush1.bf16.msra.mxu0 0
        %544 = vmatprep.subr.bf16.mxu0 0
        %545 = vmatpush1.bf16.msra.mxu0 0
        %546 = vmatprep.subr.bf16.mxu0 0
        %547 = vmatpush1.bf16.msra.mxu0 0
        %548 = vmatprep.mubr.bf16.mxu0 0
        %549 = vmatmul.mubr.bf16.gmra.mrb[0].mxu0 %v514
        %v550 = vpop.f32.mrb[0].mxu0
        %v551 = vadd.f32 %v511, %v550
        %v552 = vpop.f32.mrb[0].mxu0
        %v553 = vpop.f32.mrb[0].mxu0
        %v554 = vpop.f32.mrb[0].mxu0
        %555 = vdwg.mxu0
        %v556 = vpack.c.bf16 %v499, %v499
        %vm557 = vcmask 257024
        %558 = vst.msk [vmem:[#allocation2] sm:$0xf] %vm557, %v556
        %v559 = vpack.c.bf16 %v551, %v551
        %560 = vst.msk [vmem:[#allocation3] sm:$0xf] %vm557, %v559
      $region64: #{transformer_forward.15} parent=59 // pred_fallthru
        _
      %v561 = vld [vmem:[%s404] sm:$0xf]
      %v562 = vunpack.c.l.bf16 %v561
      %v563 = vld [vmem:[%s408] sm:$0xf]
      %v564 = vunpack.c.l.bf16 %v563
      %v565 = vadd.f32 %v562, %v564
      %v566 = vpack.c.bf16 %v565, %v565
      %v568 = vlaneseq
      %v569 = vshrl.u32 %v568, 7
      %v570 = vsub.s32 0, %v569
      %v571 = vrot.slane %v425, %v570
      %v577 = vunpack.c.l.b16 %v421
      %v578 = vunpack.c.l.b16 %v422
      %v579 = vunpack.c.l.b16 %v423
      %v580 = vunpack.c.l.b16 %v424
      %v581 = vpack.c.b16 %v578, %v577
      %v582 = vpack.c.b16 %v580, %v579
      %vm585 = vcmask 261120
      %v587 = vsel %vm585, %v566, 0
      %589 = vmatprep.subr.bf16.mxu0 0
      %590 = vmatpush1.bf16.msra.mxu0 %v581
      %591 = vmatprep.subr.bf16.mxu0 0
      %592 = vmatpush1.bf16.msra.mxu0 %v582
      %593 = vmatprep.subr.bf16.mxu0 0
      %594 = vmatpush1.bf16.msra.mxu0 0
      %595 = vmatprep.subr.bf16.mxu0 0
      %596 = vmatpush1.bf16.msra.mxu0 0
      %597 = vmatprep.subr.bf16.mxu0 0
      %598 = vmatpush1.bf16.msra.mxu0 0
      %599 = vmatprep.subr.bf16.mxu0 0
      %600 = vmatpush1.bf16.msra.mxu0 0
      %601 = vmatprep.subr.bf16.mxu0 0
      %602 = vmatpush1.bf16.msra.mxu0 0
      %603 = vmatprep.subr.bf16.mxu0 0
      %604 = vmatpush1.bf16.msra.mxu0 0
      %605 = vmatprep.subr.bf16.mxu0 0
      %606 = vmatpush1.bf16.msra.mxu0 0
      %607 = vmatprep.subr.bf16.mxu0 0
      %608 = vmatpush1.bf16.msra.mxu0 0
      %609 = vmatprep.subr.bf16.mxu0 0
      %610 = vmatpush1.bf16.msra.mxu0 0
      %611 = vmatprep.subr.bf16.mxu0 0
      %612 = vmatpush1.bf16.msra.mxu0 0
      %613 = vmatprep.subr.bf16.mxu0 0
      %614 = vmatpush1.bf16.msra.mxu0 0
      %615 = vmatprep.subr.bf16.mxu0 0
      %616 = vmatpush1.bf16.msra.mxu0 0
      %617 = vmatprep.subr.bf16.mxu0 0
      %618 = vmatpush1.bf16.msra.mxu0 0
      %619 = vmatprep.subr.bf16.mxu0 0
      %620 = vmatpush1.bf16.msra.mxu0 0
      %621 = vmatprep.mubr.bf16.mxu0 0
      %622 = vmatmul.mubr.bf16.gmra.mrb[0].mxu0 %v587
      %v623 = vpop.f32.mrb[0].mxu0
      %v624 = vadd.f32 %v571, %v623
      %v625 = vpop.f32.mrb[0].mxu0
      %v626 = vpop.f32.mrb[0].mxu0
      %v627 = vpop.f32.mrb[0].mxu0
      %628 = vdwg.mxu0
      %v629 = vpack.c.bf16 %v624, %v624
      %v630 = vld [vmem:[#allocation2] sm:$0xf]
      %v631 = vld [vmem:[#allocation3] sm:$0xf]
      %vm632 = vcmask 64512
      %v634 = vsel %vm632, %v629, 0
      %v637 = vsel %vm632, %v630, 0
      %639 = vmatprep.subr.bf16.mxu0 0
      %640 = vmatpush1.bf16.xpose.msra.mxu0 %v637
      %641 = vmatprep.subr.bf16.mxu0 0
      %642 = vmatpush1.bf16.xpose.msra.mxu0 0
      %643 = vmatprep.subr.bf16.mxu0 0
      %644 = vmatpush1.bf16.xpose.msra.mxu0 0
      %645 = vmatprep.subr.bf16.mxu0 0
      %646 = vmatpush1.bf16.xpose.msra.mxu0 0
      %647 = vmatprep.subr.bf16.mxu0 0
      %648 = vmatpush1.bf16.xpose.msra.mxu0 0
      %649 = vmatprep.subr.bf16.mxu0 0
      %650 = vmatpush1.bf16.xpose.msra.mxu0 0
      %651 = vmatprep.subr.bf16.mxu0 0
      %652 = vmatpush1.bf16.xpose.msra.mxu0 0
      %653 = vmatprep.subr.bf16.mxu0 0
      %654 = vmatpush1.bf16.xpose.msra.mxu0 0
      %655 = vmatprep.subr.bf16.mxu0 0
      %656 = vmatpush1.bf16.xpose.msra.mxu0 0
      %657 = vmatprep.subr.bf16.mxu0 0
      %658 = vmatpush1.bf16.xpose.msra.mxu0 0
      %659 = vmatprep.subr.bf16.mxu0 0
      %660 = vmatpush1.bf16.xpose.msra.mxu0 0
      %661 = vmatprep.subr.bf16.mxu0 0
      %662 = vmatpush1.bf16.xpose.msra.mxu0 0
      %663 = vmatprep.subr.bf16.mxu0 0
      %664 = vmatpush1.bf16.xpose.msra.mxu0 0
      %665 = vmatprep.subr.bf16.mxu0 0
      %666 = vmatpush1.bf16.xpose.msra.mxu0 0
      %667 = vmatprep.subr.bf16.mxu0 0
      %668 = vmatpush1.bf16.xpose.msra.mxu0 0
      %669 = vmatprep.subr.bf16.mxu0 0
      %670 = vmatpush1.bf16.xpose.msra.mxu0 0
      %671 = vmatprep.mubr.bf16.mxu0 0
      %672 = vmatmul.mubr.bf16.gmra.mrb[0].mxu0 %v634
      %v673 = vpop.f32.mrb[0].mxu0
      %v674 = vadd.f32 0.0, %v673
      %v675 = vpop.f32.mrb[0].mxu0
      %v676 = vpop.f32.mrb[0].mxu0
      %v677 = vpop.f32.mrb[0].mxu0
      %678 = vdwg.mxu0
      %v679 = vsel %vm632, %v674, -inf
      %680 = vmax.xlane.f32.xlu0 %v679
      %v681 = vpop.xlane.xlu0 %680
      %v682 = vsub.f32 %v674, %v681
      %v683 = vmul.f32 %v682, 1.442695
      %v684 = vpow.pop %v683
      %v685 = vsel %vm632, %v684, 0.0
      %686 = vadd.xlane.f32.xlu0 %v685
      %v687 = vpop.xlane.xlu0 %686
      %v688 = vrcp.pop %v687
      %v689 = vmul.f32 %v684, %v688
      %v690 = vpack.c.bf16 %v689, %v689
      %v692 = vsel %vm632, %v690, 0
      %vm694 = vcmask 1043456
      %v696 = vsel %vm694, %v631, 0
      %698 = vmatprep.subr.bf16.mxu0 0
      %699 = vmatpush1.bf16.msra.mxu0 %v696
      %700 = vmatprep.subr.bf16.mxu0 0
      %701 = vmatpush1.bf16.msra.mxu0 0
      %702 = vmatprep.subr.bf16.mxu0 0
      %703 = vmatpush1.bf16.msra.mxu0 0
      %704 = vmatprep.subr.bf16.mxu0 0
      %705 = vmatpush1.bf16.msra.mxu0 0
      %706 = vmatprep.subr.bf16.mxu0 0
      %707 = vmatpush1.bf16.msra.mxu0 0
      %708 = vmatprep.subr.bf16.mxu0 0
      %709 = vmatpush1.bf16.msra.mxu0 0
      %710 = vmatprep.subr.bf16.mxu0 0
      %711 = vmatpush1.bf16.msra.mxu0 0
      %712 = vmatprep.subr.bf16.mxu0 0
      %713 = vmatpush1.bf16.msra.mxu0 0
      %714 = vmatprep.subr.bf16.mxu0 0
      %715 = vmatpush1.bf16.msra.mxu0 0
      %716 = vmatprep.subr.bf16.mxu0 0
      %717 = vmatpush1.bf16.msra.mxu0 0
      %718 = vmatprep.subr.bf16.mxu0 0
      %719 = vmatpush1.bf16.msra.mxu0 0
      %720 = vmatprep.subr.bf16.mxu0 0
      %721 = vmatpush1.bf16.msra.mxu0 0
      %722 = vmatprep.subr.bf16.mxu0 0
      %723 = vmatpush1.bf16.msra.mxu0 0
      %724 = vmatprep.subr.bf16.mxu0 0
      %725 = vmatpush1.bf16.msra.mxu0 0
      %726 = vmatprep.subr.bf16.mxu0 0
      %727 = vmatpush1.bf16.msra.mxu0 0
      %728 = vmatprep.subr.bf16.mxu0 0
      %729 = vmatpush1.bf16.msra.mxu0 0
      %730 = vmatprep.mubr.bf16.mxu0 0
      %731 = vmatmul.mubr.bf16.gmra.mrb[0].mxu0 %v692
      %v732 = vpop.f32.mrb[0].mxu0
      %v733 = vadd.f32 0.0, %v732
      %v734 = vpop.f32.mrb[0].mxu0
      %v735 = vpop.f32.mrb[0].mxu0
      %v736 = vpop.f32.mrb[0].mxu0
      %737 = vdwg.mxu0
      %739 = vrot.lane.b32.xlu0 %v629, 120
      %v740 = vpop.permute.xlu0 %739
      %v742 = vunpack.c.l.b16 %v630
      %v743 = vpack.c.b16 %v742, %v742
      %744 = vrot.lane.b32.xlu0 %v743, 120
      %v745 = vpop.permute.xlu0 %744
      %v747 = vsel %vm632, %v740, 0
      %v750 = vsel %vm632, %v745, 0
      %752 = vmatprep.subr.bf16.mxu0 0
      %753 = vmatpush1.bf16.xpose.msra.mxu0 %v750
      %754 = vmatprep.subr.bf16.mxu0 0
      %755 = vmatpush1.bf16.xpose.msra.mxu0 0
      %756 = vmatprep.subr.bf16.mxu0 0
      %757 = vmatpush1.bf16.xpose.msra.mxu0 0
      %758 = vmatprep.subr.bf16.mxu0 0
      %759 = vmatpush1.bf16.xpose.msra.mxu0 0
      %760 = vmatprep.subr.bf16.mxu0 0
      %761 = vmatpush1.bf16.xpose.msra.mxu0 0
      %762 = vmatprep.subr.bf16.mxu0 0
      %763 = vmatpush1.bf16.xpose.msra.mxu0 0
      %764 = vmatprep.subr.bf16.mxu0 0
      %765 = vmatpush1.bf16.xpose.msra.mxu0 0
      %766 = vmatprep.subr.bf16.mxu0 0
      %767 = vmatpush1.bf16.xpose.msra.mxu0 0
      %768 = vmatprep.subr.bf16.mxu0 0
      %769 = vmatpush1.bf16.xpose.msra.mxu0 0
      %770 = vmatprep.subr.bf16.mxu0 0
      %771 = vmatpush1.bf16.xpose.msra.mxu0 0
      %772 = vmatprep.subr.bf16.mxu0 0
      %773 = vmatpush1.bf16.xpose.msra.mxu0 0
      %774 = vmatprep.subr.bf16.mxu0 0
      %775 = vmatpush1.bf16.xpose.msra.mxu0 0
      %776 = vmatprep.subr.bf16.mxu0 0
      %777 = vmatpush1.bf16.xpose.msra.mxu0 0
      %778 = vmatprep.subr.bf16.mxu0 0
      %779 = vmatpush1.bf16.xpose.msra.mxu0 0
      %780 = vmatprep.subr.bf16.mxu0 0
      %781 = vmatpush1.bf16.xpose.msra.mxu0 0
      %782 = vmatprep.subr.bf16.mxu0 0
      %783 = vmatpush1.bf16.xpose.msra.mxu0 0
      %784 = vmatprep.mubr.bf16.mxu0 0
      %785 = vmatmul.mubr.bf16.gmra.mrb[0].mxu0 %v747
      %v786 = vpop.f32.mrb[0].mxu0
      %v787 = vadd.f32 0.0, %v786
      %v788 = vpop.f32.mrb[0].mxu0
      %v789 = vpop.f32.mrb[0].mxu0
      %v790 = vpop.f32.mrb[0].mxu0
      %791 = vdwg.mxu0
      %v792 = vsel %vm632, %v787, -inf
      %793 = vmax.xlane.f32.xlu0 %v792
      %v794 = vpop.xlane.xlu0 %793
      %v795 = vsub.f32 %v787, %v794
      %v796 = vmul.f32 %v795, 1.442695
      %v797 = vpow.pop %v796
      %v798 = vsel %vm632, %v797, 0.0
      %799 = vadd.xlane.f32.xlu0 %v798
      %v800 = vpop.xlane.xlu0 %799
      %v801 = vrcp.pop %v800
      %v802 = vmul.f32 %v797, %v801
      %v803 = vpack.c.bf16 %v802, %v802
      %v805 = vunpack.c.l.b16 %v631
      %v806 = vpack.c.b16 %v805, %v805
      %807 = vrot.lane.b32.xlu0 %v806, 120
      %v808 = vpop.permute.xlu0 %807
      %v810 = vsel %vm632, %v803, 0
      %v813 = vsel %vm694, %v808, 0
      %815 = vmatprep.subr.bf16.mxu0 0
      %816 = vmatpush1.bf16.msra.mxu0 %v813
      %817 = vmatprep.subr.bf16.mxu0 0
      %818 = vmatpush1.bf16.msra.mxu0 0
      %819 = vmatprep.subr.bf16.mxu0 0
      %820 = vmatpush1.bf16.msra.mxu0 0
      %821 = vmatprep.subr.bf16.mxu0 0
      %822 = vmatpush1.bf16.msra.mxu0 0
      %823 = vmatprep.subr.bf16.mxu0 0
      %824 = vmatpush1.bf16.msra.mxu0 0
      %825 = vmatprep.subr.bf16.mxu0 0
      %826 = vmatpush1.bf16.msra.mxu0 0
      %827 = vmatprep.subr.bf16.mxu0 0
      %828 = vmatpush1.bf16.msra.mxu0 0
      %829 = vmatprep.subr.bf16.mxu0 0
      %830 = vmatpush1.bf16.msra.mxu0 0
      %831 = vmatprep.subr.bf16.mxu0 0
      %832 = vmatpush1.bf16.msra.mxu0 0
      %833 = vmatprep.subr.bf16.mxu0 0
      %834 = vmatpush1.bf16.msra.mxu0 0
      %835 = vmatprep.subr.bf16.mxu0 0
      %836 = vmatpush1.bf16.msra.mxu0 0
      %837 = vmatprep.subr.bf16.mxu0 0
      %838 = vmatpush1.bf16.msra.mxu0 0
      %839 = vmatprep.subr.bf16.mxu0 0
      %840 = vmatpush1.bf16.msra.mxu0 0
      %841 = vmatprep.subr.bf16.mxu0 0
      %842 = vmatpush1.bf16.msra.mxu0 0
      %843 = vmatprep.subr.bf16.mxu0 0
      %844 = vmatpush1.bf16.msra.mxu0 0
      %845 = vmatprep.subr.bf16.mxu0 0
      %846 = vmatpush1.bf16.msra.mxu0 0
      %847 = vmatprep.mubr.bf16.mxu0 0
      %848 = vmatmul.mubr.bf16.gmra.mrb[0].mxu0 %v810
      %v849 = vpop.f32.mrb[0].mxu0
      %v850 = vadd.f32 0.0, %v849
      %v851 = vpop.f32.mrb[0].mxu0
      %v852 = vpop.f32.mrb[0].mxu0
      %v853 = vpop.f32.mrb[0].mxu0
      %854 = vdwg.mxu0
      %855 = vrot.lane.b32.xlu0 %v629, 112
      %v856 = vpop.permute.xlu0 %855
      %857 = vrot.lane.b32.xlu0 %v743, 112
      %v858 = vpop.permute.xlu0 %857
      %v860 = vsel %vm632, %v856, 0
      %v863 = vsel %vm632, %v858, 0
      %865 = vmatprep.subr.bf16.mxu0 0
      %866 = vmatpush1.bf16.xpose.msra.mxu0 %v863
      %867 = vmatprep.subr.bf16.mxu0 0
      %868 = vmatpush1.bf16.xpose.msra.mxu0 0
      %869 = vmatprep.subr.bf16.mxu0 0
      %870 = vmatpush1.bf16.xpose.msra.mxu0 0
      %871 = vmatprep.subr.bf16.mxu0 0
      %872 = vmatpush1.bf16.xpose.msra.mxu0 0
      %873 = vmatprep.subr.bf16.mxu0 0
      %874 = vmatpush1.bf16.xpose.msra.mxu0 0
      %875 = vmatprep.subr.bf16.mxu0 0
      %876 = vmatpush1.bf16.xpose.msra.mxu0 0
      %877 = vmatprep.subr.bf16.mxu0 0
      %878 = vmatpush1.bf16.xpose.msra.mxu0 0
      %879 = vmatprep.subr.bf16.mxu0 0
      %880 = vmatpush1.bf16.xpose.msra.mxu0 0
      %881 = vmatprep.subr.bf16.mxu0 0
      %882 = vmatpush1.bf16.xpose.msra.mxu0 0
      %883 = vmatprep.subr.bf16.mxu0 0
      %884 = vmatpush1.bf16.xpose.msra.mxu0 0
      %885 = vmatprep.subr.bf16.mxu0 0
      %886 = vmatpush1.bf16.xpose.msra.mxu0 0
      %887 = vmatprep.subr.bf16.mxu0 0
      %888 = vmatpush1.bf16.xpose.msra.mxu0 0
      %889 = vmatprep.subr.bf16.mxu0 0
      %890 = vmatpush1.bf16.xpose.msra.mxu0 0
      %891 = vmatprep.subr.bf16.mxu0 0
      %892 = vmatpush1.bf16.xpose.msra.mxu0 0
      %893 = vmatprep.subr.bf16.mxu0 0
      %894 = vmatpush1.bf16.xpose.msra.mxu0 0
      %895 = vmatprep.subr.bf16.mxu0 0
      %896 = vmatpush1.bf16.xpose.msra.mxu0 0
      %897 = vmatprep.mubr.bf16.mxu0 0
      %898 = vmatmul.mubr.bf16.gmra.mrb[0].mxu0 %v860
      %v899 = vpop.f32.mrb[0].mxu0
      %v900 = vadd.f32 0.0, %v899
      %v901 = vpop.f32.mrb[0].mxu0
      %v902 = vpop.f32.mrb[0].mxu0
      %v903 = vpop.f32.mrb[0].mxu0
      %904 = vdwg.mxu0
      %v905 = vsel %vm632, %v900, -inf
      %906 = vmax.xlane.f32.xlu0 %v905
      %v907 = vpop.xlane.xlu0 %906
      %v908 = vsub.f32 %v900, %v907
      %v909 = vmul.f32 %v908, 1.442695
      %v910 = vpow.pop %v909
      %v911 = vsel %vm632, %v910, 0.0
      %912 = vadd.xlane.f32.xlu0 %v911
      %v913 = vpop.xlane.xlu0 %912
      %v914 = vrcp.pop %v913
      %v915 = vmul.f32 %v910, %v914
      %v916 = vpack.c.bf16 %v915, %v915
      %917 = vrot.lane.b32.xlu0 %v806, 112
      %v918 = vpop.permute.xlu0 %917
      %v920 = vsel %vm632, %v916, 0
      %v923 = vsel %vm694, %v918, 0
      %925 = vmatprep.subr.bf16.mxu0 0
      %926 = vmatpush1.bf16.msra.mxu0 %v923
      %927 = vmatprep.subr.bf16.mxu0 0
      %928 = vmatpush1.bf16.msra.mxu0 0
      %929 = vmatprep.subr.bf16.mxu0 0
      %930 = vmatpush1.bf16.msra.mxu0 0
      %931 = vmatprep.subr.bf16.mxu0 0
      %932 = vmatpush1.bf16.msra.mxu0 0
      %933 = vmatprep.subr.bf16.mxu0 0
      %934 = vmatpush1.bf16.msra.mxu0 0
      %935 = vmatprep.subr.bf16.mxu0 0
      %936 = vmatpush1.bf16.msra.mxu0 0
      %937 = vmatprep.subr.bf16.mxu0 0
      %938 = vmatpush1.bf16.msra.mxu0 0
      %939 = vmatprep.subr.bf16.mxu0 0
      %940 = vmatpush1.bf16.msra.mxu0 0
      %941 = vmatprep.subr.bf16.mxu0 0
      %942 = vmatpush1.bf16.msra.mxu0 0
      %943 = vmatprep.subr.bf16.mxu0 0
      %944 = vmatpush1.bf16.msra.mxu0 0
      %945 = vmatprep.subr.bf16.mxu0 0
      %946 = vmatpush1.bf16.msra.mxu0 0
      %947 = vmatprep.subr.bf16.mxu0 0
      %948 = vmatpush1.bf16.msra.mxu0 0
      %949 = vmatprep.subr.bf16.mxu0 0
      %950 = vmatpush1.bf16.msra.mxu0 0
      %951 = vmatprep.subr.bf16.mxu0 0
      %952 = vmatpush1.bf16.msra.mxu0 0
      %953 = vmatprep.subr.bf16.mxu0 0
      %954 = vmatpush1.bf16.msra.mxu0 0
      %955 = vmatprep.subr.bf16.mxu0 0
      %956 = vmatpush1.bf16.msra.mxu0 0
      %957 = vmatprep.mubr.bf16.mxu0 0
      %958 = vmatmul.mubr.bf16.gmra.mrb[0].mxu0 %v920
      %v959 = vpop.f32.mrb[0].mxu0
      %v960 = vadd.f32 0.0, %v959
      %v961 = vpop.f32.mrb[0].mxu0
      %v962 = vpop.f32.mrb[0].mxu0
      %v963 = vpop.f32.mrb[0].mxu0
      %964 = vdwg.mxu0
      %965 = vrot.lane.b32.xlu0 %v629, 104
      %v966 = vpop.permute.xlu0 %965
      %967 = vrot.lane.b32.xlu0 %v743, 104
      %v968 = vpop.permute.xlu0 %967
      %v970 = vsel %vm632, %v966, 0
      %v973 = vsel %vm632, %v968, 0
      %975 = vmatprep.subr.bf16.mxu0 0
      %976 = vmatpush1.bf16.xpose.msra.mxu0 %v973
      %977 = vmatprep.subr.bf16.mxu0 0
      %978 = vmatpush1.bf16.xpose.msra.mxu0 0
      %979 = vmatprep.subr.bf16.mxu0 0
      %980 = vmatpush1.bf16.xpose.msra.mxu0 0
      %981 = vmatprep.subr.bf16.mxu0 0
      %982 = vmatpush1.bf16.xpose.msra.mxu0 0
      %983 = vmatprep.subr.bf16.mxu0 0
      %984 = vmatpush1.bf16.xpose.msra.mxu0 0
      %985 = vmatprep.subr.bf16.mxu0 0
      %986 = vmatpush1.bf16.xpose.msra.mxu0 0
      %987 = vmatprep.subr.bf16.mxu0 0
      %988 = vmatpush1.bf16.xpose.msra.mxu0 0
      %989 = vmatprep.subr.bf16.mxu0 0
      %990 = vmatpush1.bf16.xpose.msra.mxu0 0
      %991 = vmatprep.subr.bf16.mxu0 0
      %992 = vmatpush1.bf16.xpose.msra.mxu0 0
      %993 = vmatprep.subr.bf16.mxu0 0
      %994 = vmatpush1.bf16.xpose.msra.mxu0 0
      %995 = vmatprep.subr.bf16.mxu0 0
      %996 = vmatpush1.bf16.xpose.msra.mxu0 0
      %997 = vmatprep.subr.bf16.mxu0 0
      %998 = vmatpush1.bf16.xpose.msra.mxu0 0
      %999 = vmatprep.subr.bf16.mxu0 0
      %1000 = vmatpush1.bf16.xpose.msra.mxu0 0
      %1001 = vmatprep.subr.bf16.mxu0 0
      %1002 = vmatpush1.bf16.xpose.msra.mxu0 0
      %1003 = vmatprep.subr.bf16.mxu0 0
      %1004 = vmatpush1.bf16.xpose.msra.mxu0 0
      %1005 = vmatprep.subr.bf16.mxu0 0
      %1006 = vmatpush1.bf16.xpose.msra.mxu0 0
      %1007 = vmatprep.mubr.bf16.mxu0 0
      %1008 = vmatmul.mubr.bf16.gmra.mrb[0].mxu0 %v970
      %v1009 = vpop.f32.mrb[0].mxu0
      %v1010 = vadd.f32 0.0, %v1009
      %v1011 = vpop.f32.mrb[0].mxu0
      %v1012 = vpop.f32.mrb[0].mxu0
      %v1013 = vpop.f32.mrb[0].mxu0
      %1014 = vdwg.mxu0
      %v1015 = vsel %vm632, %v1010, -inf
      %1016 = vmax.xlane.f32.xlu0 %v1015
      %v1017 = vpop.xlane.xlu0 %1016
      %v1018 = vsub.f32 %v1010, %v1017
      %v1019 = vmul.f32 %v1018, 1.442695
      %v1020 = vpow.pop %v1019
      %v1021 = vsel %vm632, %v1020, 0.0
      %1022 = vadd.xlane.f32.xlu0 %v1021
      %v1023 = vpop.xlane.xlu0 %1022
      %v1024 = vrcp.pop %v1023
      %v1025 = vmul.f32 %v1020, %v1024
      %v1026 = vpack.c.bf16 %v1025, %v1025
      %1027 = vrot.lane.b32.xlu0 %v806, 104
      %v1028 = vpop.permute.xlu0 %1027
      %v1030 = vsel %vm632, %v1026, 0
      %v1033 = vsel %vm694, %v1028, 0
      %1035 = vmatprep.subr.bf16.mxu0 0
      %1036 = vmatpush1.bf16.msra.mxu0 %v1033
      %1037 = vmatprep.subr.bf16.mxu0 0
      %1038 = vmatpush1.bf16.msra.mxu0 0
      %1039 = vmatprep.subr.bf16.mxu0 0
      %1040 = vmatpush1.bf16.msra.mxu0 0
      %1041 = vmatprep.subr.bf16.mxu0 0
      %1042 = vmatpush1.bf16.msra.mxu0 0
      %1043 = vmatprep.subr.bf16.mxu0 0
      %1044 = vmatpush1.bf16.msra.mxu0 0
      %1045 = vmatprep.subr.bf16.mxu0 0
      %1046 = vmatpush1.bf16.msra.mxu0 0
      %1047 = vmatprep.subr.bf16.mxu0 0
      %1048 = vmatpush1.bf16.msra.mxu0 0
      %1049 = vmatprep.subr.bf16.mxu0 0
      %1050 = vmatpush1.bf16.msra.mxu0 0
      %1051 = vmatprep.subr.bf16.mxu0 0
      %1052 = vmatpush1.bf16.msra.mxu0 0
      %1053 = vmatprep.subr.bf16.mxu0 0
      %1054 = vmatpush1.bf16.msra.mxu0 0
      %1055 = vmatprep.subr.bf16.mxu0 0
      %1056 = vmatpush1.bf16.msra.mxu0 0
      %1057 = vmatprep.subr.bf16.mxu0 0
      %1058 = vmatpush1.bf16.msra.mxu0 0
      %1059 = vmatprep.subr.bf16.mxu0 0
      %1060 = vmatpush1.bf16.msra.mxu0 0
      %1061 = vmatprep.subr.bf16.mxu0 0
      %1062 = vmatpush1.bf16.msra.mxu0 0
      %1063 = vmatprep.subr.bf16.mxu0 0
      %1064 = vmatpush1.bf16.msra.mxu0 0
      %1065 = vmatprep.subr.bf16.mxu0 0
      %1066 = vmatpush1.bf16.msra.mxu0 0
      %1067 = vmatprep.mubr.bf16.mxu0 0
      %1068 = vmatmul.mubr.bf16.gmra.mrb[0].mxu0 %v1030
      %v1069 = vpop.f32.mrb[0].mxu0
      %v1070 = vadd.f32 0.0, %v1069
      %v1071 = vpop.f32.mrb[0].mxu0
      %v1072 = vpop.f32.mrb[0].mxu0
      %v1073 = vpop.f32.mrb[0].mxu0
      %1074 = vdwg.mxu0
      %1076 = vrot.lane.b32.xlu0 %v850, 8
      %v1077 = vpop.permute.xlu0 %1076
      %1080 = vrot.lane.b32.xlu0 %v960, 16
      %v1081 = vpop.permute.xlu0 %1080
      %1084 = vrot.lane.b32.xlu0 %v1070, 24
      %v1085 = vpop.permute.xlu0 %1084
      %v1087 = vsel %vm632, %v733, %v1077
      %vm1088 = vcmask 130048
      %v1089 = vsel %vm1088, %v1087, %v1081
      %vm1090 = vcmask 195584
      %v1091 = vsel %vm1090, %v1089, %v1085
      %v1092 = vpack.c.bf16 %v1091, %v1091
      %v1093 = vld [vmem:[%s6] sm:$0xf]
      %v1094 = vld [vmem:[%s6 + $0x4] sm:$0xf]
      %v1095 = vld [vmem:[%s6 + $0x8] sm:$0xf]
      %v1096 = vld [vmem:[%s6 + $0xc] sm:$0xf]
      %v1097 = vld [vmem:[%s7] sm:$0x1]
      %v1099 = vlaneseq
      %v1100 = vshrl.u32 %v1099, 7
      %v1101 = vsub.s32 0, %v1100
      %v1102 = vrot.slane %v1097, %v1101
      %v1108 = vunpack.c.l.b16 %v1093
      %v1109 = vunpack.c.l.b16 %v1094
      %v1110 = vunpack.c.l.b16 %v1095
      %v1111 = vunpack.c.l.b16 %v1096
      %v1112 = vpack.c.b16 %v1109, %v1108
      %v1113 = vpack.c.b16 %v1111, %v1110
      %v1117 = vsel %vm585, %v1092, 0
      %1119 = vmatprep.subr.bf16.mxu0 0
      %1120 = vmatpush1.bf16.msra.mxu0 %v1112
      %1121 = vmatprep.subr.bf16.mxu0 0
      %1122 = vmatpush1.bf16.msra.mxu0 %v1113
      %1123 = vmatprep.subr.bf16.mxu0 0
      %1124 = vmatpush1.bf16.msra.mxu0 0
      %1125 = vmatprep.subr.bf16.mxu0 0
      %1126 = vmatpush1.bf16.msra.mxu0 0
      %1127 = vmatprep.subr.bf16.mxu0 0
      %1128 = vmatpush1.bf16.msra.mxu0 0
      %1129 = vmatprep.subr.bf16.mxu0 0
      %1130 = vmatpush1.bf16.msra.mxu0 0
      %1131 = vmatprep.subr.bf16.mxu0 0
      %1132 = vmatpush1.bf16.msra.mxu0 0
      %1133 = vmatprep.subr.bf16.mxu0 0
      %1134 = vmatpush1.bf16.msra.mxu0 0
      %1135 = vmatprep.subr.bf16.mxu0 0
      %1136 = vmatpush1.bf16.msra.mxu0 0
      %1137 = vmatprep.subr.bf16.mxu0 0
      %1138 = vmatpush1.bf16.msra.mxu0 0
      %1139 = vmatprep.subr.bf16.mxu0 0
      %1140 = vmatpush1.bf16.msra.mxu0 0
      %1141 = vmatprep.subr.bf16.mxu0 0
      %1142 = vmatpush1.bf16.msra.mxu0 0
      %1143 = vmatprep.subr.bf16.mxu0 0
      %1144 = vmatpush1.bf16.msra.mxu0 0
      %1145 = vmatprep.subr.bf16.mxu0 0
      %1146 = vmatpush1.bf16.msra.mxu0 0
      %1147 = vmatprep.subr.bf16.mxu0 0
      %1148 = vmatpush1.bf16.msra.mxu0 0
      %1149 = vmatprep.subr.bf16.mxu0 0
      %1150 = vmatpush1.bf16.msra.mxu0 0
      %1151 = vmatprep.mubr.bf16.mxu0 0
      %1152 = vmatmul.mubr.bf16.gmra.mrb[0].mxu0 %v1117
      %v1153 = vpop.f32.mrb[0].mxu0
      %v1154 = vadd.f32 %v1102, %v1153
      %v1155 = vpop.f32.mrb[0].mxu0
      %v1156 = vpop.f32.mrb[0].mxu0
      %v1157 = vpop.f32.mrb[0].mxu0
      %1158 = vdwg.mxu0
      %v1159 = vadd.f32 %v562, %v1154
      %v1160 = vsel %vm585, %v1159, 0.0
      %1161 = vadd.xlane.f32.xlu0 %v1160
      %v1162 = vpop.xlane.xlu0 %1161
      %v1163 = vrcp.pop 32.0
      %v1164 = vmul.f32 %v1162, %v1163
      %v1165 = vsub.f32 %v1159, %v1164
      %v1166 = vmul.f32 %v1165, %v1165
      %v1167 = vsel %vm585, %v1166, 0.0
      %1168 = vadd.xlane.f32.xlu0 %v1167
      %v1169 = vpop.xlane.xlu0 %1168
      %v1170 = vmul.f32 %v1169, %v1163
      %v1171 = vadd.f32 %v1170, 1e-05
      %v1172 = vrsqrt.pop %v1171
      %v1173 = vmul.f32 %v1165, %v1172
      %v1174 = vld [vmem:[%s8] sm:$0x1]
      %v1176 = vlaneseq
      %v1177 = vshrl.u32 %v1176, 7
      %v1178 = vsub.s32 0, %v1177
      %v1179 = vrot.slane %v1174, %v1178
      %v1181 = vmul.f32 %v1173, %v1179
      %v1182 = vld [vmem:[%s9] sm:$0x1]
      %v1184 = vlaneseq
      %v1185 = vshrl.u32 %v1184, 7
      %v1186 = vsub.s32 0, %v1185
      %v1187 = vrot.slane %v1182, %v1186
      %v1189 = vadd.f32 %v1181, %v1187
      %v1190 = vpack.c.bf16 %v1189, %v1189
      %vm1191 = vcmask 257024
      %1192 = vst.msk [vmem:[%s419] sm:$0xf] %vm1191, %v1190
      %p1193 = scmp.lt.s32.totalorder %s25, 1
      %s1194 = scalar_select %p1193, %s25, 1
      %p1195 = scmp.lt.s32.totalorder %s26, 0
      %s1196 = scalar_select %p1195, %s26, 0
      %s1197 = sadd.s32 %s1196, %s1194
      %s1198 = smul.addr %s1197, 4
      %s1199 = scalar_lea.vmem %s10, %s1198
      // Predicated region
      $region65: #{transformer_forward.15} parent=59 // pred_check
        %p1200 = pneg %p280
      $region66: #{transformer_forward.15} parent=59 // pred_check_branch
        %1202 = sbr.rel (%p1200) target = $region68
      $region67: #{transformer_forward.15} parent=59 // pred_region
        _
      $region68: #{transformer_forward.15} parent=59 // pred_fallthru
        _
    $region60: #{transformer_forward.15} parent=5 // pred_fallthru
      _
    %p1203 = scmp.le.s32.totalorder 2, %s16
    // Predicated region
    $region69: #{transformer_forward.15} parent=5 // pred_check
      %p1204 = pneg %p1203
    $region70: #{transformer_forward.15} parent=5 // pred_check_branch
      %1206 = sbr.rel (%p1204) target = $region72
    $region71: #{transformer_forward.15} parent=5 // pred_region
      %s1207 = ssub.s32 %s16, 2
      // Predicated region
      $region73: #{transformer_forward.15} parent=71 // pred_check
        %p1208 = pneg %p286
      $region74: #{transformer_forward.15} parent=71 // pred_check_branch
        %1210 = sbr.rel (%p1208) target = $region76
      $region75: #{transformer_forward.15} parent=71 // pred_region
        %p1211 = scmp.lt.s32.totalorder %s27, 1
        %s1212 = scalar_select %p1211, %s27, 1
        %p1213 = scmp.lt.s32.totalorder %s28, 0
        %s1214 = scalar_select %p1213, %s28, 0
        %s1215 = sadd.s32 %s1214, %s1212
        %s1216 = smul.addr %s1215, 4
        %s1217 = scalar_lea.vmem %s10, %s1216
      $region76: #{transformer_forward.15} parent=71 // pred_fallthru
        _
    $region72: #{transformer_forward.15} parent=5 // pred_fallthru
      _
  $region6: #{transformer_forward.15} parent=0 // loop_footer
    %s20 = sadd.s32 1, %s16
  $region7: #{transformer_forward.15} parent=0 // loop_footer_branch
    %15 = sbr.rel target = $region3
  $region8: #{transformer_forward.15} parent=0 // loop_exit
    _

// kernel: transformer_forward.16
$region0: #{transformer_forward.16}
  #allocation0 [shape = 'u32[]', space=smem, size = 0x4, offset = 0x4, fixed_abs, tag = 'smem constant byte address 0x4 - core index']
  #allocation1 [shape = 'u32[144,128]{1,0:T(1,128)}', space=vmem, size = 0x12000, scoped, tag = 'internal scratch']
  #allocation2 [shape = 'bf16[16,32]{1,0:T(16,128)(2,1)}', space=vmem, size = 0x1000, scoped, tag = 'scratch operand']
  #allocation3 [shape = 'bf16[16,32]{1,0:T(16,128)(2,1)}', space=vmem, size = 0x1000, scoped, tag = 'scratch operand']
  %s0 = inlined_call_operand.vmem [shape: bf16[2,8,32], index: 0, kind: input, shape index: {}]
  %s1 = inlined_call_operand.vmem [shape: bf16[1,8,32], index: 1, kind: input, shape index: {}]
  %s2 = inlined_call_operand.vmem [shape: bf16[2,16,32], index: 2, kind: input, shape index: {}]
  %s3 = inlined_call_operand.vmem [shape: bf16[2,16,32], index: 3, kind: input, shape index: {}]
  %s4 = inlined_call_operand.vmem [shape: f32[2,1,16], index: 4, kind: input, shape index: {}]
  %s5 = inlined_call_operand.vmem [shape: bf16[32,96], index: 5, kind: input, shape index: {}]
  %s6 = inlined_call_operand.vmem [shape: f32[1,96], index: 6, kind: input, shape index: {}]
  %s7 = inlined_call_operand.vmem [shape: bf16[32,32], index: 7, kind: input, shape index: {}]
  %s8 = inlined_call_operand.vmem [shape: f32[1,32], index: 8, kind: input, shape index: {}]
  %s9 = inlined_call_operand.vmem [shape: f32[1,32], index: 9, kind: input, shape index: {}]
  %s10 = inlined_call_operand.vmem [shape: f32[1,32], index: 10, kind: input, shape index: {}]
  %s11 = inlined_call_operand.vmem [shape: bf16[2,8,32], index: 11, kind: output, shape index: {}]
  %s12 = sld [smem:[#allocation0]]
  $region81: #{transformer_forward.16} parent=0
    _
  %s14 = ssub.s32 1, %s12
  %s15 = scalar_select 0, %s14, %s12
  loop: start=0, step=1, limit=4
  $region2: #{transformer_forward.16} parent=0 // loop_pre_header
    _
  $region3: #{transformer_forward.16} parent=0 // loop_header
    %s17 = sphi 0, %s21
    %p18 = scmp.ge.s32.totalorder %s17, 4
    %s24 = sphi 0, %s36
    %s25 = sphi 0, %s32
    %s26 = sphi 0, %s24
    %s27 = sphi 0, %s25
    %s28 = sphi 0, %s26
    %s29 = sphi 0, %s27
    %s41 = sphi 0, %s43
    %s44 = sphi 0, %s41
    %s45 = sphi 0, %s44
    %s61 = sphi 0, %s45
    %s67 = sphi 0, %s69
    %s70 = sphi 0, %s67
    %s71 = sphi 0, %s70
    %s87 = sphi 0, %s71
    %s93 = sphi 0, %s95
    %s96 = sphi 0, %s93
    %s97 = sphi 0, %s96
    %s113 = sphi 0, %s97
    %s119 = sphi 0, %s121
    %s122 = sphi 0, %s119
    %s123 = sphi 0, %s122
    %s139 = sphi 0, %s123
    %s145 = sphi 0, %s147
    %s148 = sphi 0, %s145
    %s149 = sphi 0, %s148
    %s165 = sphi 0, %s149
    %s169 = sphi 0, %s169
    %s171 = sphi 0, %s169
    %s172 = sphi 0, %s171
    %s186 = sphi 0, %s172
    %s190 = sphi 0, %s190
    %s192 = sphi 0, %s190
    %s193 = sphi 0, %s192
    %s207 = sphi 0, %s193
    %s211 = sphi 0, %s211
    %s213 = sphi 0, %s211
    %s214 = sphi 0, %s213
    %s228 = sphi 0, %s214
    %s232 = sphi 0, %s232
    %s234 = sphi 0, %s232
    %s235 = sphi 0, %s234
    %s249 = sphi 0, %s235
    %s253 = sphi 0, %s253
    %s255 = sphi 0, %s253
    %s256 = sphi 0, %s255
    %s270 = sphi 0, %s256
    %s274 = sphi 0, %s274
    %s276 = sphi 0, %s274
    %s277 = sphi 0, %s276
    %s291 = sphi 0, %s277
    %s299 = sphi 0, %s301
    %s302 = sphi 0, %s299
    %s303 = sphi 0, %s302
    %s319 = sphi 0, %s303
  $region4: #{transformer_forward.16} parent=0 // loop_header_branch
    %20 = sbr.rel (%p18) target = $region8
  $region5: #{transformer_forward.16} parent=0 // loop_body
    %s22 = ssub.s32 %s17, 1
    %s23 = ssub.s32 %s17, 2
    %s30 = sadd.s32 1, %s25
    %p31 = scmp.ge.s32.totalorder %s30, 1
    %s32 = scalar_select %p31, 0, %s30
    %s33 = sadd.s32 1, %s24
    %s34 = scalar_select %p31, %s33, %s24
    %p35 = scmp.ge.s32.totalorder %s34, 2
    %s36 = scalar_select %p35, 0, %s34
    %s37 = ssub.s32 %s24, %s36
    %s38 = ssub.s32 %s25, %s32
    %s39 = sor.u32 %s37, %s38
    %p40 = scmp.eq.s32.totalorder %s39, 0
    %s42 = sadd.s32 %s41, 1
    %s43 = scalar_select %p40, %s41, %s42
    %p46 = pneg %p40
    %p47 = scmp.eq.s32.totalorder %s17, 1
    %p48 = por %p46, %p47
    %p49 = scmp.ne.s32.totalorder %s41, %s44
    %p50 = scmp.eq.s32.totalorder %s17, 0
    %p51 = por %p49, %p50
    %p52 = scmp.ne.s32.totalorder %s41, %s44
    %p53 = scmp.eq.s32.totalorder %s22, 1
    %p54 = por %p52, %p53
    %p55 = scmp.ne.s32.totalorder %s44, %s45
    %p56 = scmp.eq.s32.totalorder %s22, 0
    %p57 = por %p55, %p56
    %p58 = scmp.ne.s32.totalorder %s44, %s45
    %p59 = scmp.eq.s32.totalorder %s23, 1
    %p60 = por %p58, %p59
    %p62 = scmp.ne.s32.totalorder %s45, %s61
    %p63 = scmp.eq.s32.totalorder %s23, 0
    %p64 = por %p62, %p63
    %s65 = ssub.s32 %s25, %s32
    %p66 = scmp.eq.s32.totalorder %s65, 0
    %s68 = sadd.s32 %s67, 1
    %s69 = scalar_select %p66, %s67, %s68
    %p72 = pneg %p66
    %p73 = scmp.eq.s32.totalorder %s17, 1
    %p74 = por %p72, %p73
    %p75 = scmp.ne.s32.totalorder %s67, %s70
    %p76 = scmp.eq.s32.totalorder %s17, 0
    %p77 = por %p75, %p76
    %p78 = scmp.ne.s32.totalorder %s67, %s70
    %p79 = scmp.eq.s32.totalorder %s22, 1
    %p80 = por %p78, %p79
    %p81 = scmp.ne.s32.totalorder %s70, %s71
    %p82 = scmp.eq.s32.totalorder %s22, 0
    %p83 = por %p81, %p82
    %p84 = scmp.ne.s32.totalorder %s70, %s71
    %p85 = scmp.eq.s32.totalorder %s23, 1
    %p86 = por %p84, %p85
    %p88 = scmp.ne.s32.totalorder %s71, %s87
    %p89 = scmp.eq.s32.totalorder %s23, 0
    %p90 = por %p88, %p89
    %s91 = ssub.s32 %s24, %s36
    %p92 = scmp.eq.s32.totalorder %s91, 0
    %s94 = sadd.s32 %s93, 1
    %s95 = scalar_select %p92, %s93, %s94
    %p98 = pneg %p92
    %p99 = scmp.eq.s32.totalorder %s17, 1
    %p100 = por %p98, %p99
    %p101 = scmp.ne.s32.totalorder %s93, %s96
    %p102 = scmp.eq.s32.totalorder %s17, 0
    %p103 = por %p101, %p102
    %p104 = scmp.ne.s32.totalorder %s93, %s96
    %p105 = scmp.eq.s32.totalorder %s22, 1
    %p106 = por %p104, %p105
    %p107 = scmp.ne.s32.totalorder %s96, %s97
    %p108 = scmp.eq.s32.totalorder %s22, 0
    %p109 = por %p107, %p108
    %p110 = scmp.ne.s32.totalorder %s96, %s97
    %p111 = scmp.eq.s32.totalorder %s23, 1
    %p112 = por %p110, %p111
    %p114 = scmp.ne.s32.totalorder %s97, %s113
    %p115 = scmp.eq.s32.totalorder %s23, 0
    %p116 = por %p114, %p115
    %s117 = ssub.s32 %s24, %s36
    %p118 = scmp.eq.s32.totalorder %s117, 0
    %s120 = sadd.s32 %s119, 1
    %s121 = scalar_select %p118, %s119, %s120
    %p124 = pneg %p118
    %p125 = scmp.eq.s32.totalorder %s17, 1
    %p126 = por %p124, %p125
    %p127 = scmp.ne.s32.totalorder %s119, %s122
    %p128 = scmp.eq.s32.totalorder %s17, 0
    %p129 = por %p127, %p128
    %p130 = scmp.ne.s32.totalorder %s119, %s122
    %p131 = scmp.eq.s32.totalorder %s22, 1
    %p132 = por %p130, %p131
    %p133 = scmp.ne.s32.totalorder %s122, %s123
    %p134 = scmp.eq.s32.totalorder %s22, 0
    %p135 = por %p133, %p134
    %p136 = scmp.ne.s32.totalorder %s122, %s123
    %p137 = scmp.eq.s32.totalorder %s23, 1
    %p138 = por %p136, %p137
    %p140 = scmp.ne.s32.totalorder %s123, %s139
    %p141 = scmp.eq.s32.totalorder %s23, 0
    %p142 = por %p140, %p141
    %s143 = ssub.s32 %s24, %s36
    %p144 = scmp.eq.s32.totalorder %s143, 0
    %s146 = sadd.s32 %s145, 1
    %s147 = scalar_select %p144, %s145, %s146
    %p150 = pneg %p144
    %p151 = scmp.eq.s32.totalorder %s17, 1
    %p152 = por %p150, %p151
    %p153 = scmp.ne.s32.totalorder %s145, %s148
    %p154 = scmp.eq.s32.totalorder %s17, 0
    %p155 = por %p153, %p154
    %p156 = scmp.ne.s32.totalorder %s145, %s148
    %p157 = scmp.eq.s32.totalorder %s22, 1
    %p158 = por %p156, %p157
    %p159 = scmp.ne.s32.totalorder %s148, %s149
    %p160 = scmp.eq.s32.totalorder %s22, 0
    %p161 = por %p159, %p160
    %p162 = scmp.ne.s32.totalorder %s148, %s149
    %p163 = scmp.eq.s32.totalorder %s23, 1
    %p164 = por %p162, %p163
    %p166 = scmp.ne.s32.totalorder %s149, %s165
    %p167 = scmp.eq.s32.totalorder %s23, 0
    %p168 = por %p166, %p167
    %s170 = sadd.s32 %s169, 1
    %p173 = scmp.eq.s32.totalorder %s17, 1
    %p174 = scmp.ne.s32.totalorder %s169, %s171
    %p175 = scmp.eq.s32.totalorder %s17, 0
    %p176 = por %p174, %p175
    %p177 = scmp.ne.s32.totalorder %s169, %s171
    %p178 = scmp.eq.s32.totalorder %s22, 1
    %p179 = por %p177, %p178
    %p180 = scmp.ne.s32.totalorder %s171, %s172
    %p181 = scmp.eq.s32.totalorder %s22, 0
    %p182 = por %p180, %p181
    %p183 = scmp.ne.s32.totalorder %s171, %s172
    %p184 = scmp.eq.s32.totalorder %s23, 1
    %p185 = por %p183, %p184
    %p187 = scmp.ne.s32.totalorder %s172, %s186
    %p188 = scmp.eq.s32.totalorder %s23, 0
    %p189 = por %p187, %p188
    %s191 = sadd.s32 %s190, 1
    %p194 = scmp.eq.s32.totalorder %s17, 1
    %p195 = scmp.ne.s32.totalorder %s190, %s192
    %p196 = scmp.eq.s32.totalorder %s17, 0
    %p197 = por %p195, %p196
    %p198 = scmp.ne.s32.totalorder %s190, %s192
    %p199 = scmp.eq.s32.totalorder %s22, 1
    %p200 = por %p198, %p199
    %p201 = scmp.ne.s32.totalorder %s192, %s193
    %p202 = scmp.eq.s32.totalorder %s22, 0
    %p203 = por %p201, %p202
    %p204 = scmp.ne.s32.totalorder %s192, %s193
    %p205 = scmp.eq.s32.totalorder %s23, 1
    %p206 = por %p204, %p205
    %p208 = scmp.ne.s32.totalorder %s193, %s207
    %p209 = scmp.eq.s32.totalorder %s23, 0
    %p210 = por %p208, %p209
    %s212 = sadd.s32 %s211, 1
    %p215 = scmp.eq.s32.totalorder %s17, 1
    %p216 = scmp.ne.s32.totalorder %s211, %s213
    %p217 = scmp.eq.s32.totalorder %s17, 0
    %p218 = por %p216, %p217
    %p219 = scmp.ne.s32.totalorder %s211, %s213
    %p220 = scmp.eq.s32.totalorder %s22, 1
    %p221 = por %p219, %p220
    %p222 = scmp.ne.s32.totalorder %s213, %s214
    %p223 = scmp.eq.s32.totalorder %s22, 0
    %p224 = por %p222, %p223
    %p225 = scmp.ne.s32.totalorder %s213, %s214
    %p226 = scmp.eq.s32.totalorder %s23, 1
    %p227 = por %p225, %p226
    %p229 = scmp.ne.s32.totalorder %s214, %s228
    %p230 = scmp.eq.s32.totalorder %s23, 0
    %p231 = por %p229, %p230
    %s233 = sadd.s32 %s232, 1
    %p236 = scmp.eq.s32.totalorder %s17, 1
    %p237 = scmp.ne.s32.totalorder %s232, %s234
    %p238 = scmp.eq.s32.totalorder %s17, 0
    %p239 = por %p237, %p238
    %p240 = scmp.ne.s32.totalorder %s232, %s234
    %p241 = scmp.eq.s32.totalorder %s22, 1
    %p242 = por %p240, %p241
    %p243 = scmp.ne.s32.totalorder %s234, %s235
    %p244 = scmp.eq.s32.totalorder %s22, 0
    %p245 = por %p243, %p244
    %p246 = scmp.ne.s32.totalorder %s234, %s235
    %p247 = scmp.eq.s32.totalorder %s23, 1
    %p248 = por %p246, %p247
    %p250 = scmp.ne.s32.totalorder %s235, %s249
    %p251 = scmp.eq.s32.totalorder %s23, 0
    %p252 = por %p250, %p251
    %s254 = sadd.s32 %s253, 1
    %p257 = scmp.eq.s32.totalorder %s17, 1
    %p258 = scmp.ne.s32.totalorder %s253, %s255
    %p259 = scmp.eq.s32.totalorder %s17, 0
    %p260 = por %p258, %p259
    %p261 = scmp.ne.s32.totalorder %s253, %s255
    %p262 = scmp.eq.s32.totalorder %s22, 1
    %p263 = por %p261, %p262
    %p264 = scmp.ne.s32.totalorder %s255, %s256
    %p265 = scmp.eq.s32.totalorder %s22, 0
    %p266 = por %p264, %p265
    %p267 = scmp.ne.s32.totalorder %s255, %s256
    %p268 = scmp.eq.s32.totalorder %s23, 1
    %p269 = por %p267, %p268
    %p271 = scmp.ne.s32.totalorder %s256, %s270
    %p272 = scmp.eq.s32.totalorder %s23, 0
    %p273 = por %p271, %p272
    %s275 = sadd.s32 %s274, 1
    %p278 = scmp.eq.s32.totalorder %s17, 1
    %p279 = scmp.ne.s32.totalorder %s274, %s276
    %p280 = scmp.eq.s32.totalorder %s17, 0
    %p281 = por %p279, %p280
    %p282 = scmp.ne.s32.totalorder %s274, %s276
    %p283 = scmp.eq.s32.totalorder %s22, 1
    %p284 = por %p282, %p283
    %p285 = scmp.ne.s32.totalorder %s276, %s277
    %p286 = scmp.eq.s32.totalorder %s22, 0
    %p287 = por %p285, %p286
    %p288 = scmp.ne.s32.totalorder %s276, %s277
    %p289 = scmp.eq.s32.totalorder %s23, 1
    %p290 = por %p288, %p289
    %p292 = scmp.ne.s32.totalorder %s277, %s291
    %p293 = scmp.eq.s32.totalorder %s23, 0
    %p294 = por %p292, %p293
    %s295 = ssub.s32 %s24, %s36
    %s296 = ssub.s32 %s25, %s32
    %s297 = sor.u32 %s295, %s296
    %p298 = scmp.eq.s32.totalorder %s297, 0
    %s300 = sadd.s32 %s299, 1
    %s301 = scalar_select %p298, %s299, %s300
    %p304 = pneg %p298
    %p305 = scmp.eq.s32.totalorder %s17, 1
    %p306 = por %p304, %p305
    %p307 = scmp.ne.s32.totalorder %s299, %s302
    %p308 = scmp.eq.s32.totalorder %s17, 0
    %p309 = por %p307, %p308
    %p310 = scmp.ne.s32.totalorder %s299, %s302
    %p311 = scmp.eq.s32.totalorder %s22, 1
    %p312 = por %p310, %p311
    %p313 = scmp.ne.s32.totalorder %s302, %s303
    %p314 = scmp.eq.s32.totalorder %s22, 0
    %p315 = por %p313, %p314
    %p316 = scmp.ne.s32.totalorder %s302, %s303
    %p317 = scmp.eq.s32.totalorder %s23, 1
    %p318 = por %p316, %p317
    %p320 = scmp.ne.s32.totalorder %s303, %s319
    %p321 = scmp.eq.s32.totalorder %s23, 0
    %p322 = por %p320, %p321
    %p323 = scmp.le.s32.totalorder 1, %s17
    %p324 = scmp.lt.s32.totalorder %s17, 3
    %p325 = pnand %p323, %p324
    %p326 = pneg %p325
    // Predicated region
    $region9: #{transformer_forward.16} parent=5 // pred_check
      _
    $region10: #{transformer_forward.16} parent=5 // pred_check_branch
      %328 = sbr.rel (%p325) target = $region12
    $region11: #{transformer_forward.16} parent=5 // pred_region
      %s329 = ssub.s32 %s17, 1
      // Predicated region
      $region13: #{transformer_forward.16} parent=11 // pred_check
        %p330 = pneg %p83
      $region14: #{transformer_forward.16} parent=11 // pred_check_branch
        %332 = sbr.rel (%p330) target = $region16
      $region15: #{transformer_forward.16} parent=11 // pred_region
        %p333 = scmp.lt.s32.totalorder %s27, 0
        %s334 = scalar_select %p333, %s27, 0
        %s335 = smul.addr %s334, 4
        %s336 = scalar_lea.vmem %s1, %s335
      $region16: #{transformer_forward.16} parent=11 // pred_fallthru
        _
      // Predicated region
      $region17: #{transformer_forward.16} parent=11 // pred_check
        %p337 = pneg %p182
      $region18: #{transformer_forward.16} parent=11 // pred_check_branch
        %339 = sbr.rel (%p337) target = $region20
      $region19: #{transformer_forward.16} parent=11 // pred_region
        _
      $region20: #{transformer_forward.16} parent=11 // pred_fallthru
        _
      // Predicated region
      $region21: #{transformer_forward.16} parent=11 // pred_check
        %p340 = pneg %p203
      $region22: #{transformer_forward.16} parent=11 // pred_check_branch
        %342 = sbr.rel (%p340) target = $region24
      $region23: #{transformer_forward.16} parent=11 // pred_region
        _
      $region24: #{transformer_forward.16} parent=11 // pred_fallthru
        _
      // Predicated region
      $region25: #{transformer_forward.16} parent=11 // pred_check
        %p343 = pneg %p224
      $region26: #{transformer_forward.16} parent=11 // pred_check_branch
        %345 = sbr.rel (%p343) target = $region28
      $region27: #{transformer_forward.16} parent=11 // pred_region
        _
      $region28: #{transformer_forward.16} parent=11 // pred_fallthru
        _
      // Predicated region
      $region29: #{transformer_forward.16} parent=11 // pred_check
        %p346 = pneg %p245
      $region30: #{transformer_forward.16} parent=11 // pred_check_branch
        %348 = sbr.rel (%p346) target = $region32
      $region31: #{transformer_forward.16} parent=11 // pred_region
        _
      $region32: #{transformer_forward.16} parent=11 // pred_fallthru
        _
      // Predicated region
      $region33: #{transformer_forward.16} parent=11 // pred_check
        %p349 = pneg %p266
      $region34: #{transformer_forward.16} parent=11 // pred_check_branch
        %351 = sbr.rel (%p349) target = $region36
      $region35: #{transformer_forward.16} parent=11 // pred_region
        _
      $region36: #{transformer_forward.16} parent=11 // pred_fallthru
        _
      // Predicated region
      $region37: #{transformer_forward.16} parent=11 // pred_check
        %p352 = pneg %p287
      $region38: #{transformer_forward.16} parent=11 // pred_check_branch
        %354 = sbr.rel (%p352) target = $region40
      $region39: #{transformer_forward.16} parent=11 // pred_region
        _
      $region40: #{transformer_forward.16} parent=11 // pred_fallthru
        _
    $region12: #{transformer_forward.16} parent=5 // pred_fallthru
      _
    %p355 = scmp.lt.s32.totalorder %s17, 2
    // Predicated region
    $region41: #{transformer_forward.16} parent=5 // pred_check
      %p356 = pneg %p355
    $region42: #{transformer_forward.16} parent=5 // pred_check_branch
      %358 = sbr.rel (%p356) target = $region44
    $region43: #{transformer_forward.16} parent=5 // pred_region
      // Predicated region
      $region45: #{transformer_forward.16} parent=43 // pred_check
        %p359 = pneg %p51
      $region46: #{transformer_forward.16} parent=43 // pred_check_branch
        %361 = sbr.rel (%p359) target = $region48
      $region47: #{transformer_forward.16} parent=43 // pred_region
        %p362 = scmp.lt.s32.totalorder %s24, 1
        %s363 = scalar_select %p362, %s24, 1
        %p364 = scmp.lt.s32.totalorder %s25, 0
        %s365 = scalar_select %p364, %s25, 0
        %s366 = sadd.s32 %s365, %s363
        %s367 = smul.addr %s366, 4
        %s368 = scalar_lea.vmem %s0, %s367
      $region48: #{transformer_forward.16} parent=43 // pred_fallthru
        _
      // Predicated region
      $region49: #{transformer_forward.16} parent=43 // pred_check
        %p369 = pneg %p103
      $region50: #{transformer_forward.16} parent=43 // pred_check_branch
        %371 = sbr.rel (%p369) target = $region52
      $region51: #{transformer_forward.16} parent=43 // pred_region
        %p372 = scmp.lt.s32.totalorder %s24, 1
        %s373 = scalar_select %p372, %s24, 1
        %s374 = smul.addr %s373, 2
        %s375 = smul.addr %s374, 4
        %s376 = scalar_lea.vmem %s2, %s375
      $region52: #{transformer_forward.16} parent=43 // pred_fallthru
        _
      // Predicated region
      $region53: #{transformer_forward.16} parent=43 // pred_check
        %p377 = pneg %p129
      $region54: #{transformer_forward.16} parent=43 // pred_check_branch
        %379 = sbr.rel (%p377) target = $region56
      $region55: #{transformer_forward.16} parent=43 // pred_region
        %p380 = scmp.lt.s32.totalorder %s24, 1
        %s381 = scalar_select %p380, %s24, 1
        %s382 = smul.addr %s381, 2
        %s383 = smul.addr %s382, 4
        %s384 = scalar_lea.vmem %s3, %s383
      $region56: #{transformer_forward.16} parent=43 // pred_fallthru
        _
      // Predicated region
      $region57: #{transformer_forward.16} parent=43 // pred_check
        %p385 = pneg %p155
      $region58: #{transformer_forward.16} parent=43 // pred_check_branch
        %387 = sbr.rel (%p385) target = $region60
      $region59: #{transformer_forward.16} parent=43 // pred_region
        %p388 = scmp.lt.s32.totalorder %s24, 1
        %s389 = scalar_select %p388, %s24, 1
        %s390 = scalar_lea.vmem %s4, %s389
      $region60: #{transformer_forward.16} parent=43 // pred_fallthru
        _
    $region44: #{transformer_forward.16} parent=5 // pred_fallthru
      _
    %p391 = scmp.le.s32.totalorder 1, %s17
    %p392 = scmp.lt.s32.totalorder %s17, 3
    %p393 = pnand %p391, %p392
    %p394 = pneg %p393
    // Predicated region
    $region61: #{transformer_forward.16} parent=5 // pred_check
      _
    $region62: #{transformer_forward.16} parent=5 // pred_check_branch
      %396 = sbr.rel (%p393) target = $region64
    $region63: #{transformer_forward.16} parent=5 // pred_region
      %s397 = ssub.s32 %s17, 1
      %p398 = scmp.lt.s32.totalorder %s26, 1
      %s399 = scalar_select %p398, %s26, 1
      %p400 = scmp.lt.s32.totalorder %s27, 0
      %s401 = scalar_select %p400, %s27, 0
      %s402 = sadd.s32 %s401, %s399
      %s403 = smul.addr %s402, 4
      %s404 = scalar_lea.vmem %s0, %s403
      %p405 = pneg %p57
      %p406 = pneg %p54
      %p407 = scmp.lt.s32.totalorder %s27, 0
      %s408 = scalar_select %p407, %s27, 0
      %s409 = smul.addr %s408, 4
      %s410 = scalar_lea.vmem %s1, %s409
      %p411 = pneg %p83
      %p412 = pneg %p80
      %p413 = scmp.lt.s32.totalorder %s26, 1
      %s414 = scalar_select %p413, %s26, 1
      %s415 = smul.addr %s414, 2
      %s416 = smul.addr %s415, 4
      %s417 = scalar_lea.vmem %s2, %s416
      %p418 = pneg %p109
      %p419 = pneg %p106
      %p420 = scmp.lt.s32.totalorder %s26, 1
      %s421 = scalar_select %p420, %s26, 1
      %s422 = smul.addr %s421, 2
      %s423 = smul.addr %s422, 4
      %s424 = scalar_lea.vmem %s3, %s423
      %p425 = pneg %p135
      %p426 = pneg %p132
      %p427 = scmp.lt.s32.totalorder %s26, 1
      %s428 = scalar_select %p427, %s26, 1
      %s429 = scalar_lea.vmem %s4, %s428
      %p430 = pneg %p161
      %p431 = pneg %p158
      %p432 = pneg %p182
      %p433 = pneg %p179
      %p434 = pneg %p203
      %p435 = pneg %p200
      %p436 = pneg %p224
      %p437 = pneg %p221
      %p438 = pneg %p245
      %p439 = pneg %p242
      %p440 = pneg %p266
      %p441 = pneg %p263
      %p442 = pneg %p287
      %p443 = pneg %p284
      %p444 = pneg %p315
      %p445 = pneg %p312
      %p446 = scmp.lt.s32.totalorder %s26, 1
      %s447 = scalar_select %p446, %s26, 1
      %p448 = scmp.lt.s32.totalorder %s27, 0
      %s449 = scalar_select %p448, %s27, 0
      %s450 = sadd.s32 %s449, %s447
      %s451 = smul.addr %s450, 4
      %s452 = scalar_lea.vmem %s11, %s451
      %p453 = scmp.lt.s32.totalorder %s26, 1
      %s454 = scalar_select %p453, %s26, 1
      %p455 = scmp.lt.s32.totalorder %s27, 0
      %s456 = scalar_select %p455, %s27, 0
      %s457 = sadd.s32 %s456, %s454
      %s458 = smul.addr %s457, 4
      %s459 = scalar_lea.vmem %s0, %s458
      %p460 = scmp.lt.s32.totalorder %s27, 0
      %s461 = scalar_select %p460, %s27, 0
      %s462 = smul.addr %s461, 4
      %s463 = scalar_lea.vmem %s1, %s462
      %p464 = scmp.lt.s32.totalorder %s26, 1
      %s465 = scalar_select %p464, %s26, 1
      %s466 = smul.addr %s465, 2
      %s467 = smul.addr %s466, 4
      %s468 = scalar_lea.vmem %s2, %s467
      %p469 = scmp.lt.s32.totalorder %s26, 1
      %s470 = scalar_select %p469, %s26, 1
      %s471 = smul.addr %s470, 2
      %s472 = smul.addr %s471, 4
      %s473 = scalar_lea.vmem %s3, %s472
      %p474 = scmp.lt.s32.totalorder %s26, 1
      %s475 = scalar_select %p474, %s26, 1
      %s476 = scalar_lea.vmem %s4, %s475
      %p477 = scmp.lt.s32.totalorder %s26, 1
      %s478 = scalar_select %p477, %s26, 1
      %p479 = scmp.lt.s32.totalorder %s27, 0
      %s480 = scalar_select %p479, %s27, 0
      %s481 = sadd.s32 %s480, %s478
      %s482 = smul.addr %s481, 4
      %s483 = scalar_lea.vmem %s11, %s482
      %v485 = vld [vmem:[%s5] sm:$0xf]
      %v486 = vld [vmem:[%s5 + $0x4] sm:$0xf]
      %v487 = vld [vmem:[%s5 + $0x8] sm:$0xf]
      %v488 = vld [vmem:[%s5 + $0xc] sm:$0xf]
      %v489 = vld [vmem:[%s6] sm:$0x1]
      %p490 = scmp.eq.s32.totalorder %s27, 0
      // Predicated region
      $region65: #{transformer_forward.16} parent=63 // pred_check
        %p491 = pneg %p490
      $region66: #{transformer_forward.16} parent=63 // pred_check_branch
        %493 = sbr.rel (%p491) target = $region68
      $region67: #{transformer_forward.16} parent=63 // pred_region
        %v494 = vld [vmem:[%s468] sm:$0xf]
        %v495 = vld [vmem:[%s468 + $0x4] sm:$0xf]
        %v496 = vunpack.c.l.bf16 %v494
        %v497 = vunpack.c.l.bf16 %v495
        %v498 = vld [vmem:[%s473] sm:$0xf]
        %v499 = vld [vmem:[%s473 + $0x4] sm:$0xf]
        %v500 = vunpack.c.l.bf16 %v498
        %v501 = vunpack.c.l.bf16 %v499
        %v502 = vadd.f32 %v496, %v500
        %v503 = vadd.f32 %v497, %v501
        %v504 = vpack.c.bf16 %v503, %v502
        %v506 = vlaneseq
        %v507 = vshrl.u32 %v506, 7
        %v508 = vsub.s32 0, %v507
        %v509 = vrot.slane %v489, %v508
        %v514 = vunpack.c.l.b16 %v485
        %v515 = vunpack.c.l.b16 %v486
        %v516 = vunpack.c.l.b16 %v487
        %v517 = vunpack.c.l.b16 %v488
        %v518 = vpack.c.b16 %v515, %v514
        %v519 = vpack.c.b16 %v517, %v516
        %520 = vrot.lane.b32.xlu0 %v518, 96
        %v521 = vpop.permute.xlu0 %520
        %522 = vrot.lane.b32.xlu0 %v519, 96
        %v523 = vpop.permute.xlu0 %522
        %526 = vrot.lane.b32.xlu0 %v509, 96
        %v527 = vpop.permute.xlu0 %526
        %vm529 = vcmask 261120
        %v531 = vsel %vm529, %v504, 0
        %533 = vmatprep.subr.bf16.mxu0 0
        %534 = vmatpush1.bf16.msra.mxu0 %v521
        %535 = vmatprep.subr.bf16.mxu0 0
        %536 = vmatpush1.bf16.msra.mxu0 %v523
        %537 = vmatprep.subr.bf16.mxu0 0
        %538 = vmatpush1.bf16.msra.mxu0 0
        %539 = vmatprep.subr.bf16.mxu0 0
        %540 = vmatpush1.bf16.msra.mxu0 0
        %541 = vmatprep.subr.bf16.mxu0 0
        %542 = vmatpush1.bf16.msra.mxu0 0
        %543 = vmatprep.subr.bf16.mxu0 0
        %544 = vmatpush1.bf16.msra.mxu0 0
        %545 = vmatprep.subr.bf16.mxu0 0
        %546 = vmatpush1.bf16.msra.mxu0 0
        %547 = vmatprep.subr.bf16.mxu0 0
        %548 = vmatpush1.bf16.msra.mxu0 0
        %549 = vmatprep.subr.bf16.mxu0 0
        %550 = vmatpush1.bf16.msra.mxu0 0
        %551 = vmatprep.subr.bf16.mxu0 0
        %552 = vmatpush1.bf16.msra.mxu0 0
        %553 = vmatprep.subr.bf16.mxu0 0
        %554 = vmatpush1.bf16.msra.mxu0 0
        %555 = vmatprep.subr.bf16.mxu0 0
        %556 = vmatpush1.bf16.msra.mxu0 0
        %557 = vmatprep.subr.bf16.mxu0 0
        %558 = vmatpush1.bf16.msra.mxu0 0
        %559 = vmatprep.subr.bf16.mxu0 0
        %560 = vmatpush1.bf16.msra.mxu0 0
        %561 = vmatprep.subr.bf16.mxu0 0
        %562 = vmatpush1.bf16.msra.mxu0 0
        %563 = vmatprep.subr.bf16.mxu0 0
        %564 = vmatpush1.bf16.msra.mxu0 0
        %565 = vmatprep.mubr.bf16.mxu0 0
        %566 = vmatmul.mubr.bf16.gmra.mrb[0].mxu0 %v531
        %v567 = vpop.f32.mrb[0].mxu0
        %v568 = vadd.f32 %v527, %v567
        %v569 = vpop.f32.mrb[0].mxu0
        %v570 = vpop.f32.mrb[0].mxu0
        %v571 = vadd.f32 %v527, %v570
        %v572 = vpop.f32.mrb[0].mxu0
        %573 = vdwg.mxu0
        %v576 = vunpack.c.l.b16 %v494
        %v577 = vunpack.c.l.b16 %v495
        %v578 = vpack.c.b16 %v577, %v576
        %579 = vrot.lane.b32.xlu0 %v518, 64
        %v580 = vpop.permute.xlu0 %579
        %581 = vrot.lane.b32.xlu0 %v519, 64
        %v582 = vpop.permute.xlu0 %581
        %585 = vrot.lane.b32.xlu0 %v509, 64
        %v586 = vpop.permute.xlu0 %585
        %v589 = vsel %vm529, %v578, 0
        %591 = vmatprep.subr.bf16.mxu0 0
        %592 = vmatpush1.bf16.msra.mxu0 %v580
        %593 = vmatprep.subr.bf16.mxu0 0
        %594 = vmatpush1.bf16.msra.mxu0 %v582
        %595 = vmatprep.subr.bf16.mxu0 0
        %596 = vmatpush1.bf16.msra.mxu0 0
        %597 = vmatprep.subr.bf16.mxu0 0
        %598 = vmatpush1.bf16.msra.mxu0 0
        %599 = vmatprep.subr.bf16.mxu0 0
        %600 = vmatpush1.bf16.msra.mxu0 0
        %601 = vmatprep.subr.bf16.mxu0 0
        %602 = vmatpush1.bf16.msra.mxu0 0
        %603 = vmatprep.subr.bf16.mxu0 0
        %604 = vmatpush1.bf16.msra.mxu0 0
        %605 = vmatprep.subr.bf16.mxu0 0
        %606 = vmatpush1.bf16.msra.mxu0 0
        %607 = vmatprep.subr.bf16.mxu0 0
        %608 = vmatpush1.bf16.msra.mxu0 0
        %609 = vmatprep.subr.bf16.mxu0 0
        %610 = vmatpush1.bf16.msra.mxu0 0
        %611 = vmatprep.subr.bf16.mxu0 0
        %612 = vmatpush1.bf16.msra.mxu0 0
        %613 = vmatprep.subr.bf16.mxu0 0
        %614 = vmatpush1.bf16.msra.mxu0 0
        %615 = vmatprep.subr.bf16.mxu0 0
        %616 = vmatpush1.bf16.msra.mxu0 0
        %617 = vmatprep.subr.bf16.mxu0 0
        %618 = vmatpush1.bf16.msra.mxu0 0
        %619 = vmatprep.subr.bf16.mxu0 0
        %620 = vmatpush1.bf16.msra.mxu0 0
        %621 = vmatprep.subr.bf16.mxu0 0
        %622 = vmatpush1.bf16.msra.mxu0 0
        %623 = vmatprep.mubr.bf16.mxu0 0
        %624 = vmatmul.mubr.bf16.gmra.mrb[0].mxu0 %v589
        %v625 = vpop.f32.mrb[0].mxu0
        %v626 = vadd.f32 %v586, %v625
        %v627 = vpop.f32.mrb[0].mxu0
        %v628 = vpop.f32.mrb[0].mxu0
        %v629 = vadd.f32 %v586, %v628
        %v630 = vpop.f32.mrb[0].mxu0
        %631 = vdwg.mxu0
        %v632 = vpack.c.bf16 %v571, %v568
        %633 = vst.msk [vmem:[#allocation2] sm:$0xff] %vm529, %v632
        %v634 = vpack.c.bf16 %v629, %v626
        %635 = vst.msk [vmem:[#allocation3] sm:$0xff] %vm529, %v634
      $region68: #{transformer_forward.16} parent=63 // pred_fallthru
        _
      %v636 = vld [vmem:[%s459] sm:$0xf]
      %v637 = vunpack.c.l.bf16 %v636
      %v638 = vld [vmem:[%s463] sm:$0xf]
      %v639 = vunpack.c.l.bf16 %v638
      %v640 = vadd.f32 %v637, %v639
      %v641 = vpack.c.bf16 %v640, %v640
      %v643 = vlaneseq
      %v644 = vshrl.u32 %v643, 7
      %v645 = vsub.s32 0, %v644
      %v646 = vrot.slane %v489, %v645
      %v652 = vunpack.c.l.b16 %v485
      %v653 = vunpack.c.l.b16 %v486
      %v654 = vunpack.c.l.b16 %v487
      %v655 = vunpack.c.l.b16 %v488
      %v656 = vpack.c.b16 %v653, %v652
      %v657 = vpack.c.b16 %v655, %v654
      %vm660 = vcmask 261120
      %v662 = vsel %vm660, %v641, 0
      %664 = vmatprep.subr.bf16.mxu0 0
      %665 = vmatpush1.bf16.msra.mxu0 %v656
      %666 = vmatprep.subr.bf16.mxu0 0
      %667 = vmatpush1.bf16.msra.mxu0 %v657
      %668 = vmatprep.subr.bf16.mxu0 0
      %669 = vmatpush1.bf16.msra.mxu0 0
      %670 = vmatprep.subr.bf16.mxu0 0
      %671 = vmatpush1.bf16.msra.mxu0 0
      %672 = vmatprep.subr.bf16.mxu0 0
      %673 = vmatpush1.bf16.msra.mxu0 0
      %674 = vmatprep.subr.bf16.mxu0 0
      %675 = vmatpush1.bf16.msra.mxu0 0
      %676 = vmatprep.subr.bf16.mxu0 0
      %677 = vmatpush1.bf16.msra.mxu0 0
      %678 = vmatprep.subr.bf16.mxu0 0
      %679 = vmatpush1.bf16.msra.mxu0 0
      %680 = vmatprep.subr.bf16.mxu0 0
      %681 = vmatpush1.bf16.msra.mxu0 0
      %682 = vmatprep.subr.bf16.mxu0 0
      %683 = vmatpush1.bf16.msra.mxu0 0
      %684 = vmatprep.subr.bf16.mxu0 0
      %685 = vmatpush1.bf16.msra.mxu0 0
      %686 = vmatprep.subr.bf16.mxu0 0
      %687 = vmatpush1.bf16.msra.mxu0 0
      %688 = vmatprep.subr.bf16.mxu0 0
      %689 = vmatpush1.bf16.msra.mxu0 0
      %690 = vmatprep.subr.bf16.mxu0 0
      %691 = vmatpush1.bf16.msra.mxu0 0
      %692 = vmatprep.subr.bf16.mxu0 0
      %693 = vmatpush1.bf16.msra.mxu0 0
      %694 = vmatprep.subr.bf16.mxu0 0
      %695 = vmatpush1.bf16.msra.mxu0 0
      %696 = vmatprep.mubr.bf16.mxu0 0
      %697 = vmatmul.mubr.bf16.gmra.mrb[0].mxu0 %v662
      %v698 = vpop.f32.mrb[0].mxu0
      %v699 = vadd.f32 %v646, %v698
      %v700 = vpop.f32.mrb[0].mxu0
      %v701 = vpop.f32.mrb[0].mxu0
      %v702 = vpop.f32.mrb[0].mxu0
      %703 = vdwg.mxu0
      %v704 = vpack.c.bf16 %v699, %v699
      %v705 = vld [vmem:[#allocation2] sm:$0xff]
      %v706 = vld [vmem:[#allocation3] sm:$0xff]
      %v707 = vld [vmem:[%s476] sm:$0x1]
      %v709 = vlaneseq
      %v710 = vshrl.u32 %v709, 7
      %v711 = vsub.s32 0, %v710
      %v712 = vrot.slane %v707, %v711
      %vm714 = vcmask 64512
      %v716 = vsel %vm714, %v704, 0
      %v719 = vsel %vm714, %v705, 0
      %721 = vmatprep.subr.bf16.mxu0 0
      %722 = vmatpush1.bf16.xpose.msra.mxu0 %v719
      %723 = vmatprep.subr.bf16.mxu0 0
      %724 = vmatpush1.bf16.xpose.msra.mxu0 0
      %725 = vmatprep.subr.bf16.mxu0 0
      %726 = vmatpush1.bf16.xpose.msra.mxu0 0
      %727 = vmatprep.subr.bf16.mxu0 0
      %728 = vmatpush1.bf16.xpose.msra.mxu0 0
      %729 = vmatprep.subr.bf16.mxu0 0
      %730 = vmatpush1.bf16.xpose.msra.mxu0 0
      %731 = vmatprep.subr.bf16.mxu0 0
      %732 = vmatpush1.bf16.xpose.msra.mxu0 0
      %733 = vmatprep.subr.bf16.mxu0 0
      %734 = vmatpush1.bf16.xpose.msra.mxu0 0
      %735 = vmatprep.subr.bf16.mxu0 0
      %736 = vmatpush1.bf16.xpose.msra.mxu0 0
      %737 = vmatprep.subr.bf16.mxu0 0
      %738 = vmatpush1.bf16.xpose.msra.mxu0 0
      %739 = vmatprep.subr.bf16.mxu0 0
      %740 = vmatpush1.bf16.xpose.msra.mxu0 0
      %741 = vmatprep.subr.bf16.mxu0 0
      %742 = vmatpush1.bf16.xpose.msra.mxu0 0
      %743 = vmatprep.subr.bf16.mxu0 0
      %744 = vmatpush1.bf16.xpose.msra.mxu0 0
      %745 = vmatprep.subr.bf16.mxu0 0
      %746 = vmatpush1.bf16.xpose.msra.mxu0 0
      %747 = vmatprep.subr.bf16.mxu0 0
      %748 = vmatpush1.bf16.xpose.msra.mxu0 0
      %749 = vmatprep.subr.bf16.mxu0 0
      %750 = vmatpush1.bf16.xpose.msra.mxu0 0
      %751 = vmatprep.subr.bf16.mxu0 0
      %752 = vmatpush1.bf16.xpose.msra.mxu0 0
      %753 = vmatprep.mubr.bf16.mxu0 0
      %754 = vmatmul.mubr.bf16.gmra.mrb[0].mxu0 %v716
      %v755 = vpop.f32.mrb[0].mxu0
      %v756 = vadd.f32 %v712, %v755
      %v757 = vpop.f32.mrb[0].mxu0
      %v758 = vpop.f32.mrb[0].mxu0
      %v759 = vpop.f32.mrb[0].mxu0
      %760 = vdwg.mxu0
      %vm761 = vcmask 130048
      %v762 = vsel %vm761, %v756, -inf
      %763 = vmax.xlane.f32.xlu0 %v762
      %v764 = vpop.xlane.xlu0 %763
      %v765 = vsub.f32 %v756, %v764
      %v766 = vmul.f32 %v765, 1.442695
      %v767 = vpow.pop %v766
      %v768 = vsel %vm761, %v767, 0.0
      %769 = vadd.xlane.f32.xlu0 %v768
      %v770 = vpop.xlane.xlu0 %769
      %v771 = vrcp.pop %v770
      %v772 = vmul.f32 %v767, %v771
      %v773 = vpack.c.bf16 %v772, %v772
      %v775 = vsel %vm761, %v773, 0
      %777 = vmatprep.subr.bf16.mxu0 0
      %778 = vmatpush1.bf16.msra.mxu0 %v706
      %779 = vmatprep.subr.bf16.mxu0 0
      %780 = vmatpush1.bf16.msra.mxu0 0
      %781 = vmatprep.subr.bf16.mxu0 0
      %782 = vmatpush1.bf16.msra.mxu0 0
      %783 = vmatprep.subr.bf16.mxu0 0
      %784 = vmatpush1.bf16.msra.mxu0 0
      %785 = vmatprep.subr.bf16.mxu0 0
      %786 = vmatpush1.bf16.msra.mxu0 0
      %787 = vmatprep.subr.bf16.mxu0 0
      %788 = vmatpush1.bf16.msra.mxu0 0
      %789 = vmatprep.subr.bf16.mxu0 0
      %790 = vmatpush1.bf16.msra.mxu0 0
      %791 = vmatprep.subr.bf16.mxu0 0
      %792 = vmatpush1.bf16.msra.mxu0 0
      %793 = vmatprep.subr.bf16.mxu0 0
      %794 = vmatpush1.bf16.msra.mxu0 0
      %795 = vmatprep.subr.bf16.mxu0 0
      %796 = vmatpush1.bf16.msra.mxu0 0
      %797 = vmatprep.subr.bf16.mxu0 0
      %798 = vmatpush1.bf16.msra.mxu0 0
      %799 = vmatprep.subr.bf16.mxu0 0
      %800 = vmatpush1.bf16.msra.mxu0 0
      %801 = vmatprep.subr.bf16.mxu0 0
      %802 = vmatpush1.bf16.msra.mxu0 0
      %803 = vmatprep.subr.bf16.mxu0 0
      %804 = vmatpush1.bf16.msra.mxu0 0
      %805 = vmatprep.subr.bf16.mxu0 0
      %806 = vmatpush1.bf16.msra.mxu0 0
      %807 = vmatprep.subr.bf16.mxu0 0
      %808 = vmatpush1.bf16.msra.mxu0 0
      %809 = vmatprep.mubr.bf16.mxu0 0
      %810 = vmatmul.mubr.bf16.gmra.mrb[0].mxu0 %v775
      %v811 = vpop.f32.mrb[0].mxu0
      %v812 = vadd.f32 0.0, %v811
      %v813 = vpop.f32.mrb[0].mxu0
      %v814 = vpop.f32.mrb[0].mxu0
      %v815 = vpop.f32.mrb[0].mxu0
      %816 = vdwg.mxu0
      %818 = vrot.lane.b32.xlu0 %v704, 120
      %v819 = vpop.permute.xlu0 %818
      %821 = vrot.lane.b32.xlu0 %v705, 120
      %v822 = vpop.permute.xlu0 %821
      %v824 = vsel %vm714, %v819, 0
      %v827 = vsel %vm714, %v822, 0
      %829 = vmatprep.subr.bf16.mxu0 0
      %830 = vmatpush1.bf16.xpose.msra.mxu0 %v827
      %831 = vmatprep.subr.bf16.mxu0 0
      %832 = vmatpush1.bf16.xpose.msra.mxu0 0
      %833 = vmatprep.subr.bf16.mxu0 0
      %834 = vmatpush1.bf16.xpose.msra.mxu0 0
      %835 = vmatprep.subr.bf16.mxu0 0
      %836 = vmatpush1.bf16.xpose.msra.mxu0 0
      %837 = vmatprep.subr.bf16.mxu0 0
      %838 = vmatpush1.bf16.xpose.msra.mxu0 0
      %839 = vmatprep.subr.bf16.mxu0 0
      %840 = vmatpush1.bf16.xpose.msra.mxu0 0
      %841 = vmatprep.subr.bf16.mxu0 0
      %842 = vmatpush1.bf16.xpose.msra.mxu0 0
      %843 = vmatprep.subr.bf16.mxu0 0
      %844 = vmatpush1.bf16.xpose.msra.mxu0 0
      %845 = vmatprep.subr.bf16.mxu0 0
      %846 = vmatpush1.bf16.xpose.msra.mxu0 0
      %847 = vmatprep.subr.bf16.mxu0 0
      %848 = vmatpush1.bf16.xpose.msra.mxu0 0
      %849 = vmatprep.subr.bf16.mxu0 0
      %850 = vmatpush1.bf16.xpose.msra.mxu0 0
      %851 = vmatprep.subr.bf16.mxu0 0
      %852 = vmatpush1.bf16.xpose.msra.mxu0 0
      %853 = vmatprep.subr.bf16.mxu0 0
      %854 = vmatpush1.bf16.xpose.msra.mxu0 0
      %855 = vmatprep.subr.bf16.mxu0 0
      %856 = vmatpush1.bf16.xpose.msra.mxu0 0
      %857 = vmatprep.subr.bf16.mxu0 0
      %858 = vmatpush1.bf16.xpose.msra.mxu0 0
      %859 = vmatprep.subr.bf16.mxu0 0
      %860 = vmatpush1.bf16.xpose.msra.mxu0 0
      %861 = vmatprep.mubr.bf16.mxu0 0
      %862 = vmatmul.mubr.bf16.gmra.mrb[0].mxu0 %v824
      %v863 = vpop.f32.mrb[0].mxu0
      %v864 = vadd.f32 %v712, %v863
      %v865 = vpop.f32.mrb[0].mxu0
      %v866 = vpop.f32.mrb[0].mxu0
      %v867 = vpop.f32.mrb[0].mxu0
      %868 = vdwg.mxu0
      %v869 = vsel %vm761, %v864, -inf
      %870 = vmax.xlane.f32.xlu0 %v869
      %v871 = vpop.xlane.xlu0 %870
      %v872 = vsub.f32 %v864, %v871
      %v873 = vmul.f32 %v872, 1.442695
      %v874 = vpow.pop %v873
      %v875 = vsel %vm761, %v874, 0.0
      %876 = vadd.xlane.f32.xlu0 %v875
      %v877 = vpop.xlane.xlu0 %876
      %v878 = vrcp.pop %v877
      %v879 = vmul.f32 %v874, %v878
      %v880 = vpack.c.bf16 %v879, %v879
      %882 = vrot.lane.b32.xlu0 %v706, 120
      %v883 = vpop.permute.xlu0 %882
      %v886 = vsel %vm761, %v880, 0
      %888 = vmatprep.subr.bf16.mxu0 0
      %889 = vmatpush1.bf16.msra.mxu0 %v883
      %890 = vmatprep.subr.bf16.mxu0 0
      %891 = vmatpush1.bf16.msra.mxu0 0
      %892 = vmatprep.subr.bf16.mxu0 0
      %893 = vmatpush1.bf16.msra.mxu0 0
      %894 = vmatprep.subr.bf16.mxu0 0
      %895 = vmatpush1.bf16.msra.mxu0 0
      %896 = vmatprep.subr.bf16.mxu0 0
      %897 = vmatpush1.bf16.msra.mxu0 0
      %898 = vmatprep.subr.bf16.mxu0 0
      %899 = vmatpush1.bf16.msra.mxu0 0
      %900 = vmatprep.subr.bf16.mxu0 0
      %901 = vmatpush1.bf16.msra.mxu0 0
      %902 = vmatprep.subr.bf16.mxu0 0
      %903 = vmatpush1.bf16.msra.mxu0 0
      %904 = vmatprep.subr.bf16.mxu0 0
      %905 = vmatpush1.bf16.msra.mxu0 0
      %906 = vmatprep.subr.bf16.mxu0 0
      %907 = vmatpush1.bf16.msra.mxu0 0
      %908 = vmatprep.subr.bf16.mxu0 0
      %909 = vmatpush1.bf16.msra.mxu0 0
      %910 = vmatprep.subr.bf16.mxu0 0
      %911 = vmatpush1.bf16.msra.mxu0 0
      %912 = vmatprep.subr.bf16.mxu0 0
      %913 = vmatpush1.bf16.msra.mxu0 0
      %914 = vmatprep.subr.bf16.mxu0 0
      %915 = vmatpush1.bf16.msra.mxu0 0
      %916 = vmatprep.subr.bf16.mxu0 0
      %917 = vmatpush1.bf16.msra.mxu0 0
      %918 = vmatprep.subr.bf16.mxu0 0
      %919 = vmatpush1.bf16.msra.mxu0 0
      %920 = vmatprep.mubr.bf16.mxu0 0
      %921 = vmatmul.mubr.bf16.gmra.mrb[0].mxu0 %v886
      %v922 = vpop.f32.mrb[0].mxu0
      %v923 = vadd.f32 0.0, %v922
      %v924 = vpop.f32.mrb[0].mxu0
      %v925 = vpop.f32.mrb[0].mxu0
      %v926 = vpop.f32.mrb[0].mxu0
      %927 = vdwg.mxu0
      %928 = vrot.lane.b32.xlu0 %v704, 112
      %v929 = vpop.permute.xlu0 %928
      %930 = vrot.lane.b32.xlu0 %v705, 112
      %v931 = vpop.permute.xlu0 %930
      %v933 = vsel %vm714, %v929, 0
      %v936 = vsel %vm714, %v931, 0
      %938 = vmatprep.subr.bf16.mxu0 0
      %939 = vmatpush1.bf16.xpose.msra.mxu0 %v936
      %940 = vmatprep.subr.bf16.mxu0 0
      %941 = vmatpush1.bf16.xpose.msra.mxu0 0
      %942 = vmatprep.subr.bf16.mxu0 0
      %943 = vmatpush1.bf16.xpose.msra.mxu0 0
      %944 = vmatprep.subr.bf16.mxu0 0
      %945 = vmatpush1.bf16.xpose.msra.mxu0 0
      %946 = vmatprep.subr.bf16.mxu0 0
      %947 = vmatpush1.bf16.xpose.msra.mxu0 0
      %948 = vmatprep.subr.bf16.mxu0 0
      %949 = vmatpush1.bf16.xpose.msra.mxu0 0
      %950 = vmatprep.subr.bf16.mxu0 0
      %951 = vmatpush1.bf16.xpose.msra.mxu0 0
      %952 = vmatprep.subr.bf16.mxu0 0
      %953 = vmatpush1.bf16.xpose.msra.mxu0 0
      %954 = vmatprep.subr.bf16.mxu0 0
      %955 = vmatpush1.bf16.xpose.msra.mxu0 0
      %956 = vmatprep.subr.bf16.mxu0 0
      %957 = vmatpush1.bf16.xpose.msra.mxu0 0
      %958 = vmatprep.subr.bf16.mxu0 0
      %959 = vmatpush1.bf16.xpose.msra.mxu0 0
      %960 = vmatprep.subr.bf16.mxu0 0
      %961 = vmatpush1.bf16.xpose.msra.mxu0 0
      %962 = vmatprep.subr.bf16.mxu0 0
      %963 = vmatpush1.bf16.xpose.msra.mxu0 0
      %964 = vmatprep.subr.bf16.mxu0 0
      %965 = vmatpush1.bf16.xpose.msra.mxu0 0
      %966 = vmatprep.subr.bf16.mxu0 0
      %967 = vmatpush1.bf16.xpose.msra.mxu0 0
      %968 = vmatprep.subr.bf16.mxu0 0
      %969 = vmatpush1.bf16.xpose.msra.mxu0 0
      %970 = vmatprep.mubr.bf16.mxu0 0
      %971 = vmatmul.mubr.bf16.gmra.mrb[0].mxu0 %v933
      %v972 = vpop.f32.mrb[0].mxu0
      %v973 = vadd.f32 %v712, %v972
      %v974 = vpop.f32.mrb[0].mxu0
      %v975 = vpop.f32.mrb[0].mxu0
      %v976 = vpop.f32.mrb[0].mxu0
      %977 = vdwg.mxu0
      %v978 = vsel %vm761, %v973, -inf
      %979 = vmax.xlane.f32.xlu0 %v978
      %v980 = vpop.xlane.xlu0 %979
      %v981 = vsub.f32 %v973, %v980
      %v982 = vmul.f32 %v981, 1.442695
      %v983 = vpow.pop %v982
      %v984 = vsel %vm761, %v983, 0.0
      %985 = vadd.xlane.f32.xlu0 %v984
      %v986 = vpop.xlane.xlu0 %985
      %v987 = vrcp.pop %v986
      %v988 = vmul.f32 %v983, %v987
      %v989 = vpack.c.bf16 %v988, %v988
      %990 = vrot.lane.b32.xlu0 %v706, 112
      %v991 = vpop.permute.xlu0 %990
      %v994 = vsel %vm761, %v989, 0
      %996 = vmatprep.subr.bf16.mxu0 0
      %997 = vmatpush1.bf16.msra.mxu0 %v991
      %998 = vmatprep.subr.bf16.mxu0 0
      %999 = vmatpush1.bf16.msra.mxu0 0
      %1000 = vmatprep.subr.bf16.mxu0 0
      %1001 = vmatpush1.bf16.msra.mxu0 0
      %1002 = vmatprep.subr.bf16.mxu0 0
      %1003 = vmatpush1.bf16.msra.mxu0 0
      %1004 = vmatprep.subr.bf16.mxu0 0
      %1005 = vmatpush1.bf16.msra.mxu0 0
      %1006 = vmatprep.subr.bf16.mxu0 0
      %1007 = vmatpush1.bf16.msra.mxu0 0
      %1008 = vmatprep.subr.bf16.mxu0 0
      %1009 = vmatpush1.bf16.msra.mxu0 0
      %1010 = vmatprep.subr.bf16.mxu0 0
      %1011 = vmatpush1.bf16.msra.mxu0 0
      %1012 = vmatprep.subr.bf16.mxu0 0
      %1013 = vmatpush1.bf16.msra.mxu0 0
      %1014 = vmatprep.subr.bf16.mxu0 0
      %1015 = vmatpush1.bf16.msra.mxu0 0
      %1016 = vmatprep.subr.bf16.mxu0 0
      %1017 = vmatpush1.bf16.msra.mxu0 0
      %1018 = vmatprep.subr.bf16.mxu0 0
      %1019 = vmatpush1.bf16.msra.mxu0 0
      %1020 = vmatprep.subr.bf16.mxu0 0
      %1021 = vmatpush1.bf16.msra.mxu0 0
      %1022 = vmatprep.subr.bf16.mxu0 0
      %1023 = vmatpush1.bf16.msra.mxu0 0
      %1024 = vmatprep.subr.bf16.mxu0 0
      %1025 = vmatpush1.bf16.msra.mxu0 0
      %1026 = vmatprep.subr.bf16.mxu0 0
      %1027 = vmatpush1.bf16.msra.mxu0 0
      %1028 = vmatprep.mubr.bf16.mxu0 0
      %1029 = vmatmul.mubr.bf16.gmra.mrb[0].mxu0 %v994
      %v1030 = vpop.f32.mrb[0].mxu0
      %v1031 = vadd.f32 0.0, %v1030
      %v1032 = vpop.f32.mrb[0].mxu0
      %v1033 = vpop.f32.mrb[0].mxu0
      %v1034 = vpop.f32.mrb[0].mxu0
      %1035 = vdwg.mxu0
      %1036 = vrot.lane.b32.xlu0 %v704, 104
      %v1037 = vpop.permute.xlu0 %1036
      %1038 = vrot.lane.b32.xlu0 %v705, 104
      %v1039 = vpop.permute.xlu0 %1038
      %v1041 = vsel %vm714, %v1037, 0
      %v1044 = vsel %vm714, %v1039, 0
      %1046 = vmatprep.subr.bf16.mxu0 0
      %1047 = vmatpush1.bf16.xpose.msra.mxu0 %v1044
      %1048 = vmatprep.subr.bf16.mxu0 0
      %1049 = vmatpush1.bf16.xpose.msra.mxu0 0
      %1050 = vmatprep.subr.bf16.mxu0 0
      %1051 = vmatpush1.bf16.xpose.msra.mxu0 0
      %1052 = vmatprep.subr.bf16.mxu0 0
      %1053 = vmatpush1.bf16.xpose.msra.mxu0 0
      %1054 = vmatprep.subr.bf16.mxu0 0
      %1055 = vmatpush1.bf16.xpose.msra.mxu0 0
      %1056 = vmatprep.subr.bf16.mxu0 0
      %1057 = vmatpush1.bf16.xpose.msra.mxu0 0
      %1058 = vmatprep.subr.bf16.mxu0 0
      %1059 = vmatpush1.bf16.xpose.msra.mxu0 0
      %1060 = vmatprep.subr.bf16.mxu0 0
      %1061 = vmatpush1.bf16.xpose.msra.mxu0 0
      %1062 = vmatprep.subr.bf16.mxu0 0
      %1063 = vmatpush1.bf16.xpose.msra.mxu0 0
      %1064 = vmatprep.subr.bf16.mxu0 0
      %1065 = vmatpush1.bf16.xpose.msra.mxu0 0
      %1066 = vmatprep.subr.bf16.mxu0 0
      %1067 = vmatpush1.bf16.xpose.msra.mxu0 0
      %1068 = vmatprep.subr.bf16.mxu0 0
      %1069 = vmatpush1.bf16.xpose.msra.mxu0 0
      %1070 = vmatprep.subr.bf16.mxu0 0
      %1071 = vmatpush1.bf16.xpose.msra.mxu0 0
      %1072 = vmatprep.subr.bf16.mxu0 0
      %1073 = vmatpush1.bf16.xpose.msra.mxu0 0
      %1074 = vmatprep.subr.bf16.mxu0 0
      %1075 = vmatpush1.bf16.xpose.msra.mxu0 0
      %1076 = vmatprep.subr.bf16.mxu0 0
      %1077 = vmatpush1.bf16.xpose.msra.mxu0 0
      %1078 = vmatprep.mubr.bf16.mxu0 0
      %1079 = vmatmul.mubr.bf16.gmra.mrb[0].mxu0 %v1041
      %v1080 = vpop.f32.mrb[0].mxu0
      %v1081 = vadd.f32 %v712, %v1080
      %v1082 = vpop.f32.mrb[0].mxu0
      %v1083 = vpop.f32.mrb[0].mxu0
      %v1084 = vpop.f32.mrb[0].mxu0
      %1085 = vdwg.mxu0
      %v1086 = vsel %vm761, %v1081, -inf
      %1087 = vmax.xlane.f32.xlu0 %v1086
      %v1088 = vpop.xlane.xlu0 %1087
      %v1089 = vsub.f32 %v1081, %v1088
      %v1090 = vmul.f32 %v1089, 1.442695
      %v1091 = vpow.pop %v1090
      %v1092 = vsel %vm761, %v1091, 0.0
      %1093 = vadd.xlane.f32.xlu0 %v1092
      %v1094 = vpop.xlane.xlu0 %1093
      %v1095 = vrcp.pop %v1094
      %v1096 = vmul.f32 %v1091, %v1095
      %v1097 = vpack.c.bf16 %v1096, %v1096
      %1098 = vrot.lane.b32.xlu0 %v706, 104
      %v1099 = vpop.permute.xlu0 %1098
      %v1102 = vsel %vm761, %v1097, 0
      %1104 = vmatprep.subr.bf16.mxu0 0
      %1105 = vmatpush1.bf16.msra.mxu0 %v1099
      %1106 = vmatprep.subr.bf16.mxu0 0
      %1107 = vmatpush1.bf16.msra.mxu0 0
      %1108 = vmatprep.subr.bf16.mxu0 0
      %1109 = vmatpush1.bf16.msra.mxu0 0
      %1110 = vmatprep.subr.bf16.mxu0 0
      %1111 = vmatpush1.bf16.msra.mxu0 0
      %1112 = vmatprep.subr.bf16.mxu0 0
      %1113 = vmatpush1.bf16.msra.mxu0 0
      %1114 = vmatprep.subr.bf16.mxu0 0
      %1115 = vmatpush1.bf16.msra.mxu0 0
      %1116 = vmatprep.subr.bf16.mxu0 0
      %1117 = vmatpush1.bf16.msra.mxu0 0
      %1118 = vmatprep.subr.bf16.mxu0 0
      %1119 = vmatpush1.bf16.msra.mxu0 0
      %1120 = vmatprep.subr.bf16.mxu0 0
      %1121 = vmatpush1.bf16.msra.mxu0 0
      %1122 = vmatprep.subr.bf16.mxu0 0
      %1123 = vmatpush1.bf16.msra.mxu0 0
      %1124 = vmatprep.subr.bf16.mxu0 0
      %1125 = vmatpush1.bf16.msra.mxu0 0
      %1126 = vmatprep.subr.bf16.mxu0 0
      %1127 = vmatpush1.bf16.msra.mxu0 0
      %1128 = vmatprep.subr.bf16.mxu0 0
      %1129 = vmatpush1.bf16.msra.mxu0 0
      %1130 = vmatprep.subr.bf16.mxu0 0
      %1131 = vmatpush1.bf16.msra.mxu0 0
      %1132 = vmatprep.subr.bf16.mxu0 0
      %1133 = vmatpush1.bf16.msra.mxu0 0
      %1134 = vmatprep.subr.bf16.mxu0 0
      %1135 = vmatpush1.bf16.msra.mxu0 0
      %1136 = vmatprep.mubr.bf16.mxu0 0
      %1137 = vmatmul.mubr.bf16.gmra.mrb[0].mxu0 %v1102
      %v1138 = vpop.f32.mrb[0].mxu0
      %v1139 = vadd.f32 0.0, %v1138
      %v1140 = vpop.f32.mrb[0].mxu0
      %v1141 = vpop.f32.mrb[0].mxu0
      %v1142 = vpop.f32.mrb[0].mxu0
      %1143 = vdwg.mxu0
      %1145 = vrot.lane.b32.xlu0 %v923, 8
      %v1146 = vpop.permute.xlu0 %1145
      %1149 = vrot.lane.b32.xlu0 %v1031, 16
      %v1150 = vpop.permute.xlu0 %1149
      %1153 = vrot.lane.b32.xlu0 %v1139, 24
      %v1154 = vpop.permute.xlu0 %1153
      %v1156 = vsel %vm714, %v812, %v1146
      %v1157 = vsel %vm761, %v1156, %v1150
      %vm1158 = vcmask 195584
      %v1159 = vsel %vm1158, %v1157, %v1154
      %v1160 = vpack.c.bf16 %v1159, %v1159
      %v1161 = vld [vmem:[%s7] sm:$0xf]
      %v1162 = vld [vmem:[%s7 + $0x4] sm:$0xf]
      %v1163 = vld [vmem:[%s7 + $0x8] sm:$0xf]
      %v1164 = vld [vmem:[%s7 + $0xc] sm:$0xf]
      %v1165 = vld [vmem:[%s8] sm:$0x1]
      %v1167 = vlaneseq
      %v1168 = vshrl.u32 %v1167, 7
      %v1169 = vsub.s32 0, %v1168
      %v1170 = vrot.slane %v1165, %v1169
      %v1176 = vunpack.c.l.b16 %v1161
      %v1177 = vunpack.c.l.b16 %v1162
      %v1178 = vunpack.c.l.b16 %v1163
      %v1179 = vunpack.c.l.b16 %v1164
      %v1180 = vpack.c.b16 %v1177, %v1176
      %v1181 = vpack.c.b16 %v1179, %v1178
      %v1185 = vsel %vm660, %v1160, 0
      %1187 = vmatprep.subr.bf16.mxu0 0
      %1188 = vmatpush1.bf16.msra.mxu0 %v1180
      %1189 = vmatprep.subr.bf16.mxu0 0
      %1190 = vmatpush1.bf16.msra.mxu0 %v1181
      %1191 = vmatprep.subr.bf16.mxu0 0
      %1192 = vmatpush1.bf16.msra.mxu0 0
      %1193 = vmatprep.subr.bf16.mxu0 0
      %1194 = vmatpush1.bf16.msra.mxu0 0
      %1195 = vmatprep.subr.bf16.mxu0 0
      %1196 = vmatpush1.bf16.msra.mxu0 0
      %1197 = vmatprep.subr.bf16.mxu0 0
      %1198 = vmatpush1.bf16.msra.mxu0 0
      %1199 = vmatprep.subr.bf16.mxu0 0
      %1200 = vmatpush1.bf16.msra.mxu0 0
      %1201 = vmatprep.subr.bf16.mxu0 0
      %1202 = vmatpush1.bf16.msra.mxu0 0
      %1203 = vmatprep.subr.bf16.mxu0 0
      %1204 = vmatpush1.bf16.msra.mxu0 0
      %1205 = vmatprep.subr.bf16.mxu0 0
      %1206 = vmatpush1.bf16.msra.mxu0 0
      %1207 = vmatprep.subr.bf16.mxu0 0
      %1208 = vmatpush1.bf16.msra.mxu0 0
      %1209 = vmatprep.subr.bf16.mxu0 0
      %1210 = vmatpush1.bf16.msra.mxu0 0
      %1211 = vmatprep.subr.bf16.mxu0 0
      %1212 = vmatpush1.bf16.msra.mxu0 0
      %1213 = vmatprep.subr.bf16.mxu0 0
      %1214 = vmatpush1.bf16.msra.mxu0 0
      %1215 = vmatprep.subr.bf16.mxu0 0
      %1216 = vmatpush1.bf16.msra.mxu0 0
      %1217 = vmatprep.subr.bf16.mxu0 0
      %1218 = vmatpush1.bf16.msra.mxu0 0
      %1219 = vmatprep.mubr.bf16.mxu0 0
      %1220 = vmatmul.mubr.bf16.gmra.mrb[0].mxu0 %v1185
      %v1221 = vpop.f32.mrb[0].mxu0
      %v1222 = vadd.f32 %v1170, %v1221
      %v1223 = vpop.f32.mrb[0].mxu0
      %v1224 = vpop.f32.mrb[0].mxu0
      %v1225 = vpop.f32.mrb[0].mxu0
      %1226 = vdwg.mxu0
      %v1227 = vadd.f32 %v637, %v1222
      %v1228 = vsel %vm660, %v1227, 0.0
      %1229 = vadd.xlane.f32.xlu0 %v1228
      %v1230 = vpop.xlane.xlu0 %1229
      %v1231 = vrcp.pop 32.0
      %v1232 = vmul.f32 %v1230, %v1231
      %v1233 = vsub.f32 %v1227, %v1232
      %v1234 = vmul.f32 %v1233, %v1233
      %v1235 = vsel %vm660, %v1234, 0.0
      %1236 = vadd.xlane.f32.xlu0 %v1235
      %v1237 = vpop.xlane.xlu0 %1236
      %v1238 = vmul.f32 %v1237, %v1231
      %v1239 = vadd.f32 %v1238, 1e-05
      %v1240 = vrsqrt.pop %v1239
      %v1241 = vmul.f32 %v1233, %v1240
      %v1242 = vld [vmem:[%s9] sm:$0x1]
      %v1244 = vlaneseq
      %v1245 = vshrl.u32 %v1244, 7
      %v1246 = vsub.s32 0, %v1245
      %v1247 = vrot.slane %v1242, %v1246
      %v1249 = vmul.f32 %v1241, %v1247
      %v1250 = vld [vmem:[%s10] sm:$0x1]
      %v1252 = vlaneseq
      %v1253 = vshrl.u32 %v1252, 7
      %v1254 = vsub.s32 0, %v1253
      %v1255 = vrot.slane %v1250, %v1254
      %v1257 = vadd.f32 %v1249, %v1255
      %v1258 = vpack.c.bf16 %v1257, %v1257
      %vm1259 = vcmask 257024
      %1260 = vst.msk [vmem:[%s483] sm:$0xf] %vm1259, %v1258
      %p1261 = scmp.lt.s32.totalorder %s26, 1
      %s1262 = scalar_select %p1261, %s26, 1
      %p1263 = scmp.lt.s32.totalorder %s27, 0
      %s1264 = scalar_select %p1263, %s27, 0
      %s1265 = sadd.s32 %s1264, %s1262
      %s1266 = smul.addr %s1265, 4
      %s1267 = scalar_lea.vmem %s11, %s1266
      // Predicated region
      $region69: #{transformer_forward.16} parent=63 // pred_check
        %p1268 = pneg %p312
      $region70: #{transformer_forward.16} parent=63 // pred_check_branch
        %1270 = sbr.rel (%p1268) target = $region72
      $region71: #{transformer_forward.16} parent=63 // pred_region
        _
      $region72: #{transformer_forward.16} parent=63 // pred_fallthru
        _
    $region64: #{transformer_forward.16} parent=5 // pred_fallthru
      _
    %p1271 = scmp.le.s32.totalorder 2, %s17
    // Predicated region
    $region73: #{transformer_forward.16} parent=5 // pred_check
      %p1272 = pneg %p1271
    $region74: #{transformer_forward.16} parent=5 // pred_check_branch
      %1274 = sbr.rel (%p1272) target = $region76
    $region75: #{transformer_forward.16} parent=5 // pred_region
      %s1275 = ssub.s32 %s17, 2
      // Predicated region
      $region77: #{transformer_forward.16} parent=75 // pred_check
        %p1276 = pneg %p318
      $region78: #{transformer_forward.16} parent=75 // pred_check_branch
        %1278 = sbr.rel (%p1276) target = $region80
      $region79: #{transformer_forward.16} parent=75 // pred_region
        %p1279 = scmp.lt.s32.totalorder %s28, 1
        %s1280 = scalar_select %p1279, %s28, 1
        %p1281 = scmp.lt.s32.totalorder %s29, 0
        %s1282 = scalar_select %p1281, %s29, 0
        %s1283 = sadd.s32 %s1282, %s1280
        %s1284 = smul.addr %s1283, 4
        %s1285 = scalar_lea.vmem %s11, %s1284
      $region80: #{transformer_forward.16} parent=75 // pred_fallthru
        _
    $region76: #{transformer_forward.16} parent=5 // pred_fallthru
      _
  $region6: #{transformer_forward.16} parent=0 // loop_footer
    %s21 = sadd.s32 1, %s17
  $region7: #{transformer_forward.16} parent=0 // loop_footer_branch
    %16 = sbr.rel target = $region3
  $region8: #{transformer_forward.16} parent=0 // loop_exit
    _

// kernel: transformer_forward.21
$region0: #{transformer_forward.21}
  #allocation0 [shape = 'u32[]', space=smem, size = 0x4, offset = 0x4, fixed_abs, tag = 'smem constant byte address 0x4 - core index']
  #allocation1 [shape = 'u32[144,128]{1,0:T(1,128)}', space=vmem, size = 0x12000, scoped, tag = 'internal scratch']
  %s0 = inlined_call_operand.vmem [shape: bf16[16,32], index: 0, kind: input, shape index: {}]
  %s1 = inlined_call_operand.vmem [shape: f32[1,32], index: 1, kind: input, shape index: {}]
  %s2 = inlined_call_operand.vmem [shape: f32[1,32], index: 2, kind: input, shape index: {}]
  %s3 = inlined_call_operand.hbm [shape: f32[16,32], index: 3, kind: output, shape index: {}]
  %s4 = sld [smem:[#allocation0]]
  $region22: #{transformer_forward.21} parent=0
    _
  %s6 = ssub.s32 1, %s4
  %s7 = scalar_select 0, %s6, %s4
  $region1: #{transformer_forward.21} parent=0
    #allocation2 [shape = 'u8[8192]{0}', space=vmem, size = 0x2000, scoped, tag = 'output window, operand 0, single buffered']
    #allocation3 [shape = 's32[1]{0}', space=sflag, size = 0x4, scoped, tag = 'scoped memory for transformer_forward.21']
    %8 = vsyncpa [#allocation3], 0
    // Predicated region
    $region2: #{transformer_forward.21} parent=1 // pred_check
      _
    $region3: #{transformer_forward.21} parent=1 // pred_check_branch
      %10 = sbr.rel (0) target = $region5
    $region4: #{transformer_forward.21} parent=1 // pred_region
      _
    $region5: #{transformer_forward.21} parent=1 // pred_fallthru
      _
    // Predicated region
    $region6: #{transformer_forward.21} parent=1 // pred_check
      _
    $region7: #{transformer_forward.21} parent=1 // pred_check_branch
      %12 = sbr.rel (0) target = $region9
    $region8: #{transformer_forward.21} parent=1 // pred_region
      _
    $region9: #{transformer_forward.21} parent=1 // pred_fallthru
      _
    // Predicated region
    $region10: #{transformer_forward.21} parent=1 // pred_check
      _
    $region11: #{transformer_forward.21} parent=1 // pred_check_branch
      %14 = sbr.rel (0) target = $region13
    $region12: #{transformer_forward.21} parent=1 // pred_region
      _
    $region13: #{transformer_forward.21} parent=1 // pred_fallthru
      _
    %v15 = vld [vmem:[%s0] sm:$0xf]
    %v16 = vld [vmem:[%s0 + $0x4] sm:$0xf]
    %v17 = vunpack.c.l.bf16 %v15
    %v18 = vunpack.c.l.bf16 %v16
    %vm19 = vcmask 261120
    %v20 = vsel %vm19, %v17, 0.0
    %21 = vadd.xlane.f32.xlu0 %v20
    %v22 = vpop.xlane.xlu0 %21
    %v23 = vsel %vm19, %v18, 0.0
    %24 = vadd.xlane.f32.xlu0 %v23
    %v25 = vpop.xlane.xlu0 %24
    %v26 = vrcp.pop 32.0
    %v27 = vmul.f32 %v22, %v26
    %v28 = vmul.f32 %v25, %v26
    %v29 = vsub.f32 %v17, %v27
    %v30 = vsub.f32 %v18, %v28
    %v31 = vmul.f32 %v29, %v29
    %v32 = vmul.f32 %v30, %v30
    %v33 = vsel %vm19, %v31, 0.0
    %34 = vadd.xlane.f32.xlu0 %v33
    %v35 = vpop.xlane.xlu0 %34
    %v36 = vsel %vm19, %v32, 0.0
    %37 = vadd.xlane.f32.xlu0 %v36
    %v38 = vpop.xlane.xlu0 %37
    %v39 = vmul.f32 %v35, %v26
    %v40 = vmul.f32 %v38, %v26
    %v41 = vadd.f32 %v39, 1e-05
    %v42 = vadd.f32 %v40, 1e-05
    %v43 = vrsqrt.pop %v41
    %v44 = vrsqrt.pop %v42
    %v45 = vmul.f32 %v29, %v43
    %v46 = vmul.f32 %v30, %v44
    %v47 = vld [vmem:[%s1] sm:$0x1]
    %v49 = vlaneseq
    %v50 = vshrl.u32 %v49, 7
    %v51 = vsub.s32 0, %v50
    %v52 = vrot.slane %v47, %v51
    %v54 = vmul.f32 %v45, %v52
    %v55 = vmul.f32 %v46, %v52
    %v56 = vld [vmem:[%s2] sm:$0x1]
    %v58 = vlaneseq
    %v59 = vshrl.u32 %v58, 7
    %v60 = vsub.s32 0, %v59
    %v61 = vrot.slane %v56, %v60
    %v63 = vadd.f32 %v54, %v61
    %v64 = vadd.f32 %v55, %v61
    %65 = vst.msk [vmem:[#allocation2] sm:$0xff] %vm19, %v63
    %66 = vst.msk [vmem:[#allocation2 + $0x8] sm:$0xff] %vm19, %v64
    // Predicated region
    $region14: #{transformer_forward.21} parent=1 // pred_check
      _
    $region15: #{transformer_forward.21} parent=1 // pred_check_branch
      %68 = sbr.rel (0) target = $region17
    $region16: #{transformer_forward.21} parent=1 // pred_region
      %s70 = ssub.s32 256, 256
      %71 = vsyncadd [#allocation3], %s70
      %s72 = sshll.u32 [#allocation2], 4
      %s73 = int_to_ptr.vmem [resolvable:$true] %s72
      %78 = dma.vmem_to_hbm [thread:$0]  %s73, 256, %s3, [#allocation3], 128, 128, 8
    $region17: #{transformer_forward.21} parent=1 // pred_fallthru
      _
    // Predicated region
    $region18: #{transformer_forward.21} parent=1 // pred_check
      _
    $region19: #{transformer_forward.21} parent=1 // pred_check_branch
      %80 = sbr.rel (0) target = $region21
    $region20: #{transformer_forward.21} parent=1 // pred_region
      %81 = dma.done [#allocation3], 256
    $region21: #{transformer_forward.21} parent=1 // pred_fallthru
      _
    %82 = vsyncpa [#allocation3], 1

// kernel: transformer_forward.17
$region0: #{transformer_forward.17}
  #allocation0 [shape = 'u32[]', space=smem, size = 0x4, offset = 0x4, fixed_abs, tag = 'smem constant byte address 0x4 - core index']
  #allocation1 [shape = 'u32[144,128]{1,0:T(1,128)}', space=vmem, size = 0x12000, scoped, tag = 'internal scratch']
  %s0 = inlined_call_operand.vmem [shape: bf16[16,32], index: 0, kind: input, shape index: {}]
  %s1 = inlined_call_operand.vmem [shape: bf16[32,64], index: 1, kind: input, shape index: {}]
  %s2 = inlined_call_operand.vmem [shape: f32[1,64], index: 2, kind: input, shape index: {}]
  %s3 = inlined_call_operand.vmem [shape: bf16[64,32], index: 3, kind: input, shape index: {}]
  %s4 = inlined_call_operand.vmem [shape: f32[1,32], index: 4, kind: input, shape index: {}]
  %s5 = inlined_call_operand.vmem [shape: f32[1,32], index: 5, kind: input, shape index: {}]
  %s6 = inlined_call_operand.vmem [shape: f32[1,32], index: 6, kind: input, shape index: {}]
  %s7 = inlined_call_operand.vmem [shape: bf16[16,32], index: 7, kind: output, shape index: {}]
  %s8 = sld [smem:[#allocation0]]
  $region38: #{transformer_forward.17} parent=0
    _
  %s10 = ssub.s32 1, %s8
  %s11 = scalar_select 0, %s10, %s8
  // Predicated region
  $region2: #{transformer_forward.17} parent=0 // pred_check
    _
  $region3: #{transformer_forward.17} parent=0 // pred_check_branch
    %13 = sbr.rel (0) target = $region5
  $region4: #{transformer_forward.17} parent=0 // pred_region
    _
  $region5: #{transformer_forward.17} parent=0 // pred_fallthru
    _
  // Predicated region
  $region6: #{transformer_forward.17} parent=0 // pred_check
    _
  $region7: #{transformer_forward.17} parent=0 // pred_check_branch
    %15 = sbr.rel (0) target = $region9
  $region8: #{transformer_forward.17} parent=0 // pred_region
    _
  $region9: #{transformer_forward.17} parent=0 // pred_fallthru
    _
  // Predicated region
  $region10: #{transformer_forward.17} parent=0 // pred_check
    _
  $region11: #{transformer_forward.17} parent=0 // pred_check_branch
    %17 = sbr.rel (0) target = $region13
  $region12: #{transformer_forward.17} parent=0 // pred_region
    _
  $region13: #{transformer_forward.17} parent=0 // pred_fallthru
    _
  // Predicated region
  $region14: #{transformer_forward.17} parent=0 // pred_check
    _
  $region15: #{transformer_forward.17} parent=0 // pred_check_branch
    %19 = sbr.rel (0) target = $region17
  $region16: #{transformer_forward.17} parent=0 // pred_region
    _
  $region17: #{transformer_forward.17} parent=0 // pred_fallthru
    _
  // Predicated region
  $region18: #{transformer_forward.17} parent=0 // pred_check
    _
  $region19: #{transformer_forward.17} parent=0 // pred_check_branch
    %21 = sbr.rel (0) target = $region21
  $region20: #{transformer_forward.17} parent=0 // pred_region
    _
  $region21: #{transformer_forward.17} parent=0 // pred_fallthru
    _
  // Predicated region
  $region22: #{transformer_forward.17} parent=0 // pred_check
    _
  $region23: #{transformer_forward.17} parent=0 // pred_check_branch
    %23 = sbr.rel (0) target = $region25
  $region24: #{transformer_forward.17} parent=0 // pred_region
    _
  $region25: #{transformer_forward.17} parent=0 // pred_fallthru
    _
  // Predicated region
  $region26: #{transformer_forward.17} parent=0 // pred_check
    _
  $region27: #{transformer_forward.17} parent=0 // pred_check_branch
    %25 = sbr.rel (0) target = $region29
  $region28: #{transformer_forward.17} parent=0 // pred_region
    _
  $region29: #{transformer_forward.17} parent=0 // pred_fallthru
    _
  %v27 = vld [vmem:[%s0] sm:$0xf]
  %v28 = vld [vmem:[%s0 + $0x4] sm:$0xf]
  %v29 = vld [vmem:[%s1] sm:$0xf]
  %v30 = vld [vmem:[%s1 + $0x4] sm:$0xf]
  %v31 = vld [vmem:[%s1 + $0x8] sm:$0xf]
  %v32 = vld [vmem:[%s1 + $0xc] sm:$0xf]
  %v33 = vld [vmem:[%s2] sm:$0x1]
  %v35 = vlaneseq
  %v36 = vshrl.u32 %v35, 7
  %v37 = vsub.s32 0, %v36
  %v38 = vrot.slane %v33, %v37
  %v42 = vunpack.c.l.b16 %v27
  %v43 = vunpack.c.l.b16 %v28
  %v44 = vpack.c.b16 %v43, %v42
  %v49 = vunpack.c.l.b16 %v29
  %v50 = vunpack.c.l.b16 %v30
  %v51 = vunpack.c.l.b16 %v31
  %v52 = vunpack.c.l.b16 %v32
  %v53 = vpack.c.b16 %v50, %v49
  %v54 = vpack.c.b16 %v52, %v51
  %vm57 = vcmask 261120
  %v59 = vsel %vm57, %v44, 0
  %61 = vmatprep.subr.bf16.mxu0 0
  %62 = vmatpush1.bf16.msra.mxu0 %v53
  %63 = vmatprep.subr.bf16.mxu0 0
  %64 = vmatpush1.bf16.msra.mxu0 %v54
  %65 = vmatprep.subr.bf16.mxu0 0
  %66 = vmatpush1.bf16.msra.mxu0 0
  %67 = vmatprep.subr.bf16.mxu0 0
  %68 = vmatpush1.bf16.msra.mxu0 0
  %69 = vmatprep.subr.bf16.mxu0 0
  %70 = vmatpush1.bf16.msra.mxu0 0
  %71 = vmatprep.subr.bf16.mxu0 0
  %72 = vmatpush1.bf16.msra.mxu0 0
  %73 = vmatprep.subr.bf16.mxu0 0
  %74 = vmatpush1.bf16.msra.mxu0 0
  %75 = vmatprep.subr.bf16.mxu0 0
  %76 = vmatpush1.bf16.msra.mxu0 0
  %77 = vmatprep.subr.bf16.mxu0 0
  %78 = vmatpush1.bf16.msra.mxu0 0
  %79 = vmatprep.subr.bf16.mxu0 0
  %80 = vmatpush1.bf16.msra.mxu0 0
  %81 = vmatprep.subr.bf16.mxu0 0
  %82 = vmatpush1.bf16.msra.mxu0 0
  %83 = vmatprep.subr.bf16.mxu0 0
  %84 = vmatpush1.bf16.msra.mxu0 0
  %85 = vmatprep.subr.bf16.mxu0 0
  %86 = vmatpush1.bf16.msra.mxu0 0
  %87 = vmatprep.subr.bf16.mxu0 0
  %88 = vmatpush1.bf16.msra.mxu0 0
  %89 = vmatprep.subr.bf16.mxu0 0
  %90 = vmatpush1.bf16.msra.mxu0 0
  %91 = vmatprep.subr.bf16.mxu0 0
  %92 = vmatpush1.bf16.msra.mxu0 0
  %93 = vmatprep.mubr.bf16.mxu0 0
  %94 = vmatmul.mubr.bf16.gmra.mrb[0].mxu0 %v59
  %v95 = vpop.f32.mrb[0].mxu0
  %v96 = vadd.f32 %v38, %v95
  %v97 = vpop.f32.mrb[0].mxu0
  %v98 = vpop.f32.mrb[0].mxu0
  %v99 = vadd.f32 %v38, %v98
  %v100 = vpop.f32.mrb[0].mxu0
  %101 = vdwg.mxu0
  %v102 = vmax.f32 %v96, 0.0
  %v103 = vmax.f32 %v99, 0.0
  %v104 = vpack.c.bf16 %v103, %v102
  %v105 = vld [vmem:[%s3] sm:$0xf]
  %v106 = vld [vmem:[%s3 + $0x4] sm:$0xf]
  %v107 = vld [vmem:[%s3 + $0x8] sm:$0xf]
  %v108 = vld [vmem:[%s3 + $0xc] sm:$0xf]
  %v109 = vld [vmem:[%s3 + $0x10] sm:$0xf]
  %v110 = vld [vmem:[%s3 + $0x14] sm:$0xf]
  %v111 = vld [vmem:[%s3 + $0x18] sm:$0xf]
  %v112 = vld [vmem:[%s3 + $0x1c] sm:$0xf]
  %v113 = vld [vmem:[%s4] sm:$0x1]
  %v115 = vlaneseq
  %v116 = vshrl.u32 %v115, 7
  %v117 = vsub.s32 0, %v116
  %v118 = vrot.slane %v113, %v117
  %v128 = vunpack.c.l.b16 %v105
  %v129 = vunpack.c.l.b16 %v106
  %v130 = vunpack.c.l.b16 %v107
  %v131 = vunpack.c.l.b16 %v108
  %v132 = vunpack.c.l.b16 %v109
  %v133 = vunpack.c.l.b16 %v110
  %v134 = vunpack.c.l.b16 %v111
  %v135 = vunpack.c.l.b16 %v112
  %v136 = vpack.c.b16 %v129, %v128
  %v137 = vpack.c.b16 %v131, %v130
  %v138 = vpack.c.b16 %v133, %v132
  %v139 = vpack.c.b16 %v135, %v134
  %vm144 = vcmask 523264
  %v146 = vsel %vm144, %v104, 0
  %148 = vmatprep.subr.bf16.mxu0 0
  %149 = vmatpush1.bf16.msra.mxu0 %v136
  %150 = vmatprep.subr.bf16.mxu0 0
  %151 = vmatpush1.bf16.msra.mxu0 %v137
  %152 = vmatprep.subr.bf16.mxu0 0
  %153 = vmatpush1.bf16.msra.mxu0 %v138
  %154 = vmatprep.subr.bf16.mxu0 0
  %155 = vmatpush1.bf16.msra.mxu0 %v139
  %156 = vmatprep.subr.bf16.mxu0 0
  %157 = vmatpush1.bf16.msra.mxu0 0
  %158 = vmatprep.subr.bf16.mxu0 0
  %159 = vmatpush1.bf16.msra.mxu0 0
  %160 = vmatprep.subr.bf16.mxu0 0
  %161 = vmatpush1.bf16.msra.mxu0 0
  %162 = vmatprep.subr.bf16.mxu0 0
  %163 = vmatpush1.bf16.msra.mxu0 0
  %164 = vmatprep.subr.bf16.mxu0 0
  %165 = vmatpush1.bf16.msra.mxu0 0
  %166 = vmatprep.subr.bf16.mxu0 0
  %167 = vmatpush1.bf16.msra.mxu0 0
  %168 = vmatprep.subr.bf16.mxu0 0
  %169 = vmatpush1.bf16.msra.mxu0 0
  %170 = vmatprep.subr.bf16.mxu0 0
  %171 = vmatpush1.bf16.msra.mxu0 0
  %172 = vmatprep.subr.bf16.mxu0 0
  %173 = vmatpush1.bf16.msra.mxu0 0
  %174 = vmatprep.subr.bf16.mxu0 0
  %175 = vmatpush1.bf16.msra.mxu0 0
  %176 = vmatprep.subr.bf16.mxu0 0
  %177 = vmatpush1.bf16.msra.mxu0 0
  %178 = vmatprep.subr.bf16.mxu0 0
  %179 = vmatpush1.bf16.msra.mxu0 0
  %180 = vmatprep.mubr.bf16.mxu0 0
  %181 = vmatmul.mubr.bf16.gmra.mrb[0].mxu0 %v146
  %v182 = vpop.f32.mrb[0].mxu0
  %v183 = vadd.f32 %v118, %v182
  %v184 = vpop.f32.mrb[0].mxu0
  %v185 = vpop.f32.mrb[0].mxu0
  %v186 = vadd.f32 %v118, %v185
  %v187 = vpop.f32.mrb[0].mxu0
  %188 = vdwg.mxu0
  %v189 = vunpack.c.l.bf16 %v27
  %v190 = vunpack.c.l.bf16 %v28
  %v191 = vadd.f32 %v189, %v183
  %v192 = vadd.f32 %v190, %v186
  %v193 = vsel %vm57, %v191, 0.0
  %194 = vadd.xlane.f32.xlu0 %v193
  %v195 = vpop.xlane.xlu0 %194
  %v196 = vsel %vm57, %v192, 0.0
  %197 = vadd.xlane.f32.xlu0 %v196
  %v198 = vpop.xlane.xlu0 %197
  %v199 = vrcp.pop 32.0
  %v200 = vmul.f32 %v195, %v199
  %v201 = vmul.f32 %v198, %v199
  %v202 = vsub.f32 %v191, %v200
  %v203 = vsub.f32 %v192, %v201
  %v204 = vmul.f32 %v202, %v202
  %v205 = vmul.f32 %v203, %v203
  %v206 = vsel %vm57, %v204, 0.0
  %207 = vadd.xlane.f32.xlu0 %v206
  %v208 = vpop.xlane.xlu0 %207
  %v209 = vsel %vm57, %v205, 0.0
  %210 = vadd.xlane.f32.xlu0 %v209
  %v211 = vpop.xlane.xlu0 %210
  %v212 = vmul.f32 %v208, %v199
  %v213 = vmul.f32 %v211, %v199
  %v214 = vadd.f32 %v212, 1e-05
  %v215 = vadd.f32 %v213, 1e-05
  %v216 = vrsqrt.pop %v214
  %v217 = vrsqrt.pop %v215
  %v218 = vmul.f32 %v202, %v216
  %v219 = vmul.f32 %v203, %v217
  %v220 = vld [vmem:[%s5] sm:$0x1]
  %v222 = vlaneseq
  %v223 = vshrl.u32 %v222, 7
  %v224 = vsub.s32 0, %v223
  %v225 = vrot.slane %v220, %v224
  %v227 = vmul.f32 %v218, %v225
  %v228 = vmul.f32 %v219, %v225
  %v229 = vld [vmem:[%s6] sm:$0x1]
  %v231 = vlaneseq
  %v232 = vshrl.u32 %v231, 7
  %v233 = vsub.s32 0, %v232
  %v234 = vrot.slane %v229, %v233
  %v236 = vadd.f32 %v227, %v234
  %v237 = vadd.f32 %v228, %v234
  %v238 = vpack.c.bf16 %v237, %v236
  %v240 = vunpack.c.l.b16 %v238
  %v241 = vunpack.c.h.b16 %v238
  %v242 = vpack.c.b16 %v240, %v240
  %v243 = vpack.c.b16 %v241, %v241
  %vm246 = vcmask 257024
  %247 = vst.msk [vmem:[%s7] sm:$0xf] %vm246, %v242
  %248 = vst.msk [vmem:[%s7 + $0x4] sm:$0xf] %vm246, %v243
  // Predicated region
  $region30: #{transformer_forward.17} parent=0 // pred_check
    _
  $region31: #{transformer_forward.17} parent=0 // pred_check_branch
    %250 = sbr.rel (0) target = $region33
  $region32: #{transformer_forward.17} parent=0 // pred_region
    _
  $region33: #{transformer_forward.17} parent=0 // pred_fallthru
    _
  // Predicated region
  $region34: #{transformer_forward.17} parent=0 // pred_check
    _
  $region35: #{transformer_forward.17} parent=0 // pred_check_branch
    %252 = sbr.rel (0) target = $region37
  $region36: #{transformer_forward.17} parent=0 // pred_region
    _
  $region37: #{transformer_forward.17} parent=0 // pred_fallthru
    _

</llo_original>
